<compile_context>
chip_gen: v6e
topology: v6e:2x2x1
jax: 0.10.0
libtpu: 0.0.40
codegen_flags: <defaults>
</compile_context>

<pallas_src>
import functools

import jax
import jax.numpy as jnp
from jax import lax
from jax.experimental import pallas as pl
from jax.experimental.pallas import tpu as pltpu


KSIZE = 5
STRIDE = 2
TAPS = KSIZE * KSIZE
SLOPE = 0.2


def _round_up(x, m):
    return ((x + m - 1) // m) * m


def _cdiv(a, b):
    return (a + b - 1) // b


# ----------------------------- Pallas kernels ------------------------------ #

def _convT_kernel(xT_ref, wT_ref, shift_ref, o_ref, *, slope):
    """o[Cout, tm] = leaky( wT[Cout, K] @ xT[K, tm] + shift[Cout, 1] ).

    The ragged last lane block is Pallas-masked; padding columns never mix
    across the lane axis (pure matmul + pointwise epilogue) and are dropped
    on store — do not add any epilogue that reduces over M.
    """
    y = jnp.dot(wT_ref[...], xT_ref[...], preferred_element_type=jnp.float32)
    y = y + shift_ref[...]                       # conv bias + folded BN affine
    o_ref[...] = jnp.maximum(y, slope * y).astype(o_ref.dtype)   # slope < 1


def _choose_tile(M):
    """Lane-axis (M) tiling.

    Small M: one ragged 128-multiple block (grid=1) — launch-bound regime,
    extra grid steps are pure overhead on single-TC v5e/v6e.
    Large M: >= 2 near-balanced (last block >= 75% of tm) 128-multiple steps
    so both v7x TensorCores get work and per-block VMEM stays bounded.
    """
    if M <= 4096:
        return _round_up(M, 128), 1
    nsteps = 2
    while True:
        tm = _round_up(_cdiv(M, nsteps), 128)
        grid = _cdiv(M, tm)
        last = M - (grid - 1) * tm
        if (tm <= 2048 and last >= 0.75 * tm) or tm <= 128:
            return tm, grid
        nsteps *= 2


def convT(xT, wT, shiftT, *, slope=SLOPE):
    """xT: [K, M], wT: [Cout, K], shiftT: [Cout, 1] -> [Cout, M] (f32)."""
    K, M = xT.shape
    Cout = wT.shape[0]
    tm, grid = _choose_tile(M)
    cost = pl.CostEstimate(
        flops=2 * Cout * K * M,
        transcendentals=0,
        bytes_accessed=4 * (K * M + Cout * K + Cout + Cout * M))
    return pl.pallas_call(
        functools.partial(_convT_kernel, slope=slope),
        out_shape=jax.ShapeDtypeStruct((Cout, M), jnp.float32),
        grid=(grid,),
        in_specs=[
            pl.BlockSpec((K, tm), lambda i: (0, i)),     # patches (lanes = M)
            pl.BlockSpec((Cout, K), lambda i: (0, 0)),   # folded weights
            pl.BlockSpec((Cout, 1), lambda i: (0, 0)),   # folded bias/BN shift
        ],
        out_specs=pl.BlockSpec((Cout, tm), lambda i: (0, i)),
        compiler_params=pltpu.CompilerParams(
            dimension_semantics=("parallel",)),
        cost_estimate=cost,
    )(xT, wT, shiftT)


def _head_kernel(x3_ref, w3_ref, s3_ref, w4_ref, s4_ref, wl_ref, bl_ref,
                 o_ref, y3_ref, *, slope, n, taps):
    """Fused conv3 -> leaky -> conv4 (1x1 spatial out) -> leaky -> Linear.

    x3_ref: [K3, taps*n] conv3 patches, columns ordered (spatial p, batch n).
    conv3's activation stays in the y3_ref VMEM scratch; conv4's "im2col" is
    then `taps` contiguous column blocks of that scratch (tap p = spatial p).
    """
    y3 = jnp.dot(w3_ref[...], x3_ref[...], preferred_element_type=jnp.float32)
    y3 = y3 + s3_ref[...]
    y3_ref[...] = jnp.maximum(y3, slope * y3)               # [C3, taps*n]

    c4 = s4_ref.shape[0]
    y4 = jnp.zeros((c4, n), jnp.float32)
    for p in range(taps):                                   # static unroll
        y4 = y4 + jnp.dot(w4_ref[p], y3_ref[:, p * n:(p + 1) * n],
                          preferred_element_type=jnp.float32)
    y4 = y4 + s4_ref[...]
    y4 = jnp.maximum(y4, slope * y4)                        # [C4, n]

    o = jnp.dot(wl_ref[...], y4, preferred_element_type=jnp.float32)
    o_ref[...] = (o + bl_ref[...]).astype(o_ref.dtype)      # [1, n]


def head(x3T, w3T, s3, w4s, s4, wlT, bl, *, slope=SLOPE):
    K3, M3 = x3T.shape
    C3 = w3T.shape[0]
    taps, C4, _ = w4s.shape
    assert M3 % taps == 0
    N = M3 // taps
    cost = pl.CostEstimate(
        flops=2 * C3 * K3 * M3 + 2 * taps * C4 * C3 * N + 2 * C4 * N,
        transcendentals=0,
        bytes_accessed=4 * (K3 * M3 + C3 * K3 + C3 + taps * C4 * C3
                            + C4 + C4 + 1 + N))
    # TODO(synk): add a grid over the batch axis for very large N on v7x so
    # the x3 block stays within the 32 MiB scoped-VMEM default.
    return pl.pallas_call(
        functools.partial(_head_kernel, slope=slope, n=N, taps=taps),
        out_shape=jax.ShapeDtypeStruct((1, N), jnp.float32),
        grid=(1,),
        in_specs=[
            pl.BlockSpec((K3, M3), lambda i: (0, 0)),           # conv3 patches
            pl.BlockSpec((C3, K3), lambda i: (0, 0)),           # conv3 weights
            pl.BlockSpec((C3, 1), lambda i: (0, 0)),            # conv3 shift
            pl.BlockSpec((taps, C4, C3), lambda i: (0, 0, 0)),  # conv4 per-tap w
            pl.BlockSpec((C4, 1), lambda i: (0, 0)),            # conv4 shift
            pl.BlockSpec((1, C4), lambda i: (0, 0)),            # linear weight
            pl.BlockSpec((1, 1), lambda i: (0, 0)),             # linear bias
        ],
        out_specs=pl.BlockSpec((1, N), lambda i: (0, 0)),
        scratch_shapes=[pltpu.VMEM((C3, M3), jnp.float32)],
        compiler_params=pltpu.CompilerParams(
            dimension_semantics=("arbitrary",)),
        cost_estimate=cost,
    )(x3T, w3T, s3, w4s, s4, wlT, bl)


# ------------------------------ JAX glue ----------------------------------- #

def im2col_T(a, k, s):
    """a: [C, N, H, W] -> [k*k*C, N*Ho*Wo]; rows (kh, kw, cin), cols (n, ho, wo)."""
    C, N, H, W = a.shape
    Ho = (H - k) // s + 1
    Wo = (W - k) // s + 1
    M = N * Ho * Wo
    rows = []
    for dy in range(k):
        for dx in range(k):
            rows.append(a[:, :, dy:dy + s * Ho:s, dx:dx + s * Wo:s].reshape(C, M))
    return jnp.concatenate(rows, axis=0), (N, Ho, Wo)


def im2col_T_pn(a, k, s):
    """Like im2col_T but columns ordered (ho, wo, n) — layout the head expects."""
    C, N, H, W = a.shape
    Ho = (H - k) // s + 1
    Wo = (W - k) // s + 1
    M = Ho * Wo * N
    rows = []
    for dy in range(k):
        for dx in range(k):
            blk = a[:, :, dy:dy + s * Ho:s, dx:dx + s * Wo:s]   # [C, N, Ho, Wo]
            rows.append(jnp.transpose(blk, (0, 2, 3, 1)).reshape(C, M))
    return jnp.concatenate(rows, axis=0), (N, Ho, Wo)


def fold_conv(w_hwio, b, scale, shift):
    """HWIO weight + bias + eval-mode BN -> (wT [Cout, K], shiftT [Cout, 1])."""
    kh, kw, cin, cout = w_hwio.shape
    K = kh * kw * cin
    wT = (w_hwio.reshape(K, cout) * scale[None, :]).T.astype(jnp.float32)
    shiftT = (b * scale + shift).reshape(cout, 1).astype(jnp.float32)
    return wT, shiftT


def fold_conv_taps(w_hwio, b, scale, shift):
    """conv4 weights per tap: [taps, Cout, Cin], folded with eval-mode BN."""
    kh, kw, cin, cout = w_hwio.shape
    w4s = (jnp.transpose(w_hwio, (0, 1, 3, 2)).reshape(kh * kw, cout, cin)
           * scale[None, :, None]).astype(jnp.float32)
    shiftT = (b * scale + shift).reshape(cout, 1).astype(jnp.float32)
    return w4s, shiftT


def prepare_params(params):
    """Fold bias/BN into weights, transpose everything once (wrapper side)."""
    convs = params["convs"]
    convsT = [fold_conv(w, b, sc, sh) for (w, b, sc, sh) in convs[:3]]
    w4s, s4 = fold_conv_taps(*convs[3])
    w_lin, b_lin = params["linear"]
    wlT = w_lin.T.astype(jnp.float32)                 # [1, feat] (feat == C4)
    bl = b_lin.reshape(1, 1).astype(jnp.float32)
    return {"convsT": convsT, "conv4": (w4s, s4), "linearT": (wlT, bl)}


def conv_out(h, k=KSIZE, s=STRIDE, n=4):
    for _ in range(n):
        h = (h - k) // s + 1
    return h


def init_params(key, output_size, in_spatial, in_ch=3, ksize=KSIZE):
    chs = [in_ch, output_size, output_size * 2, output_size * 4, output_size * 8]
    eps = 1e-5
    convs = []
    for li in range(4):
        key, kw, kb, kg, kbe = jax.random.split(key, 5)
        cin, cout = chs[li], chs[li + 1]
        fan_in = cin * ksize * ksize
        w = jax.random.normal(kw, (ksize, ksize, cin, cout), jnp.float32) / jnp.sqrt(fan_in)
        b = 0.01 * jax.random.normal(kb, (cout,), jnp.float32)
        if li == 0:   # first conv has no BatchNorm
            scale = jnp.ones((cout,), jnp.float32)
            shift = jnp.zeros((cout,), jnp.float32)
        else:         # eval-mode BN: running_mean=0, running_var=1
            gamma = 1.0 + 0.1 * jax.random.normal(kg, (cout,), jnp.float32)
            beta = 0.1 * jax.random.normal(kbe, (cout,), jnp.float32)
            scale = gamma / jnp.sqrt(1.0 + eps)
            shift = beta
        convs.append((w, b, scale, shift))

    h_out = conv_out(in_spatial)
    feat = output_size * 8 * h_out * h_out
    key, kw, kb = jax.random.split(key, 3)
    w_lin = jax.random.normal(kw, (feat, 1), jnp.float32) / jnp.sqrt(feat)
    b_lin = 0.01 * jax.random.normal(kb, (1,), jnp.float32)
    return {"convs": convs, "linear": (w_lin, b_lin)}


def eve_forward(kparams, x_nchw):
    """Pallas implementation.  Input mirrors the PyTorch API (NCHW)."""
    a = jnp.transpose(x_nchw.astype(jnp.float32), (1, 0, 2, 3))   # [C, N, H, W]
    for (wT, shiftT) in kparams["convsT"][:2]:                    # conv1, conv2
        xT, (N, Ho, Wo) = im2col_T(a, KSIZE, STRIDE)
        y = convT(xT, wT, shiftT)                                 # [Cout, M]
        a = y.reshape(wT.shape[0], N, Ho, Wo)
    # conv3 + conv4 + Linear fused in one call.  conv4's output must be 1x1
    # spatial so the PyTorch (N, C*H*W) flatten degenerates to the channel
    # axis; other input sizes would need an explicit feature permute here.
    w3T, s3 = kparams["convsT"][2]
    x3T, (N, Ho3, Wo3) = im2col_T_pn(a, KSIZE, STRIDE)
    assert Ho3 == KSIZE and Wo3 == KSIZE, (Ho3, Wo3)   # => conv4 out is 1x1
    w4s, s4 = kparams["conv4"]
    wlT, bl = kparams["linearT"]
    out = head(x3T, w3T, s3, w4s, s4, wlT, bl)                    # [1, N]
    return out.T                                                  # [N, 1]


def eve_reference(params, x_nchw):
    """Pure-JAX reference (lax.conv, unfolded bias/BN) for verification."""
    x = jnp.transpose(x_nchw, (0, 2, 3, 1)).astype(jnp.float32)
    for (w, b, scale, shift) in params["convs"]:
        y = lax.conv_general_dilated(
            x, w, (STRIDE, STRIDE), "VALID",
            dimension_numbers=("NHWC", "HWIO", "NHWC"),
            precision=lax.Precision.HIGHEST)
        y = (y + b) * scale + shift
        x = jnp.where(y >= 0.0, y, SLOPE * y)
    N = x.shape[0]
    feat = jnp.transpose(x, (0, 3, 1, 2)).reshape(N, -1)
    w_lin, b_lin = params["linear"]
    return jnp.dot(feat, w_lin, precision=lax.Precision.HIGHEST) + b_lin


# --------------------------------- main ------------------------------------ #

if __name__ == "__main__":
    # Small shapes: channel base output_size=4 (channels 4/8/16/32),
    # input 64x64 RGB (minimum spatial for four valid k=5,s=2,p=0 convs),
    # batch=2.  Flattened feature size = 4*8 * 1 * 1 = 32.
    output_size = 4
    spatial = 64
    batch = 2

    key = jax.random.PRNGKey(0)
    key, kx, kp = jax.random.split(key, 3)
    x = jax.random.normal(kx, (batch, 3, spatial, spatial), jnp.float32)
    params = init_params(kp, output_size, spatial)
    kparams = prepare_params(params)

    out = jax.block_until_ready(jax.jit(eve_forward)(kparams, x))
    ref = jax.block_until_ready(eve_reference(params, x))

    assert out.shape == (batch, 1), out.shape
    assert jnp.allclose(out, ref, rtol=1e-2, atol=1e-2), (out, ref)
    print("KERNEL_OK")
</pallas_src>

<mosaic_0001>
module attributes {stable_mosaic.version = 11 : i64} {
  func.func @_convT_kernel(%arg0: i32, %arg1: memref<75x1920xf32, #tpu.memory_space<vmem>>, %arg2: memref<4x75xf32, #tpu.memory_space<vmem>>, %arg3: memref<4x1xf32, #tpu.memory_space<vmem>>, %arg4: memref<4x1920xf32, #tpu.memory_space<vmem>>) attributes {dimension_semantics = [#tpu.dimension_semantics<parallel>], iteration_bounds = array<i64: 1>, scalar_prefetch = 0 : i64, scratch_operands = 0 : i64, tpu.core_type = #tpu.core_type<tc>, window_params = [{transform_indices = @transform_0, window_bounds = array<i64: 75, 1920>}, {pipeline_mode = #tpu.pipeline_mode<synchronous>, transform_indices = @transform_1, window_bounds = array<i64: 4, 75>}, {pipeline_mode = #tpu.pipeline_mode<synchronous>, transform_indices = @transform_2, window_bounds = array<i64: 4, 1>}, {transform_indices = @transform_3, window_bounds = array<i64: 4, 1920>}]} {
    %c0 = arith.constant 0 : index
    %c0_0 = arith.constant 0 : index
    %0 = vector.load %arg2[%c0, %c0_0] : memref<4x75xf32, #tpu.memory_space<vmem>>, vector<4x75xf32>
    %c0_1 = arith.constant 0 : index
    %c0_2 = arith.constant 0 : index
    %1 = vector.load %arg1[%c0_1, %c0_2] : memref<75x1920xf32, #tpu.memory_space<vmem>>, vector<75x1920xf32>
    %cst = arith.constant dense<0.000000e+00> : vector<4x1920xf32>
    %2 = tpu.matmul %0, %1, %cst {dimension_numbers = #tpu.dot_dimension_numbers<[1], [0], [0], [1], [0, 0, 1, 1], [], []>} : vector<4x75xf32>, vector<75x1920xf32>, vector<4x1920xf32> -> vector<4x1920xf32>
    %c0_3 = arith.constant 0 : index
    %c0_4 = arith.constant 0 : index
    %3 = vector.load %arg3[%c0_3, %c0_4] : memref<4x1xf32, #tpu.memory_space<vmem>>, vector<4x1xf32>
    %4 = vector.broadcast %3 : vector<4x1xf32> to vector<4x1920xf32>
    %5 = arith.addf %2, %4 : vector<4x1920xf32>
    %cst_5 = arith.constant 2.000000e-01 : f32
    %6 = vector.broadcast %cst_5 : f32 to vector<4x1920xf32>
    %7 = arith.mulf %6, %5 : vector<4x1920xf32>
    %8 = arith.maximumf %5, %7 : vector<4x1920xf32>
    %c0_6 = arith.constant 0 : index
    %c0_7 = arith.constant 0 : index
    %9 = vector.load %arg4[%c0_6, %c0_7] : memref<4x1920xf32, #tpu.memory_space<vmem>>, vector<4x1920xf32>
    tpu.vector_store %arg4[%c0_6, %c0_7], %8 {strides = array<i32>} : memref<4x1920xf32, #tpu.memory_space<vmem>>, vector<4x1920xf32>,
    return
  }
  func.func @transform_0(%arg0: i32) -> (i32, i32) {
    %c0_i32 = arith.constant 0 : i32
    %c0_i32_0 = arith.constant 0 : i32
    return %c0_i32, %arg0 : i32, i32
  }
  func.func @transform_1(%arg0: i32) -> (i32, i32) {
    %c0_i32 = arith.constant 0 : i32
    %c0_i32_0 = arith.constant 0 : i32
    %c0_i32_1 = arith.constant 0 : i32
    return %c0_i32, %c0_i32_0 : i32, i32
  }
  func.func @transform_2(%arg0: i32) -> (i32, i32) {
    %c0_i32 = arith.constant 0 : i32
    %c0_i32_0 = arith.constant 0 : i32
    %c0_i32_1 = arith.constant 0 : i32
    return %c0_i32, %c0_i32_0 : i32, i32
  }
  func.func @transform_3(%arg0: i32) -> (i32, i32) {
    %c0_i32 = arith.constant 0 : i32
    %c0_i32_0 = arith.constant 0 : i32
    return %c0_i32, %arg0 : i32, i32
  }
}

module attributes {stable_mosaic.version = 11 : i64} {
  func.func @_convT_kernel(%arg0: i32, %arg1: memref<100x384xf32, #tpu.memory_space<vmem>>, %arg2: memref<8x100xf32, #tpu.memory_space<vmem>>, %arg3: memref<8x1xf32, #tpu.memory_space<vmem>>, %arg4: memref<8x384xf32, #tpu.memory_space<vmem>>) attributes {dimension_semantics = [#tpu.dimension_semantics<parallel>], iteration_bounds = array<i64: 1>, scalar_prefetch = 0 : i64, scratch_operands = 0 : i64, tpu.core_type = #tpu.core_type<tc>, window_params = [{transform_indices = @transform_0, window_bounds = array<i64: 100, 384>}, {pipeline_mode = #tpu.pipeline_mode<synchronous>, transform_indices = @transform_1, window_bounds = array<i64: 8, 100>}, {pipeline_mode = #tpu.pipeline_mode<synchronous>, transform_indices = @transform_2, window_bounds = array<i64: 8, 1>}, {transform_indices = @transform_3, window_bounds = array<i64: 8, 384>}]} {
    %c0 = arith.constant 0 : index
    %c0_0 = arith.constant 0 : index
    %0 = vector.load %arg2[%c0, %c0_0] : memref<8x100xf32, #tpu.memory_space<vmem>>, vector<8x100xf32>
    %c0_1 = arith.constant 0 : index
    %c0_2 = arith.constant 0 : index
    %1 = vector.load %arg1[%c0_1, %c0_2] : memref<100x384xf32, #tpu.memory_space<vmem>>, vector<100x384xf32>
    %cst = arith.constant dense<0.000000e+00> : vector<8x384xf32>
    %2 = tpu.matmul %0, %1, %cst {dimension_numbers = #tpu.dot_dimension_numbers<[1], [0], [0], [1], [0, 0, 1, 1], [], []>} : vector<8x100xf32>, vector<100x384xf32>, vector<8x384xf32> -> vector<8x384xf32>
    %c0_3 = arith.constant 0 : index
    %c0_4 = arith.constant 0 : index
    %3 = vector.load %arg3[%c0_3, %c0_4] : memref<8x1xf32, #tpu.memory_space<vmem>>, vector<8x1xf32>
    %4 = vector.broadcast %3 : vector<8x1xf32> to vector<8x384xf32>
    %5 = arith.addf %2, %4 : vector<8x384xf32>
    %cst_5 = arith.constant 2.000000e-01 : f32
    %6 = vector.broadcast %cst_5 : f32 to vector<8x384xf32>
    %7 = arith.mulf %6, %5 : vector<8x384xf32>
    %8 = arith.maximumf %5, %7 : vector<8x384xf32>
    %c0_6 = arith.constant 0 : index
    %c0_7 = arith.constant 0 : index
    %9 = vector.load %arg4[%c0_6, %c0_7] : memref<8x384xf32, #tpu.memory_space<vmem>>, vector<8x384xf32>
    tpu.vector_store %arg4[%c0_6, %c0_7], %8 {strides = array<i32>} : memref<8x384xf32, #tpu.memory_space<vmem>>, vector<8x384xf32>,
    return
  }
  func.func @transform_0(%arg0: i32) -> (i32, i32) {
    %c0_i32 = arith.constant 0 : i32
    %c0_i32_0 = arith.constant 0 : i32
    return %c0_i32, %arg0 : i32, i32
  }
  func.func @transform_1(%arg0: i32) -> (i32, i32) {
    %c0_i32 = arith.constant 0 : i32
    %c0_i32_0 = arith.constant 0 : i32
    %c0_i32_1 = arith.constant 0 : i32
    return %c0_i32, %c0_i32_0 : i32, i32
  }
  func.func @transform_2(%arg0: i32) -> (i32, i32) {
    %c0_i32 = arith.constant 0 : i32
    %c0_i32_0 = arith.constant 0 : i32
    %c0_i32_1 = arith.constant 0 : i32
    return %c0_i32, %c0_i32_0 : i32, i32
  }
  func.func @transform_3(%arg0: i32) -> (i32, i32) {
    %c0_i32 = arith.constant 0 : i32
    %c0_i32_0 = arith.constant 0 : i32
    return %c0_i32, %arg0 : i32, i32
  }
}

module attributes {stable_mosaic.version = 11 : i64} {
  func.func @_head_kernel(%arg0: i32, %arg1: memref<200x50xf32, #tpu.memory_space<vmem>>, %arg2: memref<16x200xf32, #tpu.memory_space<vmem>>, %arg3: memref<16x1xf32, #tpu.memory_space<vmem>>, %arg4: memref<25x32x16xf32, #tpu.memory_space<vmem>>, %arg5: memref<32x1xf32, #tpu.memory_space<vmem>>, %arg6: memref<1x32xf32, #tpu.memory_space<vmem>>, %arg7: memref<1x1xf32, #tpu.memory_space<vmem>>, %arg8: memref<1x2xf32, #tpu.memory_space<vmem>>, %arg9: memref<16x50xf32, #tpu.memory_space<vmem>>) attributes {dimension_semantics = [#tpu.dimension_semantics<arbitrary>], iteration_bounds = array<i64: 1>, scalar_prefetch = 0 : i64, scratch_operands = 1 : i64, tpu.core_type = #tpu.core_type<tc>, window_params = [{pipeline_mode = #tpu.pipeline_mode<synchronous>, transform_indices = @transform_0, window_bounds = array<i64: 200, 50>}, {pipeline_mode = #tpu.pipeline_mode<synchronous>, transform_indices = @transform_1, window_bounds = array<i64: 16, 200>}, {pipeline_mode = #tpu.pipeline_mode<synchronous>, transform_indices = @transform_2, window_bounds = array<i64: 16, 1>}, {pipeline_mode = #tpu.pipeline_mode<synchronous>, transform_indices = @transform_3, window_bounds = array<i64: 25, 32, 16>}, {pipeline_mode = #tpu.pipeline_mode<synchronous>, transform_indices = @transform_4, window_bounds = array<i64: 32, 1>}, {pipeline_mode = #tpu.pipeline_mode<synchronous>, transform_indices = @transform_5, window_bounds = array<i64: 1, 32>}, {pipeline_mode = #tpu.pipeline_mode<synchronous>, transform_indices = @transform_6, window_bounds = array<i64: 1, 1>}, {pipeline_mode = #tpu.pipeline_mode<synchronous>, transform_indices = @transform_7, window_bounds = array<i64: 1, 2>}]} {
    %c0 = arith.constant 0 : index
    %c0_0 = arith.constant 0 : index
    %0 = vector.load %arg2[%c0, %c0_0] : memref<16x200xf32, #tpu.memory_space<vmem>>, vector<16x200xf32>
    %c0_1 = arith.constant 0 : index
    %c0_2 = arith.constant 0 : index
    %1 = vector.load %arg1[%c0_1, %c0_2] : memref<200x50xf32, #tpu.memory_space<vmem>>, vector<200x50xf32>
    %cst = arith.constant dense<0.000000e+00> : vector<16x50xf32>
    %2 = tpu.matmul %0, %1, %cst {dimension_numbers = #tpu.dot_dimension_numbers<[1], [0], [0], [1], [0, 0, 1, 1], [], []>} : vector<16x200xf32>, vector<200x50xf32>, vector<16x50xf32> -> vector<16x50xf32>
    %c0_3 = arith.constant 0 : index
    %c0_4 = arith.constant 0 : index
    %3 = vector.load %arg3[%c0_3, %c0_4] : memref<16x1xf32, #tpu.memory_space<vmem>>, vector<16x1xf32>
    %4 = vector.broadcast %3 : vector<16x1xf32> to vector<16x50xf32>
    %5 = arith.addf %2, %4 : vector<16x50xf32>
    %cst_5 = arith.constant 2.000000e-01 : f32
    %6 = vector.broadcast %cst_5 : f32 to vector<16x50xf32>
    %7 = arith.mulf %6, %5 : vector<16x50xf32>
    %8 = arith.maximumf %5, %7 : vector<16x50xf32>
    %c0_6 = arith.constant 0 : index
    %c0_7 = arith.constant 0 : index
    %9 = vector.load %arg9[%c0_6, %c0_7] : memref<16x50xf32, #tpu.memory_space<vmem>>, vector<16x50xf32>
    tpu.vector_store %arg9[%c0_6, %c0_7], %8 {strides = array<i32>} : memref<16x50xf32, #tpu.memory_space<vmem>>, vector<16x50xf32>,
    %cst_8 = arith.constant 0.000000e+00 : f32
    %10 = vector.broadcast %cst_8 : f32 to vector<32x2xf32>
    %c0_9 = arith.constant 0 : index
    %c0_10 = arith.constant 0 : index
    %c0_11 = arith.constant 0 : index
    %11 = vector.load %arg4[%c0_9, %c0_10, %c0_11] : memref<25x32x16xf32, #tpu.memory_space<vmem>>, vector<1x32x16xf32>
    %12 = vector.shape_cast %11 : vector<1x32x16xf32> to vector<32x16xf32>
    %c0_12 = arith.constant 0 : index
    %c0_13 = arith.constant 0 : index
    %13 = vector.load %arg9[%c0_12, %c0_13] : memref<16x50xf32, #tpu.memory_space<vmem>>, vector<16x2xf32>
    %cst_14 = arith.constant dense<0.000000e+00> : vector<32x2xf32>
    %14 = tpu.matmul %12, %13, %cst_14 {dimension_numbers = #tpu.dot_dimension_numbers<[1], [0], [0], [1], [0, 0, 1, 1], [], []>} : vector<32x16xf32>, vector<16x2xf32>, vector<32x2xf32> -> vector<32x2xf32>
    %15 = arith.addf %10, %14 : vector<32x2xf32>
    %c1 = arith.constant 1 : index
    %c0_15 = arith.constant 0 : index
    %c0_16 = arith.constant 0 : index
    %16 = vector.load %arg4[%c1, %c0_15, %c0_16] : memref<25x32x16xf32, #tpu.memory_space<vmem>>, vector<1x32x16xf32>
    %17 = vector.shape_cast %16 : vector<1x32x16xf32> to vector<32x16xf32>
    %c0_17 = arith.constant 0 : index
    %c2 = arith.constant 2 : index
    %18 = vector.load %arg9[%c0_17, %c2] : memref<16x50xf32, #tpu.memory_space<vmem>>, vector<16x2xf32>
    %cst_18 = arith.constant dense<0.000000e+00> : vector<32x2xf32>
    %19 = tpu.matmul %17, %18, %cst_18 {dimension_numbers = #tpu.dot_dimension_numbers<[1], [0], [0], [1], [0, 0, 1, 1], [], []>} : vector<32x16xf32>, vector<16x2xf32>, vector<32x2xf32> -> vector<32x2xf32>
    %20 = arith.addf %15, %19 : vector<32x2xf32>
    %c2_19 = arith.constant 2 : index
    %c0_20 = arith.constant 0 : index
    %c0_21 = arith.constant 0 : index
    %21 = vector.load %arg4[%c2_19, %c0_20, %c0_21] : memref<25x32x16xf32, #tpu.memory_space<vmem>>, vector<1x32x16xf32>
    %22 = vector.shape_cast %21 : vector<1x32x16xf32> to vector<32x16xf32>
    %c0_22 = arith.constant 0 : index
    %c4 = arith.constant 4 : index
    %23 = vector.load %arg9[%c0_22, %c4] : memref<16x50xf32, #tpu.memory_space<vmem>>, vector<16x2xf32>
    %cst_23 = arith.constant dense<0.000000e+00> : vector<32x2xf32>
    %24 = tpu.matmul %22, %23, %cst_23 {dimension_numbers = #tpu.dot_dimension_numbers<[1], [0], [0], [1], [0, 0, 1, 1], [], []>} : vector<32x16xf32>, vector<16x2xf32>, vector<32x2xf32> -> vector<32x2xf32>
    %25 = arith.addf %20, %24 : vector<32x2xf32>
    %c3 = arith.constant 3 : index
    %c0_24 = arith.constant 0 : index
    %c0_25 = arith.constant 0 : index
    %26 = vector.load %arg4[%c3, %c0_24, %c0_25] : memref<25x32x16xf32, #tpu.memory_space<vmem>>, vector<1x32x16xf32>
    %27 = vector.shape_cast %26 : vector<1x32x16xf32> to vector<32x16xf32>
    %c0_26 = arith.constant 0 : index
    %c6 = arith.constant 6 : index
    %28 = vector.load %arg9[%c0_26, %c6] : memref<16x50xf32, #tpu.memory_space<vmem>>, vector<16x2xf32>
    %cst_27 = arith.constant dense<0.000000e+00> : vector<32x2xf32>
    %29 = tpu.matmul %27, %28, %cst_27 {dimension_numbers = #tpu.dot_dimension_numbers<[1], [0], [0], [1], [0, 0, 1, 1], [], []>} : vector<32x16xf32>, vector<16x2xf32>, vector<32x2xf32> -> vector<32x2xf32>
    %30 = arith.addf %25, %29 : vector<32x2xf32>
    %c4_28 = arith.constant 4 : index
    %c0_29 = arith.constant 0 : index
    %c0_30 = arith.constant 0 : index
    %31 = vector.load %arg4[%c4_28, %c0_29, %c0_30] : memref<25x32x16xf32, #tpu.memory_space<vmem>>, vector<1x32x16xf32>
    %32 = vector.shape_cast %31 : vector<1x32x16xf32> to vector<32x16xf32>
    %c0_31 = arith.constant 0 : index
    %c8 = arith.constant 8 : index
    %33 = vector.load %arg9[%c0_31, %c8] : memref<16x50xf32, #tpu.memory_space<vmem>>, vector<16x2xf32>
    %cst_32 = arith.constant dense<0.000000e+00> : vector<32x2xf32>
    %34 = tpu.matmul %32, %33, %cst_32 {dimension_numbers = #tpu.dot_dimension_numbers<[1], [0], [0], [1], [0, 0, 1, 1], [], []>} : vector<32x16xf32>, vector<16x2xf32>, vector<32x2xf32> -> vector<32x2xf32>
    %35 = arith.addf %30, %34 : vector<32x2xf32>
    %c5 = arith.constant 5 : index
    %c0_33 = arith.constant 0 : index
    %c0_34 = arith.constant 0 : index
    %36 = vector.load %arg4[%c5, %c0_33, %c0_34] : memref<25x32x16xf32, #tpu.memory_space<vmem>>, vector<1x32x16xf32>
    %37 = vector.shape_cast %36 : vector<1x32x16xf32> to vector<32x16xf32>
    %c0_35 = arith.constant 0 : index
    %c10 = arith.constant 10 : index
    %38 = vector.load %arg9[%c0_35, %c10] : memref<16x50xf32, #tpu.memory_space<vmem>>, vector<16x2xf32>
    %cst_36 = arith.constant dense<0.000000e+00> : vector<32x2xf32>
    %39 = tpu.matmul %37, %38, %cst_36 {dimension_numbers = #tpu.dot_dimension_numbers<[1], [0], [0], [1], [0, 0, 1, 1], [], []>} : vector<32x16xf32>, vector<16x2xf32>, vector<32x2xf32> -> vector<32x2xf32>
    %40 = arith.addf %35, %39 : vector<32x2xf32>
    %c6_37 = arith.constant 6 : index
    %c0_38 = arith.constant 0 : index
    %c0_39 = arith.constant 0 : index
    %41 = vector.load %arg4[%c6_37, %c0_38, %c0_39] : memref<25x32x16xf32, #tpu.memory_space<vmem>>, vector<1x32x16xf32>
    %42 = vector.shape_cast %41 : vector<1x32x16xf32> to vector<32x16xf32>
    %c0_40 = arith.constant 0 : index
    %c12 = arith.constant 12 : index
    %43 = vector.load %arg9[%c0_40, %c12] : memref<16x50xf32, #tpu.memory_space<vmem>>, vector<16x2xf32>
    %cst_41 = arith.constant dense<0.000000e+00> : vector<32x2xf32>
    %44 = tpu.matmul %42, %43, %cst_41 {dimension_numbers = #tpu.dot_dimension_numbers<[1], [0], [0], [1], [0, 0, 1, 1], [], []>} : vector<32x16xf32>, vector<16x2xf32>, vector<32x2xf32> -> vector<32x2xf32>
    %45 = arith.addf %40, %44 : vector<32x2xf32>
    %c7 = arith.constant 7 : index
    %c0_42 = arith.constant 0 : index
    %c0_43 = arith.constant 0 : index
    %46 = vector.load %arg4[%c7, %c0_42, %c0_43] : memref<25x32x16xf32, #tpu.memory_space<vmem>>, vector<1x32x16xf32>
    %47 = vector.shape_cast %46 : vector<1x32x16xf32> to vector<32x16xf32>
    %c0_44 = arith.constant 0 : index
    %c14 = arith.constant 14 : index
    %48 = vector.load %arg9[%c0_44, %c14] : memref<16x50xf32, #tpu.memory_space<vmem>>, vector<16x2xf32>
    %cst_45 = arith.constant dense<0.000000e+00> : vector<32x2xf32>
    %49 = tpu.matmul %47, %48, %cst_45 {dimension_numbers = #tpu.dot_dimension_numbers<[1], [0], [0], [1], [0, 0, 1, 1], [], []>} : vector<32x16xf32>, vector<16x2xf32>, vector<32x2xf32> -> vector<32x2xf32>
    %50 = arith.addf %45, %49 : vector<32x2xf32>
    %c8_46 = arith.constant 8 : index
    %c0_47 = arith.constant 0 : index
    %c0_48 = arith.constant 0 : index
    %51 = vector.load %arg4[%c8_46, %c0_47, %c0_48] : memref<25x32x16xf32, #tpu.memory_space<vmem>>, vector<1x32x16xf32>
    %52 = vector.shape_cast %51 : vector<1x32x16xf32> to vector<32x16xf32>
    %c0_49 = arith.constant 0 : index
    %c16 = arith.constant 16 : index
    %53 = vector.load %arg9[%c0_49, %c16] : memref<16x50xf32, #tpu.memory_space<vmem>>, vector<16x2xf32>
    %cst_50 = arith.constant dense<0.000000e+00> : vector<32x2xf32>
    %54 = tpu.matmul %52, %53, %cst_50 {dimension_numbers = #tpu.dot_dimension_numbers<[1], [0], [0], [1], [0, 0, 1, 1], [], []>} : vector<32x16xf32>, vector<16x2xf32>, vector<32x2xf32> -> vector<32x2xf32>
    %55 = arith.addf %50, %54 : vector<32x2xf32>
    %c9 = arith.constant 9 : index
    %c0_51 = arith.constant 0 : index
    %c0_52 = arith.constant 0 : index
    %56 = vector.load %arg4[%c9, %c0_51, %c0_52] : memref<25x32x16xf32, #tpu.memory_space<vmem>>, vector<1x32x16xf32>
    %57 = vector.shape_cast %56 : vector<1x32x16xf32> to vector<32x16xf32>
    %c0_53 = arith.constant 0 : index
    %c18 = arith.constant 18 : index
    %58 = vector.load %arg9[%c0_53, %c18] : memref<16x50xf32, #tpu.memory_space<vmem>>, vector<16x2xf32>
    %cst_54 = arith.constant dense<0.000000e+00> : vector<32x2xf32>
    %59 = tpu.matmul %57, %58, %cst_54 {dimension_numbers = #tpu.dot_dimension_numbers<[1], [0], [0], [1], [0, 0, 1, 1], [], []>} : vector<32x16xf32>, vector<16x2xf32>, vector<32x2xf32> -> vector<32x2xf32>
    %60 = arith.addf %55, %59 : vector<32x2xf32>
    %c10_55 = arith.constant 10 : index
    %c0_56 = arith.constant 0 : index
    %c0_57 = arith.constant 0 : index
    %61 = vector.load %arg4[%c10_55, %c0_56, %c0_57] : memref<25x32x16xf32, #tpu.memory_space<vmem>>, vector<1x32x16xf32>
    %62 = vector.shape_cast %61 : vector<1x32x16xf32> to vector<32x16xf32>
    %c0_58 = arith.constant 0 : index
    %c20 = arith.constant 20 : index
    %63 = vector.load %arg9[%c0_58, %c20] : memref<16x50xf32, #tpu.memory_space<vmem>>, vector<16x2xf32>
    %cst_59 = arith.constant dense<0.000000e+00> : vector<32x2xf32>
    %64 = tpu.matmul %62, %63, %cst_59 {dimension_numbers = #tpu.dot_dimension_numbers<[1], [0], [0], [1], [0, 0, 1, 1], [], []>} : vector<32x16xf32>, vector<16x2xf32>, vector<32x2xf32> -> vector<32x2xf32>
    %65 = arith.addf %60, %64 : vector<32x2xf32>
    %c11 = arith.constant 11 : index
    %c0_60 = arith.constant 0 : index
    %c0_61 = arith.constant 0 : index
    %66 = vector.load %arg4[%c11, %c0_60, %c0_61] : memref<25x32x16xf32, #tpu.memory_space<vmem>>, vector<1x32x16xf32>
    %67 = vector.shape_cast %66 : vector<1x32x16xf32> to vector<32x16xf32>
    %c0_62 = arith.constant 0 : index
    %c22 = arith.constant 22 : index
    %68 = vector.load %arg9[%c0_62, %c22] : memref<16x50xf32, #tpu.memory_space<vmem>>, vector<16x2xf32>
    %cst_63 = arith.constant dense<0.000000e+00> : vector<32x2xf32>
    %69 = tpu.matmul %67, %68, %cst_63 {dimension_numbers = #tpu.dot_dimension_numbers<[1], [0], [0], [1], [0, 0, 1, 1], [], []>} : vector<32x16xf32>, vector<16x2xf32>, vector<32x2xf32> -> vector<32x2xf32>
    %70 = arith.addf %65, %69 : vector<32x2xf32>
    %c12_64 = arith.constant 12 : index
    %c0_65 = arith.constant 0 : index
    %c0_66 = arith.constant 0 : index
    %71 = vector.load %arg4[%c12_64, %c0_65, %c0_66] : memref<25x32x16xf32, #tpu.memory_space<vmem>>, vector<1x32x16xf32>
    %72 = vector.shape_cast %71 : vector<1x32x16xf32> to vector<32x16xf32>
    %c0_67 = arith.constant 0 : index
    %c24 = arith.constant 24 : index
    %73 = vector.load %arg9[%c0_67, %c24] : memref<16x50xf32, #tpu.memory_space<vmem>>, vector<16x2xf32>
    %cst_68 = arith.constant dense<0.000000e+00> : vector<32x2xf32>
    %74 = tpu.matmul %72, %73, %cst_68 {dimension_numbers = #tpu.dot_dimension_numbers<[1], [0], [0], [1], [0, 0, 1, 1], [], []>} : vector<32x16xf32>, vector<16x2xf32>, vector<32x2xf32> -> vector<32x2xf32>
    %75 = arith.addf %70, %74 : vector<32x2xf32>
    %c13 = arith.constant 13 : index
    %c0_69 = arith.constant 0 : index
    %c0_70 = arith.constant 0 : index
    %76 = vector.load %arg4[%c13, %c0_69, %c0_70] : memref<25x32x16xf32, #tpu.memory_space<vmem>>, vector<1x32x16xf32>
    %77 = vector.shape_cast %76 : vector<1x32x16xf32> to vector<32x16xf32>
    %c0_71 = arith.constant 0 : index
    %c26 = arith.constant 26 : index
    %78 = vector.load %arg9[%c0_71, %c26] : memref<16x50xf32, #tpu.memory_space<vmem>>, vector<16x2xf32>
    %cst_72 = arith.constant dense<0.000000e+00> : vector<32x2xf32>
    %79 = tpu.matmul %77, %78, %cst_72 {dimension_numbers = #tpu.dot_dimension_numbers<[1], [0], [0], [1], [0, 0, 1, 1], [], []>} : vector<32x16xf32>, vector<16x2xf32>, vector<32x2xf32> -> vector<32x2xf32>
    %80 = arith.addf %75, %79 : vector<32x2xf32>
    %c14_73 = arith.constant 14 : index
    %c0_74 = arith.constant 0 : index
    %c0_75 = arith.constant 0 : index
    %81 = vector.load %arg4[%c14_73, %c0_74, %c0_75] : memref<25x32x16xf32, #tpu.memory_space<vmem>>, vector<1x32x16xf32>
    %82 = vector.shape_cast %81 : vector<1x32x16xf32> to vector<32x16xf32>
    %c0_76 = arith.constant 0 : index
    %c28 = arith.constant 28 : index
    %83 = vector.load %arg9[%c0_76, %c28] : memref<16x50xf32, #tpu.memory_space<vmem>>, vector<16x2xf32>
    %cst_77 = arith.constant dense<0.000000e+00> : vector<32x2xf32>
    %84 = tpu.matmul %82, %83, %cst_77 {dimension_numbers = #tpu.dot_dimension_numbers<[1], [0], [0], [1], [0, 0, 1, 1], [], []>} : vector<32x16xf32>, vector<16x2xf32>, vector<32x2xf32> -> vector<32x2xf32>
    %85 = arith.addf %80, %84 : vector<32x2xf32>
    %c15 = arith.constant 15 : index
    %c0_78 = arith.constant 0 : index
    %c0_79 = arith.constant 0 : index
    %86 = vector.load %arg4[%c15, %c0_78, %c0_79] : memref<25x32x16xf32, #tpu.memory_space<vmem>>, vector<1x32x16xf32>
    %87 = vector.shape_cast %86 : vector<1x32x16xf32> to vector<32x16xf32>
    %c0_80 = arith.constant 0 : index
    %c30 = arith.constant 30 : index
    %88 = vector.load %arg9[%c0_80, %c30] : memref<16x50xf32, #tpu.memory_space<vmem>>, vector<16x2xf32>
    %cst_81 = arith.constant dense<0.000000e+00> : vector<32x2xf32>
    %89 = tpu.matmul %87, %88, %cst_81 {dimension_numbers = #tpu.dot_dimension_numbers<[1], [0], [0], [1], [0, 0, 1, 1], [], []>} : vector<32x16xf32>, vector<16x2xf32>, vector<32x2xf32> -> vector<32x2xf32>
    %90 = arith.addf %85, %89 : vector<32x2xf32>
    %c16_82 = arith.constant 16 : index
    %c0_83 = arith.constant 0 : index
    %c0_84 = arith.constant 0 : index
    %91 = vector.load %arg4[%c16_82, %c0_83, %c0_84] : memref<25x32x16xf32, #tpu.memory_space<vmem>>, vector<1x32x16xf32>
    %92 = vector.shape_cast %91 : vector<1x32x16xf32> to vector<32x16xf32>
    %c0_85 = arith.constant 0 : index
    %c32 = arith.constant 32 : index
    %93 = vector.load %arg9[%c0_85, %c32] : memref<16x50xf32, #tpu.memory_space<vmem>>, vector<16x2xf32>
    %cst_86 = arith.constant dense<0.000000e+00> : vector<32x2xf32>
    %94 = tpu.matmul %92, %93, %cst_86 {dimension_numbers = #tpu.dot_dimension_numbers<[1], [0], [0], [1], [0, 0, 1, 1], [], []>} : vector<32x16xf32>, vector<16x2xf32>, vector<32x2xf32> -> vector<32x2xf32>
    %95 = arith.addf %90, %94 : vector<32x2xf32>
    %c17 = arith.constant 17 : index
    %c0_87 = arith.constant 0 : index
    %c0_88 = arith.constant 0 : index
    %96 = vector.load %arg4[%c17, %c0_87, %c0_88] : memref<25x32x16xf32, #tpu.memory_space<vmem>>, vector<1x32x16xf32>
    %97 = vector.shape_cast %96 : vector<1x32x16xf32> to vector<32x16xf32>
    %c0_89 = arith.constant 0 : index
    %c34 = arith.constant 34 : index
    %98 = vector.load %arg9[%c0_89, %c34] : memref<16x50xf32, #tpu.memory_space<vmem>>, vector<16x2xf32>
    %cst_90 = arith.constant dense<0.000000e+00> : vector<32x2xf32>
    %99 = tpu.matmul %97, %98, %cst_90 {dimension_numbers = #tpu.dot_dimension_numbers<[1], [0], [0], [1], [0, 0, 1, 1], [], []>} : vector<32x16xf32>, vector<16x2xf32>, vector<32x2xf32> -> vector<32x2xf32>
    %100 = arith.addf %95, %99 : vector<32x2xf32>
    %c18_91 = arith.constant 18 : index
    %c0_92 = arith.constant 0 : index
    %c0_93 = arith.constant 0 : index
    %101 = vector.load %arg4[%c18_91, %c0_92, %c0_93] : memref<25x32x16xf32, #tpu.memory_space<vmem>>, vector<1x32x16xf32>
    %102 = vector.shape_cast %101 : vector<1x32x16xf32> to vector<32x16xf32>
    %c0_94 = arith.constant 0 : index
    %c36 = arith.constant 36 : index
    %103 = vector.load %arg9[%c0_94, %c36] : memref<16x50xf32, #tpu.memory_space<vmem>>, vector<16x2xf32>
    %cst_95 = arith.constant dense<0.000000e+00> : vector<32x2xf32>
    %104 = tpu.matmul %102, %103, %cst_95 {dimension_numbers = #tpu.dot_dimension_numbers<[1], [0], [0], [1], [0, 0, 1, 1], [], []>} : vector<32x16xf32>, vector<16x2xf32>, vector<32x2xf32> -> vector<32x2xf32>
    %105 = arith.addf %100, %104 : vector<32x2xf32>
    %c19 = arith.constant 19 : index
    %c0_96 = arith.constant 0 : index
    %c0_97 = arith.constant 0 : index
    %106 = vector.load %arg4[%c19, %c0_96, %c0_97] : memref<25x32x16xf32, #tpu.memory_space<vmem>>, vector<1x32x16xf32>
    %107 = vector.shape_cast %106 : vector<1x32x16xf32> to vector<32x16xf32>
    %c0_98 = arith.constant 0 : index
    %c38 = arith.constant 38 : index
    %108 = vector.load %arg9[%c0_98, %c38] : memref<16x50xf32, #tpu.memory_space<vmem>>, vector<16x2xf32>
    %cst_99 = arith.constant dense<0.000000e+00> : vector<32x2xf32>
    %109 = tpu.matmul %107, %108, %cst_99 {dimension_numbers = #tpu.dot_dimension_numbers<[1], [0], [0], [1], [0, 0, 1, 1], [], []>} : vector<32x16xf32>, vector<16x2xf32>, vector<32x2xf32> -> vector<32x2xf32>
    %110 = arith.addf %105, %109 : vector<32x2xf32>
    %c20_100 = arith.constant 20 : index
    %c0_101 = arith.constant 0 : index
    %c0_102 = arith.constant 0 : index
    %111 = vector.load %arg4[%c20_100, %c0_101, %c0_102] : memref<25x32x16xf32, #tpu.memory_space<vmem>>, vector<1x32x16xf32>
    %112 = vector.shape_cast %111 : vector<1x32x16xf32> to vector<32x16xf32>
    %c0_103 = arith.constant 0 : index
    %c40 = arith.constant 40 : index
    %113 = vector.load %arg9[%c0_103, %c40] : memref<16x50xf32, #tpu.memory_space<vmem>>, vector<16x2xf32>
    %cst_104 = arith.constant dense<0.000000e+00> : vector<32x2xf32>
    %114 = tpu.matmul %112, %113, %cst_104 {dimension_numbers = #tpu.dot_dimension_numbers<[1], [0], [0], [1], [0, 0, 1, 1], [], []>} : vector<32x16xf32>, vector<16x2xf32>, vector<32x2xf32> -> vector<32x2xf32>
    %115 = arith.addf %110, %114 : vector<32x2xf32>
    %c21 = arith.constant 21 : index
    %c0_105 = arith.constant 0 : index
    %c0_106 = arith.constant 0 : index
    %116 = vector.load %arg4[%c21, %c0_105, %c0_106] : memref<25x32x16xf32, #tpu.memory_space<vmem>>, vector<1x32x16xf32>
    %117 = vector.shape_cast %116 : vector<1x32x16xf32> to vector<32x16xf32>
    %c0_107 = arith.constant 0 : index
    %c42 = arith.constant 42 : index
    %118 = vector.load %arg9[%c0_107, %c42] : memref<16x50xf32, #tpu.memory_space<vmem>>, vector<16x2xf32>
    %cst_108 = arith.constant dense<0.000000e+00> : vector<32x2xf32>
    %119 = tpu.matmul %117, %118, %cst_108 {dimension_numbers = #tpu.dot_dimension_numbers<[1], [0], [0], [1], [0, 0, 1, 1], [], []>} : vector<32x16xf32>, vector<16x2xf32>, vector<32x2xf32> -> vector<32x2xf32>
    %120 = arith.addf %115, %119 : vector<32x2xf32>
    %c22_109 = arith.constant 22 : index
    %c0_110 = arith.constant 0 : index
    %c0_111 = arith.constant 0 : index
    %121 = vector.load %arg4[%c22_109, %c0_110, %c0_111] : memref<25x32x16xf32, #tpu.memory_space<vmem>>, vector<1x32x16xf32>
    %122 = vector.shape_cast %121 : vector<1x32x16xf32> to vector<32x16xf32>
    %c0_112 = arith.constant 0 : index
    %c44 = arith.constant 44 : index
    %123 = vector.load %arg9[%c0_112, %c44] : memref<16x50xf32, #tpu.memory_space<vmem>>, vector<16x2xf32>
    %cst_113 = arith.constant dense<0.000000e+00> : vector<32x2xf32>
    %124 = tpu.matmul %122, %123, %cst_113 {dimension_numbers = #tpu.dot_dimension_numbers<[1], [0], [0], [1], [0, 0, 1, 1], [], []>} : vector<32x16xf32>, vector<16x2xf32>, vector<32x2xf32> -> vector<32x2xf32>
    %125 = arith.addf %120, %124 : vector<32x2xf32>
    %c23 = arith.constant 23 : index
    %c0_114 = arith.constant 0 : index
    %c0_115 = arith.constant 0 : index
    %126 = vector.load %arg4[%c23, %c0_114, %c0_115] : memref<25x32x16xf32, #tpu.memory_space<vmem>>, vector<1x32x16xf32>
    %127 = vector.shape_cast %126 : vector<1x32x16xf32> to vector<32x16xf32>
    %c0_116 = arith.constant 0 : index
    %c46 = arith.constant 46 : index
    %128 = vector.load %arg9[%c0_116, %c46] : memref<16x50xf32, #tpu.memory_space<vmem>>, vector<16x2xf32>
    %cst_117 = arith.constant dense<0.000000e+00> : vector<32x2xf32>
    %129 = tpu.matmul %127, %128, %cst_117 {dimension_numbers = #tpu.dot_dimension_numbers<[1], [0], [0], [1], [0, 0, 1, 1], [], []>} : vector<32x16xf32>, vector<16x2xf32>, vector<32x2xf32> -> vector<32x2xf32>
    %130 = arith.addf %125, %129 : vector<32x2xf32>
    %c24_118 = arith.constant 24 : index
    %c0_119 = arith.constant 0 : index
    %c0_120 = arith.constant 0 : index
    %131 = vector.load %arg4[%c24_118, %c0_119, %c0_120] : memref<25x32x16xf32, #tpu.memory_space<vmem>>, vector<1x32x16xf32>
    %132 = vector.shape_cast %131 : vector<1x32x16xf32> to vector<32x16xf32>
    %c0_121 = arith.constant 0 : index
    %c48 = arith.constant 48 : index
    %133 = vector.load %arg9[%c0_121, %c48] : memref<16x50xf32, #tpu.memory_space<vmem>>, vector<16x2xf32>
    %cst_122 = arith.constant dense<0.000000e+00> : vector<32x2xf32>
    %134 = tpu.matmul %132, %133, %cst_122 {dimension_numbers = #tpu.dot_dimension_numbers<[1], [0], [0], [1], [0, 0, 1, 1], [], []>} : vector<32x16xf32>, vector<16x2xf32>, vector<32x2xf32> -> vector<32x2xf32>
    %135 = arith.addf %130, %134 : vector<32x2xf32>
    %c0_123 = arith.constant 0 : index
    %c0_124 = arith.constant 0 : index
    %136 = vector.load %arg5[%c0_123, %c0_124] : memref<32x1xf32, #tpu.memory_space<vmem>>, vector<32x1xf32>
    %137 = vector.broadcast %136 : vector<32x1xf32> to vector<32x2xf32>
    %138 = arith.addf %135, %137 : vector<32x2xf32>
    %cst_125 = arith.constant 2.000000e-01 : f32
    %139 = vector.broadcast %cst_125 : f32 to vector<32x2xf32>
    %140 = arith.mulf %139, %138 : vector<32x2xf32>
    %141 = arith.maximumf %138, %140 : vector<32x2xf32>
    %c0_126 = arith.constant 0 : index
    %c0_127 = arith.constant 0 : index
    %142 = vector.load %arg6[%c0_126, %c0_127] : memref<1x32xf32, #tpu.memory_space<vmem>>, vector<1x32xf32>
    %cst_128 = arith.constant dense<0.000000e+00> : vector<1x2xf32>
    %143 = tpu.matmul %142, %141, %cst_128 {dimension_numbers = #tpu.dot_dimension_numbers<[1], [0], [0], [1], [0, 0, 1, 1], [], []>} : vector<1x32xf32>, vector<32x2xf32>, vector<1x2xf32> -> vector<1x2xf32>
    %c0_129 = arith.constant 0 : index
    %c0_130 = arith.constant 0 : index
    %144 = vector.load %arg7[%c0_129, %c0_130] : memref<1x1xf32, #tpu.memory_space<vmem>>, vector<1x1xf32>
    %145 = vector.broadcast %144 : vector<1x1xf32> to vector<1x2xf32>
    %146 = arith.addf %143, %145 : vector<1x2xf32>
    %c0_131 = arith.constant 0 : index
    %c0_132 = arith.constant 0 : index
    %147 = vector.load %arg8[%c0_131, %c0_132] : memref<1x2xf32, #tpu.memory_space<vmem>>, vector<1x2xf32>
    tpu.vector_store %arg8[%c0_131, %c0_132], %146 {strides = array<i32>} : memref<1x2xf32, #tpu.memory_space<vmem>>, vector<1x2xf32>,
    return
  }
  func.func @transform_0(%arg0: i32) -> (i32, i32) {
    %c0_i32 = arith.constant 0 : i32
    %c0_i32_0 = arith.constant 0 : i32
    %c0_i32_1 = arith.constant 0 : i32
    return %c0_i32, %c0_i32_0 : i32, i32
  }
  func.func @transform_1(%arg0: i32) -> (i32, i32) {
    %c0_i32 = arith.constant 0 : i32
    %c0_i32_0 = arith.constant 0 : i32
    %c0_i32_1 = arith.constant 0 : i32
    return %c0_i32, %c0_i32_0 : i32, i32
  }
  func.func @transform_2(%arg0: i32) -> (i32, i32) {
    %c0_i32 = arith.constant 0 : i32
    %c0_i32_0 = arith.constant 0 : i32
    %c0_i32_1 = arith.constant 0 : i32
    return %c0_i32, %c0_i32_0 : i32, i32
  }
  func.func @transform_3(%arg0: i32) -> (i32, i32, i32) {
    %c0_i32 = arith.constant 0 : i32
    %c0_i32_0 = arith.constant 0 : i32
    %c0_i32_1 = arith.constant 0 : i32
    %c0_i32_2 = arith.constant 0 : i32
    return %c0_i32, %c0_i32_0, %c0_i32_1 : i32, i32, i32
  }
  func.func @transform_4(%arg0: i32) -> (i32, i32) {
    %c0_i32 = arith.constant 0 : i32
    %c0_i32_0 = arith.constant 0 : i32
    %c0_i32_1 = arith.constant 0 : i32
    return %c0_i32, %c0_i32_0 : i32, i32
  }
  func.func @transform_5(%arg0: i32) -> (i32, i32) {
    %c0_i32 = arith.constant 0 : i32
    %c0_i32_0 = arith.constant 0 : i32
    %c0_i32_1 = arith.constant 0 : i32
    return %c0_i32, %c0_i32_0 : i32, i32
  }
  func.func @transform_6(%arg0: i32) -> (i32, i32) {
    %c0_i32 = arith.constant 0 : i32
    %c0_i32_0 = arith.constant 0 : i32
    %c0_i32_1 = arith.constant 0 : i32
    return %c0_i32, %c0_i32_0 : i32, i32
  }
  func.func @transform_7(%arg0: i32) -> (i32, i32) {
    %c0_i32 = arith.constant 0 : i32
    %c0_i32_0 = arith.constant 0 : i32
    %c0_i32_1 = arith.constant 0 : i32
    return %c0_i32, %c0_i32_0 : i32, i32
  }
}

</mosaic_0001>

<llo_original>
// kernel: eve_forward.3
$region0: #{eve_forward.3}
  #allocation0 [shape = 'u32[]', space=smem, size = 0x4, offset = 0x4, fixed_abs, tag = 'smem constant byte address 0x4 - core index']
  #allocation1 [shape = 'u32[144,128]{1,0:T(1,128)}', space=vmem, size = 0x12000, scoped, tag = 'internal scratch']
  %s0 = inlined_call_operand.vmem [shape: f32[75,1800], index: 0, kind: input, shape index: {}]
  %s1 = inlined_call_operand.vmem [shape: f32[4,75], index: 1, kind: input, shape index: {}]
  %s2 = inlined_call_operand.vmem [shape: f32[4,1], index: 2, kind: input, shape index: {}]
  %s3 = inlined_call_operand.vmem [shape: f32[4,1800], index: 3, kind: output, shape index: {}]
  %s4 = sld [smem:[#allocation0]]
  $region22: #{eve_forward.3} parent=0
    _
  %s6 = ssub.s32 1, %s4
  %s7 = scalar_select 0, %s6, %s4
  // Predicated region
  $region2: #{eve_forward.3} parent=0 // pred_check
    _
  $region3: #{eve_forward.3} parent=0 // pred_check_branch
    %9 = sbr.rel (0) target = $region5
  $region4: #{eve_forward.3} parent=0 // pred_region
    _
  $region5: #{eve_forward.3} parent=0 // pred_fallthru
    _
  // Predicated region
  $region6: #{eve_forward.3} parent=0 // pred_check
    _
  $region7: #{eve_forward.3} parent=0 // pred_check_branch
    %11 = sbr.rel (0) target = $region9
  $region8: #{eve_forward.3} parent=0 // pred_region
    _
  $region9: #{eve_forward.3} parent=0 // pred_fallthru
    _
  // Predicated region
  $region10: #{eve_forward.3} parent=0 // pred_check
    _
  $region11: #{eve_forward.3} parent=0 // pred_check_branch
    %13 = sbr.rel (0) target = $region13
  $region12: #{eve_forward.3} parent=0 // pred_region
    _
  $region13: #{eve_forward.3} parent=0 // pred_fallthru
    _
  %v14 = vld [vmem:[%s1] sm:$0xf]
  %v15 = vld [vmem:[%s0] sm:$0xff]
  %v16 = vld [vmem:[%s0 + $0x8] sm:$0xff]
  %v17 = vld [vmem:[%s0 + $0x10] sm:$0xff]
  %v18 = vld [vmem:[%s0 + $0x18] sm:$0xff]
  %v19 = vld [vmem:[%s0 + $0x20] sm:$0xff]
  %v20 = vld [vmem:[%s0 + $0x28] sm:$0xff]
  %v21 = vld [vmem:[%s0 + $0x30] sm:$0xff]
  %v22 = vld [vmem:[%s0 + $0x38] sm:$0xff]
  %v23 = vld [vmem:[%s0 + $0x40] sm:$0xff]
  %v24 = vld [vmem:[%s0 + $0x48] sm:$0xff]
  %v25 = vld [vmem:[%s0 + $0x50] sm:$0xff]
  %v26 = vld [vmem:[%s0 + $0x58] sm:$0xff]
  %v27 = vld [vmem:[%s0 + $0x60] sm:$0xff]
  %v28 = vld [vmem:[%s0 + $0x68] sm:$0xff]
  %v29 = vld [vmem:[%s0 + $0x70] sm:$0xff]
  %v30 = vld [vmem:[%s0 + $0x78] sm:$0xff]
  %v31 = vld [vmem:[%s0 + $0x80] sm:$0xff]
  %v32 = vld [vmem:[%s0 + $0x88] sm:$0xff]
  %v33 = vld [vmem:[%s0 + $0x90] sm:$0xff]
  %v34 = vld [vmem:[%s0 + $0x98] sm:$0xff]
  %v35 = vld [vmem:[%s0 + $0xa0] sm:$0xff]
  %v36 = vld [vmem:[%s0 + $0xa8] sm:$0xff]
  %v37 = vld [vmem:[%s0 + $0xb0] sm:$0xff]
  %v38 = vld [vmem:[%s0 + $0xb8] sm:$0xff]
  %v39 = vld [vmem:[%s0 + $0xc0] sm:$0xff]
  %v40 = vld [vmem:[%s0 + $0xc8] sm:$0xff]
  %v41 = vld [vmem:[%s0 + $0xd0] sm:$0xff]
  %v42 = vld [vmem:[%s0 + $0xd8] sm:$0xff]
  %v43 = vld [vmem:[%s0 + $0xe0] sm:$0xff]
  %v44 = vld [vmem:[%s0 + $0xe8] sm:$0xff]
  %v45 = vld [vmem:[%s0 + $0xf0] sm:$0xff]
  %v46 = vld [vmem:[%s0 + $0xf8] sm:$0xff]
  %v47 = vld [vmem:[%s0 + $0x100] sm:$0xff]
  %v48 = vld [vmem:[%s0 + $0x108] sm:$0xff]
  %v49 = vld [vmem:[%s0 + $0x110] sm:$0xff]
  %v50 = vld [vmem:[%s0 + $0x118] sm:$0xff]
  %v51 = vld [vmem:[%s0 + $0x120] sm:$0xff]
  %v52 = vld [vmem:[%s0 + $0x128] sm:$0xff]
  %v53 = vld [vmem:[%s0 + $0x130] sm:$0xff]
  %v54 = vld [vmem:[%s0 + $0x138] sm:$0xff]
  %v55 = vld [vmem:[%s0 + $0x140] sm:$0xff]
  %v56 = vld [vmem:[%s0 + $0x148] sm:$0xff]
  %v57 = vld [vmem:[%s0 + $0x150] sm:$0xff]
  %v58 = vld [vmem:[%s0 + $0x158] sm:$0xff]
  %v59 = vld [vmem:[%s0 + $0x160] sm:$0xff]
  %v60 = vld [vmem:[%s0 + $0x168] sm:$0xff]
  %v61 = vld [vmem:[%s0 + $0x170] sm:$0xff]
  %v62 = vld [vmem:[%s0 + $0x178] sm:$0xff]
  %v63 = vld [vmem:[%s0 + $0x180] sm:$0xff]
  %v64 = vld [vmem:[%s0 + $0x188] sm:$0xff]
  %v65 = vld [vmem:[%s0 + $0x190] sm:$0xff]
  %v66 = vld [vmem:[%s0 + $0x198] sm:$0xff]
  %v67 = vld [vmem:[%s0 + $0x1a0] sm:$0xff]
  %v68 = vld [vmem:[%s0 + $0x1a8] sm:$0xff]
  %v69 = vld [vmem:[%s0 + $0x1b0] sm:$0xff]
  %v70 = vld [vmem:[%s0 + $0x1b8] sm:$0xff]
  %v71 = vld [vmem:[%s0 + $0x1c0] sm:$0xff]
  %v72 = vld [vmem:[%s0 + $0x1c8] sm:$0xff]
  %v73 = vld [vmem:[%s0 + $0x1d0] sm:$0xff]
  %v74 = vld [vmem:[%s0 + $0x1d8] sm:$0xff]
  %v75 = vld [vmem:[%s0 + $0x1e0] sm:$0xff]
  %v76 = vld [vmem:[%s0 + $0x1e8] sm:$0xff]
  %v77 = vld [vmem:[%s0 + $0x1f0] sm:$0xff]
  %v78 = vld [vmem:[%s0 + $0x1f8] sm:$0xff]
  %v79 = vld [vmem:[%s0 + $0x200] sm:$0xff]
  %v80 = vld [vmem:[%s0 + $0x208] sm:$0xff]
  %v81 = vld [vmem:[%s0 + $0x210] sm:$0xff]
  %v82 = vld [vmem:[%s0 + $0x218] sm:$0xff]
  %v83 = vld [vmem:[%s0 + $0x220] sm:$0xff]
  %v84 = vld [vmem:[%s0 + $0x228] sm:$0xff]
  %v85 = vld [vmem:[%s0 + $0x230] sm:$0xff]
  %v86 = vld [vmem:[%s0 + $0x238] sm:$0xff]
  %v87 = vld [vmem:[%s0 + $0x240] sm:$0xff]
  %v88 = vld [vmem:[%s0 + $0x248] sm:$0xff]
  %v89 = vld [vmem:[%s0 + $0x250] sm:$0xff]
  %v90 = vld [vmem:[%s0 + $0x258] sm:$0xff]
  %v91 = vld [vmem:[%s0 + $0x260] sm:$0xff]
  %v92 = vld [vmem:[%s0 + $0x268] sm:$0xff]
  %v93 = vld [vmem:[%s0 + $0x270] sm:$0xff]
  %v94 = vld [vmem:[%s0 + $0x278] sm:$0xff]
  %v95 = vld [vmem:[%s0 + $0x280] sm:$0xff]
  %v96 = vld [vmem:[%s0 + $0x288] sm:$0xff]
  %v97 = vld [vmem:[%s0 + $0x290] sm:$0xff]
  %v98 = vld [vmem:[%s0 + $0x298] sm:$0xff]
  %v99 = vld [vmem:[%s0 + $0x2a0] sm:$0xff]
  %v100 = vld [vmem:[%s0 + $0x2a8] sm:$0xff]
  %v101 = vld [vmem:[%s0 + $0x2b0] sm:$0xff]
  %v102 = vld [vmem:[%s0 + $0x2b8] sm:$0xff]
  %v103 = vld [vmem:[%s0 + $0x2c0] sm:$0xff]
  %v104 = vld [vmem:[%s0 + $0x2c8] sm:$0xff]
  %v105 = vld [vmem:[%s0 + $0x2d0] sm:$0xff]
  %v106 = vld [vmem:[%s0 + $0x2d8] sm:$0xff]
  %v107 = vld [vmem:[%s0 + $0x2e0] sm:$0xff]
  %v108 = vld [vmem:[%s0 + $0x2e8] sm:$0xff]
  %v109 = vld [vmem:[%s0 + $0x2f0] sm:$0xff]
  %v110 = vld [vmem:[%s0 + $0x2f8] sm:$0xff]
  %v111 = vld [vmem:[%s0 + $0x300] sm:$0xff]
  %v112 = vld [vmem:[%s0 + $0x308] sm:$0xff]
  %v113 = vld [vmem:[%s0 + $0x310] sm:$0xff]
  %v114 = vld [vmem:[%s0 + $0x318] sm:$0xff]
  %v115 = vld [vmem:[%s0 + $0x320] sm:$0xff]
  %v116 = vld [vmem:[%s0 + $0x328] sm:$0xff]
  %v117 = vld [vmem:[%s0 + $0x330] sm:$0xff]
  %v118 = vld [vmem:[%s0 + $0x338] sm:$0xff]
  %v119 = vld [vmem:[%s0 + $0x340] sm:$0xff]
  %v120 = vld [vmem:[%s0 + $0x348] sm:$0xff]
  %v121 = vld [vmem:[%s0 + $0x350] sm:$0xff]
  %v122 = vld [vmem:[%s0 + $0x358] sm:$0xff]
  %v123 = vld [vmem:[%s0 + $0x360] sm:$0xff]
  %v124 = vld [vmem:[%s0 + $0x368] sm:$0xff]
  %v125 = vld [vmem:[%s0 + $0x370] sm:$0xff]
  %v126 = vld [vmem:[%s0 + $0x378] sm:$0xff]
  %v127 = vld [vmem:[%s0 + $0x380] sm:$0xff]
  %v128 = vld [vmem:[%s0 + $0x388] sm:$0xff]
  %v129 = vld [vmem:[%s0 + $0x390] sm:$0xff]
  %v130 = vld [vmem:[%s0 + $0x398] sm:$0xff]
  %v131 = vld [vmem:[%s0 + $0x3a0] sm:$0xff]
  %v132 = vld [vmem:[%s0 + $0x3a8] sm:$0xff]
  %v133 = vld [vmem:[%s0 + $0x3b0] sm:$0xff]
  %v134 = vld [vmem:[%s0 + $0x3b8] sm:$0xff]
  %v135 = vld [vmem:[%s0 + $0x3c0] sm:$0xff]
  %v136 = vld [vmem:[%s0 + $0x3c8] sm:$0xff]
  %v137 = vld [vmem:[%s0 + $0x3d0] sm:$0xff]
  %v138 = vld [vmem:[%s0 + $0x3d8] sm:$0xff]
  %v139 = vld [vmem:[%s0 + $0x3e0] sm:$0xff]
  %v140 = vld [vmem:[%s0 + $0x3e8] sm:$0xff]
  %v141 = vld [vmem:[%s0 + $0x3f0] sm:$0xff]
  %v142 = vld [vmem:[%s0 + $0x3f8] sm:$0xff]
  %v143 = vld [vmem:[%s0 + $0x400] sm:$0xff]
  %v144 = vld [vmem:[%s0 + $0x408] sm:$0xff]
  %v145 = vld [vmem:[%s0 + $0x410] sm:$0xff]
  %v146 = vld [vmem:[%s0 + $0x418] sm:$0xff]
  %v147 = vld [vmem:[%s0 + $0x420] sm:$0xff]
  %v148 = vld [vmem:[%s0 + $0x428] sm:$0xff]
  %v149 = vld [vmem:[%s0 + $0x430] sm:$0xff]
  %v150 = vld [vmem:[%s0 + $0x438] sm:$0x7]
  %v151 = vld [vmem:[%s0 + $0x440] sm:$0x7]
  %v152 = vld [vmem:[%s0 + $0x448] sm:$0x7]
  %v153 = vld [vmem:[%s0 + $0x450] sm:$0x7]
  %v154 = vld [vmem:[%s0 + $0x458] sm:$0x7]
  %v155 = vld [vmem:[%s0 + $0x460] sm:$0x7]
  %v156 = vld [vmem:[%s0 + $0x468] sm:$0x7]
  %v157 = vld [vmem:[%s0 + $0x470] sm:$0x7]
  %v158 = vld [vmem:[%s0 + $0x478] sm:$0x7]
  %v159 = vld [vmem:[%s0 + $0x480] sm:$0x7]
  %v160 = vld [vmem:[%s0 + $0x488] sm:$0x7]
  %v161 = vld [vmem:[%s0 + $0x490] sm:$0x7]
  %v162 = vld [vmem:[%s0 + $0x498] sm:$0x7]
  %v163 = vld [vmem:[%s0 + $0x4a0] sm:$0x7]
  %v164 = vld [vmem:[%s0 + $0x4a8] sm:$0x7]
  %v165 = vld [vmem:[%s2] sm:$0xf]
  %167 = vset.pattern.permute.xlu0 0
  %168 = vperm.xlu0 %167, %v165
  %v169 = vpop.permute.xlu0 %168
  %vm171 = vcmask 613376
  %v173 = vsel %vm171, %v14, 0
  %vm175 = vcmask 1042432
  %v177 = vsel %vm175, %v150, 0
  %v180 = vsel %vm175, %v151, 0
  %v183 = vsel %vm175, %v152, 0
  %v186 = vsel %vm175, %v153, 0
  %v189 = vsel %vm175, %v154, 0
  %v192 = vsel %vm175, %v155, 0
  %v195 = vsel %vm175, %v156, 0
  %v198 = vsel %vm175, %v157, 0
  %v201 = vsel %vm175, %v158, 0
  %v204 = vsel %vm175, %v159, 0
  %v207 = vsel %vm175, %v160, 0
  %v210 = vsel %vm175, %v161, 0
  %v213 = vsel %vm175, %v162, 0
  %v216 = vsel %vm175, %v163, 0
  %v219 = vsel %vm175, %v164, 0
  %221 = vmatprep.subr.mxu0 0.0
  %222 = vmatpush1.msra.mxu0 0.0
  %223 = vmatprep.subr.mxu0 0.0
  %224 = vmatpush1.msra.mxu0 0.0
  %225 = vmatprep.subr.mxu0 0.0
  %226 = vmatpush1.msra.mxu0 0.0
  %227 = vmatprep.subr.mxu0 0.0
  %228 = vmatpush1.msra.mxu0 0.0
  %229 = vmatprep.subr.mxu0 0.0
  %230 = vmatpush1.msra.mxu0 0.0
  %231 = vmatprep.subr.mxu0 0.0
  %232 = vmatpush1.msra.mxu0 0.0
  %233 = vmatprep.subr.mxu0 %v180
  %234 = vmatpush1.msra.mxu0 %v177
  %235 = vmatprep.subr.mxu0 %v136
  %236 = vmatpush1.msra.mxu0 %v135
  %237 = vmatprep.subr.mxu0 %v121
  %238 = vmatpush1.msra.mxu0 %v120
  %239 = vmatprep.subr.mxu0 %v106
  %240 = vmatpush1.msra.mxu0 %v105
  %241 = vmatprep.subr.mxu0 %v91
  %242 = vmatpush1.msra.mxu0 %v90
  %243 = vmatprep.subr.mxu0 %v76
  %244 = vmatpush1.msra.mxu0 %v75
  %245 = vmatprep.subr.mxu0 %v61
  %246 = vmatpush1.msra.mxu0 %v60
  %247 = vmatprep.subr.mxu0 %v46
  %248 = vmatpush1.msra.mxu0 %v45
  %249 = vmatprep.subr.mxu0 %v31
  %250 = vmatpush1.msra.mxu0 %v30
  %251 = vmatprep.subr.mxu0 %v16
  %252 = vmatpush1.msra.mxu0 %v15
  %253 = vmatprep.subr.mxu0 0.0
  %254 = vmatpush2.msra.mxu0 0.0
  %255 = vmatprep.subr.mxu0 0.0
  %256 = vmatpush2.msra.mxu0 0.0
  %257 = vmatprep.subr.mxu0 0.0
  %258 = vmatpush2.msra.mxu0 0.0
  %259 = vmatprep.subr.mxu0 0.0
  %260 = vmatpush2.msra.mxu0 0.0
  %261 = vmatprep.subr.mxu0 0.0
  %262 = vmatpush2.msra.mxu0 0.0
  %263 = vmatprep.subr.mxu0 0.0
  %264 = vmatpush2.msra.mxu0 0.0
  %265 = vmatprep.subr.mxu0 0.0
  %266 = vmatpush2.msra.mxu0 0.0
  %267 = vmatprep.subr.mxu0 0.0
  %268 = vmatpush2.msra.mxu0 0.0
  %269 = vmatprep.subr.mxu0 0.0
  %270 = vmatpush2.msra.mxu0 0.0
  %271 = vmatprep.subr.mxu0 0.0
  %272 = vmatpush2.msra.mxu0 0.0
  %273 = vmatprep.subr.mxu0 0.0
  %274 = vmatpush2.msra.mxu0 0.0
  %275 = vmatprep.subr.mxu0 0.0
  %276 = vmatpush2.msra.mxu0 0.0
  %277 = vmatprep.subr.mxu0 0.0
  %278 = vmatpush2.msra.mxu0 0.0
  %279 = vmatprep.subr.mxu0 0.0
  %280 = vmatpush2.msra.mxu0 0.0
  %281 = vmatprep.subr.mxu0 0.0
  %282 = vmatpush2.msra.mxu0 0.0
  %283 = vmatprep.subr.mxu0 0.0
  %284 = vmatpush2.msra.mxu0 0.0
  %285 = vmatprep.mubr.f32.mxu0 0.0
  %286 = vmatmul.mubr.f32.gmra.mxu0 %v173
  %v287 = vpop.f32.mrf.mxu0
  %v288 = vadd.f32 %v169, %v287
  %v289 = vpop.f32.mrf.mxu0
  %v290 = vadd.f32 %v169, %v289
  %291 = vdwg.mxu0
  %292 = vmatprep.subr.mxu0 0.0
  %293 = vmatpush1.msra.mxu0 0.0
  %294 = vmatprep.subr.mxu0 0.0
  %295 = vmatpush1.msra.mxu0 0.0
  %296 = vmatprep.subr.mxu0 0.0
  %297 = vmatpush1.msra.mxu0 0.0
  %298 = vmatprep.subr.mxu0 0.0
  %299 = vmatpush1.msra.mxu0 0.0
  %300 = vmatprep.subr.mxu0 0.0
  %301 = vmatpush1.msra.mxu0 0.0
  %302 = vmatprep.subr.mxu0 0.0
  %303 = vmatpush1.msra.mxu0 0.0
  %304 = vmatprep.subr.mxu0 %v186
  %305 = vmatpush1.msra.mxu0 %v183
  %306 = vmatprep.subr.mxu0 %v138
  %307 = vmatpush1.msra.mxu0 %v137
  %308 = vmatprep.subr.mxu0 %v123
  %309 = vmatpush1.msra.mxu0 %v122
  %310 = vmatprep.subr.mxu0 %v108
  %311 = vmatpush1.msra.mxu0 %v107
  %312 = vmatprep.subr.mxu0 %v93
  %313 = vmatpush1.msra.mxu0 %v92
  %314 = vmatprep.subr.mxu0 %v78
  %315 = vmatpush1.msra.mxu0 %v77
  %316 = vmatprep.subr.mxu0 %v63
  %317 = vmatpush1.msra.mxu0 %v62
  %318 = vmatprep.subr.mxu0 %v48
  %319 = vmatpush1.msra.mxu0 %v47
  %320 = vmatprep.subr.mxu0 %v33
  %321 = vmatpush1.msra.mxu0 %v32
  %322 = vmatprep.subr.mxu0 %v18
  %323 = vmatpush1.msra.mxu0 %v17
  %324 = vmatprep.subr.mxu0 0.0
  %325 = vmatpush2.msra.mxu0 0.0
  %326 = vmatprep.subr.mxu0 0.0
  %327 = vmatpush2.msra.mxu0 0.0
  %328 = vmatprep.subr.mxu0 0.0
  %329 = vmatpush2.msra.mxu0 0.0
  %330 = vmatprep.subr.mxu0 0.0
  %331 = vmatpush2.msra.mxu0 0.0
  %332 = vmatprep.subr.mxu0 0.0
  %333 = vmatpush2.msra.mxu0 0.0
  %334 = vmatprep.subr.mxu0 0.0
  %335 = vmatpush2.msra.mxu0 0.0
  %336 = vmatprep.subr.mxu0 0.0
  %337 = vmatpush2.msra.mxu0 0.0
  %338 = vmatprep.subr.mxu0 0.0
  %339 = vmatpush2.msra.mxu0 0.0
  %340 = vmatprep.subr.mxu0 0.0
  %341 = vmatpush2.msra.mxu0 0.0
  %342 = vmatprep.subr.mxu0 0.0
  %343 = vmatpush2.msra.mxu0 0.0
  %344 = vmatprep.subr.mxu0 0.0
  %345 = vmatpush2.msra.mxu0 0.0
  %346 = vmatprep.subr.mxu0 0.0
  %347 = vmatpush2.msra.mxu0 0.0
  %348 = vmatprep.subr.mxu0 0.0
  %349 = vmatpush2.msra.mxu0 0.0
  %350 = vmatprep.subr.mxu0 0.0
  %351 = vmatpush2.msra.mxu0 0.0
  %352 = vmatprep.subr.mxu0 0.0
  %353 = vmatpush2.msra.mxu0 0.0
  %354 = vmatprep.subr.mxu0 0.0
  %355 = vmatpush2.msra.mxu0 0.0
  %356 = vmatprep.mubr.f32.mxu0 0.0
  %357 = vmatmul.mubr.f32.gmra.mxu0 %v173
  %v358 = vpop.f32.mrf.mxu0
  %v359 = vadd.f32 %v169, %v358
  %v360 = vpop.f32.mrf.mxu0
  %v361 = vadd.f32 %v169, %v360
  %362 = vdwg.mxu0
  %363 = vmatprep.subr.mxu0 0.0
  %364 = vmatpush1.msra.mxu0 0.0
  %365 = vmatprep.subr.mxu0 0.0
  %366 = vmatpush1.msra.mxu0 0.0
  %367 = vmatprep.subr.mxu0 0.0
  %368 = vmatpush1.msra.mxu0 0.0
  %369 = vmatprep.subr.mxu0 0.0
  %370 = vmatpush1.msra.mxu0 0.0
  %371 = vmatprep.subr.mxu0 0.0
  %372 = vmatpush1.msra.mxu0 0.0
  %373 = vmatprep.subr.mxu0 0.0
  %374 = vmatpush1.msra.mxu0 0.0
  %375 = vmatprep.subr.mxu0 %v192
  %376 = vmatpush1.msra.mxu0 %v189
  %377 = vmatprep.subr.mxu0 %v140
  %378 = vmatpush1.msra.mxu0 %v139
  %379 = vmatprep.subr.mxu0 %v125
  %380 = vmatpush1.msra.mxu0 %v124
  %381 = vmatprep.subr.mxu0 %v110
  %382 = vmatpush1.msra.mxu0 %v109
  %383 = vmatprep.subr.mxu0 %v95
  %384 = vmatpush1.msra.mxu0 %v94
  %385 = vmatprep.subr.mxu0 %v80
  %386 = vmatpush1.msra.mxu0 %v79
  %387 = vmatprep.subr.mxu0 %v65
  %388 = vmatpush1.msra.mxu0 %v64
  %389 = vmatprep.subr.mxu0 %v50
  %390 = vmatpush1.msra.mxu0 %v49
  %391 = vmatprep.subr.mxu0 %v35
  %392 = vmatpush1.msra.mxu0 %v34
  %393 = vmatprep.subr.mxu0 %v20
  %394 = vmatpush1.msra.mxu0 %v19
  %395 = vmatprep.subr.mxu0 0.0
  %396 = vmatpush2.msra.mxu0 0.0
  %397 = vmatprep.subr.mxu0 0.0
  %398 = vmatpush2.msra.mxu0 0.0
  %399 = vmatprep.subr.mxu0 0.0
  %400 = vmatpush2.msra.mxu0 0.0
  %401 = vmatprep.subr.mxu0 0.0
  %402 = vmatpush2.msra.mxu0 0.0
  %403 = vmatprep.subr.mxu0 0.0
  %404 = vmatpush2.msra.mxu0 0.0
  %405 = vmatprep.subr.mxu0 0.0
  %406 = vmatpush2.msra.mxu0 0.0
  %407 = vmatprep.subr.mxu0 0.0
  %408 = vmatpush2.msra.mxu0 0.0
  %409 = vmatprep.subr.mxu0 0.0
  %410 = vmatpush2.msra.mxu0 0.0
  %411 = vmatprep.subr.mxu0 0.0
  %412 = vmatpush2.msra.mxu0 0.0
  %413 = vmatprep.subr.mxu0 0.0
  %414 = vmatpush2.msra.mxu0 0.0
  %415 = vmatprep.subr.mxu0 0.0
  %416 = vmatpush2.msra.mxu0 0.0
  %417 = vmatprep.subr.mxu0 0.0
  %418 = vmatpush2.msra.mxu0 0.0
  %419 = vmatprep.subr.mxu0 0.0
  %420 = vmatpush2.msra.mxu0 0.0
  %421 = vmatprep.subr.mxu0 0.0
  %422 = vmatpush2.msra.mxu0 0.0
  %423 = vmatprep.subr.mxu0 0.0
  %424 = vmatpush2.msra.mxu0 0.0
  %425 = vmatprep.subr.mxu0 0.0
  %426 = vmatpush2.msra.mxu0 0.0
  %427 = vmatprep.mubr.f32.mxu0 0.0
  %428 = vmatmul.mubr.f32.gmra.mxu0 %v173
  %v429 = vpop.f32.mrf.mxu0
  %v430 = vadd.f32 %v169, %v429
  %v431 = vpop.f32.mrf.mxu0
  %v432 = vadd.f32 %v169, %v431
  %433 = vdwg.mxu0
  %434 = vmatprep.subr.mxu0 0.0
  %435 = vmatpush1.msra.mxu0 0.0
  %436 = vmatprep.subr.mxu0 0.0
  %437 = vmatpush1.msra.mxu0 0.0
  %438 = vmatprep.subr.mxu0 0.0
  %439 = vmatpush1.msra.mxu0 0.0
  %440 = vmatprep.subr.mxu0 0.0
  %441 = vmatpush1.msra.mxu0 0.0
  %442 = vmatprep.subr.mxu0 0.0
  %443 = vmatpush1.msra.mxu0 0.0
  %444 = vmatprep.subr.mxu0 0.0
  %445 = vmatpush1.msra.mxu0 0.0
  %446 = vmatprep.subr.mxu0 %v198
  %447 = vmatpush1.msra.mxu0 %v195
  %448 = vmatprep.subr.mxu0 %v142
  %449 = vmatpush1.msra.mxu0 %v141
  %450 = vmatprep.subr.mxu0 %v127
  %451 = vmatpush1.msra.mxu0 %v126
  %452 = vmatprep.subr.mxu0 %v112
  %453 = vmatpush1.msra.mxu0 %v111
  %454 = vmatprep.subr.mxu0 %v97
  %455 = vmatpush1.msra.mxu0 %v96
  %456 = vmatprep.subr.mxu0 %v82
  %457 = vmatpush1.msra.mxu0 %v81
  %458 = vmatprep.subr.mxu0 %v67
  %459 = vmatpush1.msra.mxu0 %v66
  %460 = vmatprep.subr.mxu0 %v52
  %461 = vmatpush1.msra.mxu0 %v51
  %462 = vmatprep.subr.mxu0 %v37
  %463 = vmatpush1.msra.mxu0 %v36
  %464 = vmatprep.subr.mxu0 %v22
  %465 = vmatpush1.msra.mxu0 %v21
  %466 = vmatprep.subr.mxu0 0.0
  %467 = vmatpush2.msra.mxu0 0.0
  %468 = vmatprep.subr.mxu0 0.0
  %469 = vmatpush2.msra.mxu0 0.0
  %470 = vmatprep.subr.mxu0 0.0
  %471 = vmatpush2.msra.mxu0 0.0
  %472 = vmatprep.subr.mxu0 0.0
  %473 = vmatpush2.msra.mxu0 0.0
  %474 = vmatprep.subr.mxu0 0.0
  %475 = vmatpush2.msra.mxu0 0.0
  %476 = vmatprep.subr.mxu0 0.0
  %477 = vmatpush2.msra.mxu0 0.0
  %478 = vmatprep.subr.mxu0 0.0
  %479 = vmatpush2.msra.mxu0 0.0
  %480 = vmatprep.subr.mxu0 0.0
  %481 = vmatpush2.msra.mxu0 0.0
  %482 = vmatprep.subr.mxu0 0.0
  %483 = vmatpush2.msra.mxu0 0.0
  %484 = vmatprep.subr.mxu0 0.0
  %485 = vmatpush2.msra.mxu0 0.0
  %486 = vmatprep.subr.mxu0 0.0
  %487 = vmatpush2.msra.mxu0 0.0
  %488 = vmatprep.subr.mxu0 0.0
  %489 = vmatpush2.msra.mxu0 0.0
  %490 = vmatprep.subr.mxu0 0.0
  %491 = vmatpush2.msra.mxu0 0.0
  %492 = vmatprep.subr.mxu0 0.0
  %493 = vmatpush2.msra.mxu0 0.0
  %494 = vmatprep.subr.mxu0 0.0
  %495 = vmatpush2.msra.mxu0 0.0
  %496 = vmatprep.subr.mxu0 0.0
  %497 = vmatpush2.msra.mxu0 0.0
  %498 = vmatprep.mubr.f32.mxu0 0.0
  %499 = vmatmul.mubr.f32.gmra.mxu0 %v173
  %v500 = vpop.f32.mrf.mxu0
  %v501 = vadd.f32 %v169, %v500
  %v502 = vpop.f32.mrf.mxu0
  %v503 = vadd.f32 %v169, %v502
  %504 = vdwg.mxu0
  %505 = vmatprep.subr.mxu0 0.0
  %506 = vmatpush1.msra.mxu0 0.0
  %507 = vmatprep.subr.mxu0 0.0
  %508 = vmatpush1.msra.mxu0 0.0
  %509 = vmatprep.subr.mxu0 0.0
  %510 = vmatpush1.msra.mxu0 0.0
  %511 = vmatprep.subr.mxu0 0.0
  %512 = vmatpush1.msra.mxu0 0.0
  %513 = vmatprep.subr.mxu0 0.0
  %514 = vmatpush1.msra.mxu0 0.0
  %515 = vmatprep.subr.mxu0 0.0
  %516 = vmatpush1.msra.mxu0 0.0
  %517 = vmatprep.subr.mxu0 %v204
  %518 = vmatpush1.msra.mxu0 %v201
  %519 = vmatprep.subr.mxu0 %v144
  %520 = vmatpush1.msra.mxu0 %v143
  %521 = vmatprep.subr.mxu0 %v129
  %522 = vmatpush1.msra.mxu0 %v128
  %523 = vmatprep.subr.mxu0 %v114
  %524 = vmatpush1.msra.mxu0 %v113
  %525 = vmatprep.subr.mxu0 %v99
  %526 = vmatpush1.msra.mxu0 %v98
  %527 = vmatprep.subr.mxu0 %v84
  %528 = vmatpush1.msra.mxu0 %v83
  %529 = vmatprep.subr.mxu0 %v69
  %530 = vmatpush1.msra.mxu0 %v68
  %531 = vmatprep.subr.mxu0 %v54
  %532 = vmatpush1.msra.mxu0 %v53
  %533 = vmatprep.subr.mxu0 %v39
  %534 = vmatpush1.msra.mxu0 %v38
  %535 = vmatprep.subr.mxu0 %v24
  %536 = vmatpush1.msra.mxu0 %v23
  %537 = vmatprep.subr.mxu0 0.0
  %538 = vmatpush2.msra.mxu0 0.0
  %539 = vmatprep.subr.mxu0 0.0
  %540 = vmatpush2.msra.mxu0 0.0
  %541 = vmatprep.subr.mxu0 0.0
  %542 = vmatpush2.msra.mxu0 0.0
  %543 = vmatprep.subr.mxu0 0.0
  %544 = vmatpush2.msra.mxu0 0.0
  %545 = vmatprep.subr.mxu0 0.0
  %546 = vmatpush2.msra.mxu0 0.0
  %547 = vmatprep.subr.mxu0 0.0
  %548 = vmatpush2.msra.mxu0 0.0
  %549 = vmatprep.subr.mxu0 0.0
  %550 = vmatpush2.msra.mxu0 0.0
  %551 = vmatprep.subr.mxu0 0.0
  %552 = vmatpush2.msra.mxu0 0.0
  %553 = vmatprep.subr.mxu0 0.0
  %554 = vmatpush2.msra.mxu0 0.0
  %555 = vmatprep.subr.mxu0 0.0
  %556 = vmatpush2.msra.mxu0 0.0
  %557 = vmatprep.subr.mxu0 0.0
  %558 = vmatpush2.msra.mxu0 0.0
  %559 = vmatprep.subr.mxu0 0.0
  %560 = vmatpush2.msra.mxu0 0.0
  %561 = vmatprep.subr.mxu0 0.0
  %562 = vmatpush2.msra.mxu0 0.0
  %563 = vmatprep.subr.mxu0 0.0
  %564 = vmatpush2.msra.mxu0 0.0
  %565 = vmatprep.subr.mxu0 0.0
  %566 = vmatpush2.msra.mxu0 0.0
  %567 = vmatprep.subr.mxu0 0.0
  %568 = vmatpush2.msra.mxu0 0.0
  %569 = vmatprep.mubr.f32.mxu0 0.0
  %570 = vmatmul.mubr.f32.gmra.mxu0 %v173
  %v571 = vpop.f32.mrf.mxu0
  %v572 = vadd.f32 %v169, %v571
  %v573 = vpop.f32.mrf.mxu0
  %v574 = vadd.f32 %v169, %v573
  %575 = vdwg.mxu0
  %576 = vmatprep.subr.mxu0 0.0
  %577 = vmatpush1.msra.mxu0 0.0
  %578 = vmatprep.subr.mxu0 0.0
  %579 = vmatpush1.msra.mxu0 0.0
  %580 = vmatprep.subr.mxu0 0.0
  %581 = vmatpush1.msra.mxu0 0.0
  %582 = vmatprep.subr.mxu0 0.0
  %583 = vmatpush1.msra.mxu0 0.0
  %584 = vmatprep.subr.mxu0 0.0
  %585 = vmatpush1.msra.mxu0 0.0
  %586 = vmatprep.subr.mxu0 0.0
  %587 = vmatpush1.msra.mxu0 0.0
  %588 = vmatprep.subr.mxu0 %v210
  %589 = vmatpush1.msra.mxu0 %v207
  %590 = vmatprep.subr.mxu0 %v146
  %591 = vmatpush1.msra.mxu0 %v145
  %592 = vmatprep.subr.mxu0 %v131
  %593 = vmatpush1.msra.mxu0 %v130
  %594 = vmatprep.subr.mxu0 %v116
  %595 = vmatpush1.msra.mxu0 %v115
  %596 = vmatprep.subr.mxu0 %v101
  %597 = vmatpush1.msra.mxu0 %v100
  %598 = vmatprep.subr.mxu0 %v86
  %599 = vmatpush1.msra.mxu0 %v85
  %600 = vmatprep.subr.mxu0 %v71
  %601 = vmatpush1.msra.mxu0 %v70
  %602 = vmatprep.subr.mxu0 %v56
  %603 = vmatpush1.msra.mxu0 %v55
  %604 = vmatprep.subr.mxu0 %v41
  %605 = vmatpush1.msra.mxu0 %v40
  %606 = vmatprep.subr.mxu0 %v26
  %607 = vmatpush1.msra.mxu0 %v25
  %608 = vmatprep.subr.mxu0 0.0
  %609 = vmatpush2.msra.mxu0 0.0
  %610 = vmatprep.subr.mxu0 0.0
  %611 = vmatpush2.msra.mxu0 0.0
  %612 = vmatprep.subr.mxu0 0.0
  %613 = vmatpush2.msra.mxu0 0.0
  %614 = vmatprep.subr.mxu0 0.0
  %615 = vmatpush2.msra.mxu0 0.0
  %616 = vmatprep.subr.mxu0 0.0
  %617 = vmatpush2.msra.mxu0 0.0
  %618 = vmatprep.subr.mxu0 0.0
  %619 = vmatpush2.msra.mxu0 0.0
  %620 = vmatprep.subr.mxu0 0.0
  %621 = vmatpush2.msra.mxu0 0.0
  %622 = vmatprep.subr.mxu0 0.0
  %623 = vmatpush2.msra.mxu0 0.0
  %624 = vmatprep.subr.mxu0 0.0
  %625 = vmatpush2.msra.mxu0 0.0
  %626 = vmatprep.subr.mxu0 0.0
  %627 = vmatpush2.msra.mxu0 0.0
  %628 = vmatprep.subr.mxu0 0.0
  %629 = vmatpush2.msra.mxu0 0.0
  %630 = vmatprep.subr.mxu0 0.0
  %631 = vmatpush2.msra.mxu0 0.0
  %632 = vmatprep.subr.mxu0 0.0
  %633 = vmatpush2.msra.mxu0 0.0
  %634 = vmatprep.subr.mxu0 0.0
  %635 = vmatpush2.msra.mxu0 0.0
  %636 = vmatprep.subr.mxu0 0.0
  %637 = vmatpush2.msra.mxu0 0.0
  %638 = vmatprep.subr.mxu0 0.0
  %639 = vmatpush2.msra.mxu0 0.0
  %640 = vmatprep.mubr.f32.mxu0 0.0
  %641 = vmatmul.mubr.f32.gmra.mxu0 %v173
  %v642 = vpop.f32.mrf.mxu0
  %v643 = vadd.f32 %v169, %v642
  %v644 = vpop.f32.mrf.mxu0
  %v645 = vadd.f32 %v169, %v644
  %646 = vdwg.mxu0
  %647 = vmatprep.subr.mxu0 0.0
  %648 = vmatpush1.msra.mxu0 0.0
  %649 = vmatprep.subr.mxu0 0.0
  %650 = vmatpush1.msra.mxu0 0.0
  %651 = vmatprep.subr.mxu0 0.0
  %652 = vmatpush1.msra.mxu0 0.0
  %653 = vmatprep.subr.mxu0 0.0
  %654 = vmatpush1.msra.mxu0 0.0
  %655 = vmatprep.subr.mxu0 0.0
  %656 = vmatpush1.msra.mxu0 0.0
  %657 = vmatprep.subr.mxu0 0.0
  %658 = vmatpush1.msra.mxu0 0.0
  %659 = vmatprep.subr.mxu0 %v216
  %660 = vmatpush1.msra.mxu0 %v213
  %661 = vmatprep.subr.mxu0 %v148
  %662 = vmatpush1.msra.mxu0 %v147
  %663 = vmatprep.subr.mxu0 %v133
  %664 = vmatpush1.msra.mxu0 %v132
  %665 = vmatprep.subr.mxu0 %v118
  %666 = vmatpush1.msra.mxu0 %v117
  %667 = vmatprep.subr.mxu0 %v103
  %668 = vmatpush1.msra.mxu0 %v102
  %669 = vmatprep.subr.mxu0 %v88
  %670 = vmatpush1.msra.mxu0 %v87
  %671 = vmatprep.subr.mxu0 %v73
  %672 = vmatpush1.msra.mxu0 %v72
  %673 = vmatprep.subr.mxu0 %v58
  %674 = vmatpush1.msra.mxu0 %v57
  %675 = vmatprep.subr.mxu0 %v43
  %676 = vmatpush1.msra.mxu0 %v42
  %677 = vmatprep.subr.mxu0 %v28
  %678 = vmatpush1.msra.mxu0 %v27
  %679 = vmatprep.subr.mxu0 0.0
  %680 = vmatpush2.msra.mxu0 0.0
  %681 = vmatprep.subr.mxu0 0.0
  %682 = vmatpush2.msra.mxu0 0.0
  %683 = vmatprep.subr.mxu0 0.0
  %684 = vmatpush2.msra.mxu0 0.0
  %685 = vmatprep.subr.mxu0 0.0
  %686 = vmatpush2.msra.mxu0 0.0
  %687 = vmatprep.subr.mxu0 0.0
  %688 = vmatpush2.msra.mxu0 0.0
  %689 = vmatprep.subr.mxu0 0.0
  %690 = vmatpush2.msra.mxu0 0.0
  %691 = vmatprep.subr.mxu0 0.0
  %692 = vmatpush2.msra.mxu0 0.0
  %693 = vmatprep.subr.mxu0 0.0
  %694 = vmatpush2.msra.mxu0 0.0
  %695 = vmatprep.subr.mxu0 0.0
  %696 = vmatpush2.msra.mxu0 0.0
  %697 = vmatprep.subr.mxu0 0.0
  %698 = vmatpush2.msra.mxu0 0.0
  %699 = vmatprep.subr.mxu0 0.0
  %700 = vmatpush2.msra.mxu0 0.0
  %701 = vmatprep.subr.mxu0 0.0
  %702 = vmatpush2.msra.mxu0 0.0
  %703 = vmatprep.subr.mxu0 0.0
  %704 = vmatpush2.msra.mxu0 0.0
  %705 = vmatprep.subr.mxu0 0.0
  %706 = vmatpush2.msra.mxu0 0.0
  %707 = vmatprep.subr.mxu0 0.0
  %708 = vmatpush2.msra.mxu0 0.0
  %709 = vmatprep.subr.mxu0 0.0
  %710 = vmatpush2.msra.mxu0 0.0
  %711 = vmatprep.mubr.f32.mxu0 0.0
  %712 = vmatmul.mubr.f32.gmra.mxu0 %v173
  %v713 = vpop.f32.mrf.mxu0
  %v714 = vadd.f32 %v169, %v713
  %v715 = vpop.f32.mrf.mxu0
  %v716 = vadd.f32 %v169, %v715
  %717 = vdwg.mxu0
  %718 = vmatprep.subr.mxu0 0.0
  %719 = vmatpush1.msra.mxu0 0.0
  %720 = vmatprep.subr.mxu0 0.0
  %721 = vmatpush1.msra.mxu0 0.0
  %722 = vmatprep.subr.mxu0 0.0
  %723 = vmatpush1.msra.mxu0 0.0
  %724 = vmatprep.subr.mxu0 0.0
  %725 = vmatpush1.msra.mxu0 0.0
  %726 = vmatprep.subr.mxu0 0.0
  %727 = vmatpush1.msra.mxu0 0.0
  %728 = vmatprep.subr.mxu0 0.0
  %729 = vmatpush1.msra.mxu0 0.0
  %730 = vmatprep.subr.mxu0 0.0
  %731 = vmatpush1.msra.mxu0 %v219
  %732 = vmatprep.subr.mxu0 0.0
  %733 = vmatpush1.msra.mxu0 %v149
  %734 = vmatprep.subr.mxu0 0.0
  %735 = vmatpush1.msra.mxu0 %v134
  %736 = vmatprep.subr.mxu0 0.0
  %737 = vmatpush1.msra.mxu0 %v119
  %738 = vmatprep.subr.mxu0 0.0
  %739 = vmatpush1.msra.mxu0 %v104
  %740 = vmatprep.subr.mxu0 0.0
  %741 = vmatpush1.msra.mxu0 %v89
  %742 = vmatprep.subr.mxu0 0.0
  %743 = vmatpush1.msra.mxu0 %v74
  %744 = vmatprep.subr.mxu0 0.0
  %745 = vmatpush1.msra.mxu0 %v59
  %746 = vmatprep.subr.mxu0 0.0
  %747 = vmatpush1.msra.mxu0 %v44
  %748 = vmatprep.subr.mxu0 0.0
  %749 = vmatpush1.msra.mxu0 %v29
  %750 = vmatprep.subr.mxu0 0.0
  %751 = vmatpush2.msra.mxu0 0.0
  %752 = vmatprep.subr.mxu0 0.0
  %753 = vmatpush2.msra.mxu0 0.0
  %754 = vmatprep.subr.mxu0 0.0
  %755 = vmatpush2.msra.mxu0 0.0
  %756 = vmatprep.subr.mxu0 0.0
  %757 = vmatpush2.msra.mxu0 0.0
  %758 = vmatprep.subr.mxu0 0.0
  %759 = vmatpush2.msra.mxu0 0.0
  %760 = vmatprep.subr.mxu0 0.0
  %761 = vmatpush2.msra.mxu0 0.0
  %762 = vmatprep.subr.mxu0 0.0
  %763 = vmatpush2.msra.mxu0 0.0
  %764 = vmatprep.subr.mxu0 0.0
  %765 = vmatpush2.msra.mxu0 0.0
  %766 = vmatprep.subr.mxu0 0.0
  %767 = vmatpush2.msra.mxu0 0.0
  %768 = vmatprep.subr.mxu0 0.0
  %769 = vmatpush2.msra.mxu0 0.0
  %770 = vmatprep.subr.mxu0 0.0
  %771 = vmatpush2.msra.mxu0 0.0
  %772 = vmatprep.subr.mxu0 0.0
  %773 = vmatpush2.msra.mxu0 0.0
  %774 = vmatprep.subr.mxu0 0.0
  %775 = vmatpush2.msra.mxu0 0.0
  %776 = vmatprep.subr.mxu0 0.0
  %777 = vmatpush2.msra.mxu0 0.0
  %778 = vmatprep.subr.mxu0 0.0
  %779 = vmatpush2.msra.mxu0 0.0
  %780 = vmatprep.subr.mxu0 0.0
  %781 = vmatpush2.msra.mxu0 0.0
  %782 = vmatprep.mubr.f32.mxu0 0.0
  %783 = vmatmul.mubr.f32.gmra.mxu0 %v173
  %v784 = vpop.f32.mrf.mxu0
  %v785 = vadd.f32 %v169, %v784
  %v786 = vpop.f32.mrf.mxu0
  %787 = vdwg.mxu0
  %v788 = vmul.f32 %v288, 0.2
  %v789 = vmul.f32 %v290, 0.2
  %v790 = vmul.f32 %v359, 0.2
  %v791 = vmul.f32 %v361, 0.2
  %v792 = vmul.f32 %v430, 0.2
  %v793 = vmul.f32 %v432, 0.2
  %v794 = vmul.f32 %v501, 0.2
  %v795 = vmul.f32 %v503, 0.2
  %v796 = vmul.f32 %v572, 0.2
  %v797 = vmul.f32 %v574, 0.2
  %v798 = vmul.f32 %v643, 0.2
  %v799 = vmul.f32 %v645, 0.2
  %v800 = vmul.f32 %v714, 0.2
  %v801 = vmul.f32 %v716, 0.2
  %v802 = vmul.f32 %v785, 0.2
  %v803 = vmax.f32 %v288, %v788
  %v804 = vmax.f32 %v290, %v789
  %v805 = vmax.f32 %v359, %v790
  %v806 = vmax.f32 %v361, %v791
  %v807 = vmax.f32 %v430, %v792
  %v808 = vmax.f32 %v432, %v793
  %v809 = vmax.f32 %v501, %v794
  %v810 = vmax.f32 %v503, %v795
  %v811 = vmax.f32 %v572, %v796
  %v812 = vmax.f32 %v574, %v797
  %v813 = vmax.f32 %v643, %v798
  %v814 = vmax.f32 %v645, %v799
  %v815 = vmax.f32 %v714, %v800
  %v816 = vmax.f32 %v716, %v801
  %v817 = vmax.f32 %v785, %v802
  %v832 = vcombine.low %v803, %v804
  %v833 = vcombine.low %v805, %v806
  %v834 = vcombine.low %v807, %v808
  %v835 = vcombine.low %v809, %v810
  %v836 = vcombine.low %v811, %v812
  %v837 = vcombine.low %v813, %v814
  %v838 = vcombine.low %v815, %v816
  %846 = vst [vmem:[%s3] sm:$0xff] %v832
  %847 = vst [vmem:[%s3 + $0x8] sm:$0xff] %v833
  %848 = vst [vmem:[%s3 + $0x10] sm:$0xff] %v834
  %849 = vst [vmem:[%s3 + $0x18] sm:$0xff] %v835
  %850 = vst [vmem:[%s3 + $0x20] sm:$0xff] %v836
  %851 = vst [vmem:[%s3 + $0x28] sm:$0xff] %v837
  %852 = vst [vmem:[%s3 + $0x30] sm:$0xff] %v838
  %853 = vst [vmem:[%s3 + $0x38] sm:$0xf] %v817
  // Predicated region
  $region14: #{eve_forward.3} parent=0 // pred_check
    _
  $region15: #{eve_forward.3} parent=0 // pred_check_branch
    %855 = sbr.rel (0) target = $region17
  $region16: #{eve_forward.3} parent=0 // pred_region
    _
  $region17: #{eve_forward.3} parent=0 // pred_fallthru
    _
  // Predicated region
  $region18: #{eve_forward.3} parent=0 // pred_check
    _
  $region19: #{eve_forward.3} parent=0 // pred_check_branch
    %857 = sbr.rel (0) target = $region21
  $region20: #{eve_forward.3} parent=0 // pred_region
    _
  $region21: #{eve_forward.3} parent=0 // pred_fallthru
    _

// kernel: eve_forward.4
$region0: #{eve_forward.4}
  #allocation0 [shape = 'u32[]', space=smem, size = 0x4, offset = 0x4, fixed_abs, tag = 'smem constant byte address 0x4 - core index']
  #allocation1 [shape = 'u32[144,128]{1,0:T(1,128)}', space=vmem, size = 0x12000, scoped, tag = 'internal scratch']
  %s0 = inlined_call_operand.vmem [shape: f32[100,338], index: 0, kind: input, shape index: {}]
  %s1 = inlined_call_operand.vmem [shape: f32[8,100], index: 1, kind: input, shape index: {}]
  %s2 = inlined_call_operand.vmem [shape: f32[8,1], index: 2, kind: input, shape index: {}]
  %s3 = inlined_call_operand.vmem [shape: f32[8,338], index: 3, kind: output, shape index: {}]
  %s4 = sld [smem:[#allocation0]]
  $region22: #{eve_forward.4} parent=0
    _
  %s6 = ssub.s32 1, %s4
  %s7 = scalar_select 0, %s6, %s4
  // Predicated region
  $region2: #{eve_forward.4} parent=0 // pred_check
    _
  $region3: #{eve_forward.4} parent=0 // pred_check_branch
    %9 = sbr.rel (0) target = $region5
  $region4: #{eve_forward.4} parent=0 // pred_region
    _
  $region5: #{eve_forward.4} parent=0 // pred_fallthru
    _
  // Predicated region
  $region6: #{eve_forward.4} parent=0 // pred_check
    _
  $region7: #{eve_forward.4} parent=0 // pred_check_branch
    %11 = sbr.rel (0) target = $region9
  $region8: #{eve_forward.4} parent=0 // pred_region
    _
  $region9: #{eve_forward.4} parent=0 // pred_fallthru
    _
  // Predicated region
  $region10: #{eve_forward.4} parent=0 // pred_check
    _
  $region11: #{eve_forward.4} parent=0 // pred_check_branch
    %13 = sbr.rel (0) target = $region13
  $region12: #{eve_forward.4} parent=0 // pred_region
    _
  $region13: #{eve_forward.4} parent=0 // pred_fallthru
    _
  %v14 = vld [vmem:[%s1] sm:$0xff]
  %v15 = vld [vmem:[%s0] sm:$0xff]
  %v16 = vld [vmem:[%s0 + $0x8] sm:$0xff]
  %v17 = vld [vmem:[%s0 + $0x10] sm:$0xff]
  %v18 = vld [vmem:[%s0 + $0x18] sm:$0xff]
  %v19 = vld [vmem:[%s0 + $0x20] sm:$0xff]
  %v20 = vld [vmem:[%s0 + $0x28] sm:$0xff]
  %v21 = vld [vmem:[%s0 + $0x30] sm:$0xff]
  %v22 = vld [vmem:[%s0 + $0x38] sm:$0xff]
  %v23 = vld [vmem:[%s0 + $0x40] sm:$0xff]
  %v24 = vld [vmem:[%s0 + $0x48] sm:$0xff]
  %v25 = vld [vmem:[%s0 + $0x50] sm:$0xff]
  %v26 = vld [vmem:[%s0 + $0x58] sm:$0xff]
  %v27 = vld [vmem:[%s0 + $0x60] sm:$0xff]
  %v28 = vld [vmem:[%s0 + $0x68] sm:$0xff]
  %v29 = vld [vmem:[%s0 + $0x70] sm:$0xff]
  %v30 = vld [vmem:[%s0 + $0x78] sm:$0xff]
  %v31 = vld [vmem:[%s0 + $0x80] sm:$0xff]
  %v32 = vld [vmem:[%s0 + $0x88] sm:$0xff]
  %v33 = vld [vmem:[%s0 + $0x90] sm:$0xff]
  %v34 = vld [vmem:[%s0 + $0x98] sm:$0xff]
  %v35 = vld [vmem:[%s0 + $0xa0] sm:$0xff]
  %v36 = vld [vmem:[%s0 + $0xa8] sm:$0xff]
  %v37 = vld [vmem:[%s0 + $0xb0] sm:$0xff]
  %v38 = vld [vmem:[%s0 + $0xb8] sm:$0xff]
  %v39 = vld [vmem:[%s0 + $0xc0] sm:$0xff]
  %v40 = vld [vmem:[%s0 + $0xc8] sm:$0xff]
  %v41 = vld [vmem:[%s0 + $0xd0] sm:$0xff]
  %v42 = vld [vmem:[%s0 + $0xd8] sm:$0xff]
  %v43 = vld [vmem:[%s0 + $0xe0] sm:$0xff]
  %v44 = vld [vmem:[%s0 + $0xe8] sm:$0xff]
  %v45 = vld [vmem:[%s0 + $0xf0] sm:$0xff]
  %v46 = vld [vmem:[%s0 + $0xf8] sm:$0xff]
  %v47 = vld [vmem:[%s0 + $0x100] sm:$0xff]
  %v48 = vld [vmem:[%s0 + $0x108] sm:$0xff]
  %v49 = vld [vmem:[%s0 + $0x110] sm:$0xff]
  %v50 = vld [vmem:[%s0 + $0x118] sm:$0xff]
  %v51 = vld [vmem:[%s0 + $0x120] sm:$0xf]
  %v52 = vld [vmem:[%s0 + $0x128] sm:$0xf]
  %v53 = vld [vmem:[%s0 + $0x130] sm:$0xf]
  %v54 = vld [vmem:[%s2] sm:$0xff]
  %56 = vset.pattern.permute.xlu0 0
  %57 = vperm.xlu0 %56, %v54
  %v58 = vpop.permute.xlu0 %57
  %vm60 = vcmask 818176
  %v62 = vsel %vm60, %v14, 0
  %vm64 = vcmask 1043456
  %v66 = vsel %vm64, %v51, 0
  %v69 = vsel %vm64, %v52, 0
  %v72 = vsel %vm64, %v53, 0
  %74 = vmatprep.subr.mxu0 0.0
  %75 = vmatpush1.msra.mxu0 0.0
  %76 = vmatprep.subr.mxu0 0.0
  %77 = vmatpush1.msra.mxu0 0.0
  %78 = vmatprep.subr.mxu0 0.0
  %79 = vmatpush1.msra.mxu0 0.0
  %80 = vmatprep.subr.mxu0 %v69
  %81 = vmatpush1.msra.mxu0 %v66
  %82 = vmatprep.subr.mxu0 %v49
  %83 = vmatpush1.msra.mxu0 %v48
  %84 = vmatprep.subr.mxu0 %v46
  %85 = vmatpush1.msra.mxu0 %v45
  %86 = vmatprep.subr.mxu0 %v43
  %87 = vmatpush1.msra.mxu0 %v42
  %88 = vmatprep.subr.mxu0 %v40
  %89 = vmatpush1.msra.mxu0 %v39
  %90 = vmatprep.subr.mxu0 %v37
  %91 = vmatpush1.msra.mxu0 %v36
  %92 = vmatprep.subr.mxu0 %v34
  %93 = vmatpush1.msra.mxu0 %v33
  %94 = vmatprep.subr.mxu0 %v31
  %95 = vmatpush1.msra.mxu0 %v30
  %96 = vmatprep.subr.mxu0 %v28
  %97 = vmatpush1.msra.mxu0 %v27
  %98 = vmatprep.subr.mxu0 %v25
  %99 = vmatpush1.msra.mxu0 %v24
  %100 = vmatprep.subr.mxu0 %v22
  %101 = vmatpush1.msra.mxu0 %v21
  %102 = vmatprep.subr.mxu0 %v19
  %103 = vmatpush1.msra.mxu0 %v18
  %104 = vmatprep.subr.mxu0 %v16
  %105 = vmatpush1.msra.mxu0 %v15
  %106 = vmatprep.subr.mxu0 0.0
  %107 = vmatpush2.msra.mxu0 0.0
  %108 = vmatprep.subr.mxu0 0.0
  %109 = vmatpush2.msra.mxu0 0.0
  %110 = vmatprep.subr.mxu0 0.0
  %111 = vmatpush2.msra.mxu0 0.0
  %112 = vmatprep.subr.mxu0 0.0
  %113 = vmatpush2.msra.mxu0 0.0
  %114 = vmatprep.subr.mxu0 0.0
  %115 = vmatpush2.msra.mxu0 0.0
  %116 = vmatprep.subr.mxu0 0.0
  %117 = vmatpush2.msra.mxu0 0.0
  %118 = vmatprep.subr.mxu0 0.0
  %119 = vmatpush2.msra.mxu0 0.0
  %120 = vmatprep.subr.mxu0 0.0
  %121 = vmatpush2.msra.mxu0 0.0
  %122 = vmatprep.subr.mxu0 0.0
  %123 = vmatpush2.msra.mxu0 0.0
  %124 = vmatprep.subr.mxu0 0.0
  %125 = vmatpush2.msra.mxu0 0.0
  %126 = vmatprep.subr.mxu0 0.0
  %127 = vmatpush2.msra.mxu0 0.0
  %128 = vmatprep.subr.mxu0 0.0
  %129 = vmatpush2.msra.mxu0 0.0
  %130 = vmatprep.subr.mxu0 0.0
  %131 = vmatpush2.msra.mxu0 0.0
  %132 = vmatprep.subr.mxu0 0.0
  %133 = vmatpush2.msra.mxu0 0.0
  %134 = vmatprep.subr.mxu0 0.0
  %135 = vmatpush2.msra.mxu0 0.0
  %136 = vmatprep.subr.mxu0 0.0
  %137 = vmatpush2.msra.mxu0 0.0
  %138 = vmatprep.mubr.f32.mxu0 0.0
  %139 = vmatmul.mubr.f32.gmra.mxu0 %v62
  %v140 = vpop.f32.mrf.mxu0
  %v141 = vadd.f32 %v58, %v140
  %v142 = vpop.f32.mrf.mxu0
  %v143 = vadd.f32 %v58, %v142
  %144 = vdwg.mxu0
  %145 = vmatprep.subr.mxu0 0.0
  %146 = vmatpush1.msra.mxu0 0.0
  %147 = vmatprep.subr.mxu0 0.0
  %148 = vmatpush1.msra.mxu0 0.0
  %149 = vmatprep.subr.mxu0 0.0
  %150 = vmatpush1.msra.mxu0 0.0
  %151 = vmatprep.subr.mxu0 0.0
  %152 = vmatpush1.msra.mxu0 %v72
  %153 = vmatprep.subr.mxu0 0.0
  %154 = vmatpush1.msra.mxu0 %v50
  %155 = vmatprep.subr.mxu0 0.0
  %156 = vmatpush1.msra.mxu0 %v47
  %157 = vmatprep.subr.mxu0 0.0
  %158 = vmatpush1.msra.mxu0 %v44
  %159 = vmatprep.subr.mxu0 0.0
  %160 = vmatpush1.msra.mxu0 %v41
  %161 = vmatprep.subr.mxu0 0.0
  %162 = vmatpush1.msra.mxu0 %v38
  %163 = vmatprep.subr.mxu0 0.0
  %164 = vmatpush1.msra.mxu0 %v35
  %165 = vmatprep.subr.mxu0 0.0
  %166 = vmatpush1.msra.mxu0 %v32
  %167 = vmatprep.subr.mxu0 0.0
  %168 = vmatpush1.msra.mxu0 %v29
  %169 = vmatprep.subr.mxu0 0.0
  %170 = vmatpush1.msra.mxu0 %v26
  %171 = vmatprep.subr.mxu0 0.0
  %172 = vmatpush1.msra.mxu0 %v23
  %173 = vmatprep.subr.mxu0 0.0
  %174 = vmatpush1.msra.mxu0 %v20
  %175 = vmatprep.subr.mxu0 0.0
  %176 = vmatpush1.msra.mxu0 %v17
  %177 = vmatprep.subr.mxu0 0.0
  %178 = vmatpush2.msra.mxu0 0.0
  %179 = vmatprep.subr.mxu0 0.0
  %180 = vmatpush2.msra.mxu0 0.0
  %181 = vmatprep.subr.mxu0 0.0
  %182 = vmatpush2.msra.mxu0 0.0
  %183 = vmatprep.subr.mxu0 0.0
  %184 = vmatpush2.msra.mxu0 0.0
  %185 = vmatprep.subr.mxu0 0.0
  %186 = vmatpush2.msra.mxu0 0.0
  %187 = vmatprep.subr.mxu0 0.0
  %188 = vmatpush2.msra.mxu0 0.0
  %189 = vmatprep.subr.mxu0 0.0
  %190 = vmatpush2.msra.mxu0 0.0
  %191 = vmatprep.subr.mxu0 0.0
  %192 = vmatpush2.msra.mxu0 0.0
  %193 = vmatprep.subr.mxu0 0.0
  %194 = vmatpush2.msra.mxu0 0.0
  %195 = vmatprep.subr.mxu0 0.0
  %196 = vmatpush2.msra.mxu0 0.0
  %197 = vmatprep.subr.mxu0 0.0
  %198 = vmatpush2.msra.mxu0 0.0
  %199 = vmatprep.subr.mxu0 0.0
  %200 = vmatpush2.msra.mxu0 0.0
  %201 = vmatprep.subr.mxu0 0.0
  %202 = vmatpush2.msra.mxu0 0.0
  %203 = vmatprep.subr.mxu0 0.0
  %204 = vmatpush2.msra.mxu0 0.0
  %205 = vmatprep.subr.mxu0 0.0
  %206 = vmatpush2.msra.mxu0 0.0
  %207 = vmatprep.subr.mxu0 0.0
  %208 = vmatpush2.msra.mxu0 0.0
  %209 = vmatprep.mubr.f32.mxu0 0.0
  %210 = vmatmul.mubr.f32.gmra.mxu0 %v62
  %v211 = vpop.f32.mrf.mxu0
  %v212 = vadd.f32 %v58, %v211
  %v213 = vpop.f32.mrf.mxu0
  %214 = vdwg.mxu0
  %v215 = vmul.f32 %v141, 0.2
  %v216 = vmul.f32 %v143, 0.2
  %v217 = vmul.f32 %v212, 0.2
  %v218 = vmax.f32 %v141, %v215
  %v219 = vmax.f32 %v143, %v216
  %v220 = vmax.f32 %v212, %v217
  %221 = vst [vmem:[%s3] sm:$0xff] %v218
  %222 = vst [vmem:[%s3 + $0x8] sm:$0xff] %v219
  %223 = vst [vmem:[%s3 + $0x10] sm:$0xff] %v220
  // Predicated region
  $region14: #{eve_forward.4} parent=0 // pred_check
    _
  $region15: #{eve_forward.4} parent=0 // pred_check_branch
    %225 = sbr.rel (0) target = $region17
  $region16: #{eve_forward.4} parent=0 // pred_region
    _
  $region17: #{eve_forward.4} parent=0 // pred_fallthru
    _
  // Predicated region
  $region18: #{eve_forward.4} parent=0 // pred_check
    _
  $region19: #{eve_forward.4} parent=0 // pred_check_branch
    %227 = sbr.rel (0) target = $region21
  $region20: #{eve_forward.4} parent=0 // pred_region
    _
  $region21: #{eve_forward.4} parent=0 // pred_fallthru
    _

// kernel: eve_forward.5
$region0: #{eve_forward.5}
  #allocation0 [shape = 'u32[]', space=smem, size = 0x4, offset = 0x4, fixed_abs, tag = 'smem constant byte address 0x4 - core index']
  #allocation1 [shape = 'u32[144,128]{1,0:T(1,128)}', space=vmem, size = 0x12000, scoped, tag = 'internal scratch']
  #allocation2 [shape = 'f32[16,50]{1,0:T(8,128)}', space=vmem, size = 0x2000, scoped, tag = 'scratch operand']
  #allocation3 [shape = 'f32[1,1]{1,0:T(1,128)S(1)}', space=vmem, size = 0x200, scoped, tag = 'scoped memory for eve_forward.5']
  %s0 = inlined_call_operand.vmem [shape: f32[200,50], index: 0, kind: input, shape index: {}]
  %s1 = inlined_call_operand.vmem [shape: f32[16,200], index: 1, kind: input, shape index: {}]
  %s2 = inlined_call_operand.vmem [shape: f32[16,1], index: 2, kind: input, shape index: {}]
  %s3 = inlined_call_operand.vmem [shape: f32[25,32,16], index: 3, kind: input, shape index: {}]
  %s4 = inlined_call_operand.vmem [shape: f32[32,1], index: 4, kind: input, shape index: {}]
  %s5 = inlined_call_operand.vmem [shape: f32[1,32], index: 5, kind: input, shape index: {}]
  %s6 = inlined_call_operand.<no memory space> [shape: f32[1,1], index: 6, kind: input, shape index: {}]
  %s7 = inlined_call_operand.hbm [shape: f32[1,2], index: 7, kind: output, shape index: {}]
  %s8 = sld [smem:[#allocation0]]
  $region38: #{eve_forward.5} parent=0
    _
  %s10 = ssub.s32 1, %s8
  %s11 = scalar_select 0, %s10, %s8
  %v12 = vstv %s6
  %13 = vst [vmem:[#allocation3] sm:$0x1] %v12
  $region1: #{eve_forward.5} parent=0
    #allocation4 [shape = 'u8[512]{0}', space=vmem, size = 0x400, scoped, tag = 'output window, operand 0, single buffered']
    #allocation5 [shape = 's32[1]{0}', space=sflag, size = 0x4, scoped, tag = 'scoped memory for eve_forward.5']
    %14 = vsyncpa [#allocation5], 0
    // Predicated region
    $region2: #{eve_forward.5} parent=1 // pred_check
      _
    $region3: #{eve_forward.5} parent=1 // pred_check_branch
      %16 = sbr.rel (0) target = $region5
    $region4: #{eve_forward.5} parent=1 // pred_region
      _
    $region5: #{eve_forward.5} parent=1 // pred_fallthru
      _
    // Predicated region
    $region6: #{eve_forward.5} parent=1 // pred_check
      _
    $region7: #{eve_forward.5} parent=1 // pred_check_branch
      %18 = sbr.rel (0) target = $region9
    $region8: #{eve_forward.5} parent=1 // pred_region
      _
    $region9: #{eve_forward.5} parent=1 // pred_fallthru
      _
    // Predicated region
    $region10: #{eve_forward.5} parent=1 // pred_check
      _
    $region11: #{eve_forward.5} parent=1 // pred_check_branch
      %20 = sbr.rel (0) target = $region13
    $region12: #{eve_forward.5} parent=1 // pred_region
      _
    $region13: #{eve_forward.5} parent=1 // pred_fallthru
      _
    // Predicated region
    $region14: #{eve_forward.5} parent=1 // pred_check
      _
    $region15: #{eve_forward.5} parent=1 // pred_check_branch
      %22 = sbr.rel (0) target = $region17
    $region16: #{eve_forward.5} parent=1 // pred_region
      _
    $region17: #{eve_forward.5} parent=1 // pred_fallthru
      _
    // Predicated region
    $region18: #{eve_forward.5} parent=1 // pred_check
      _
    $region19: #{eve_forward.5} parent=1 // pred_check_branch
      %24 = sbr.rel (0) target = $region21
    $region20: #{eve_forward.5} parent=1 // pred_region
      _
    $region21: #{eve_forward.5} parent=1 // pred_fallthru
      _
    // Predicated region
    $region22: #{eve_forward.5} parent=1 // pred_check
      _
    $region23: #{eve_forward.5} parent=1 // pred_check_branch
      %26 = sbr.rel (0) target = $region25
    $region24: #{eve_forward.5} parent=1 // pred_region
      _
    $region25: #{eve_forward.5} parent=1 // pred_fallthru
      _
    // Predicated region
    $region26: #{eve_forward.5} parent=1 // pred_check
      _
    $region27: #{eve_forward.5} parent=1 // pred_check_branch
      %28 = sbr.rel (0) target = $region29
    $region28: #{eve_forward.5} parent=1 // pred_region
      _
    $region29: #{eve_forward.5} parent=1 // pred_fallthru
      _
    %v29 = vld [vmem:[%s1] sm:$0xff]
    %v30 = vld [vmem:[%s1 + $0x8] sm:$0xff]
    %v31 = vld [vmem:[%s1 + $0x10] sm:$0xff]
    %v32 = vld [vmem:[%s1 + $0x18] sm:$0xff]
    %v33 = vld [vmem:[%s0] sm:$0xff]
    %v34 = vld [vmem:[%s0 + $0x8] sm:$0xff]
    %v35 = vld [vmem:[%s0 + $0x10] sm:$0xff]
    %v36 = vld [vmem:[%s0 + $0x18] sm:$0xff]
    %v37 = vld [vmem:[%s0 + $0x20] sm:$0xff]
    %v38 = vld [vmem:[%s0 + $0x28] sm:$0xff]
    %v39 = vld [vmem:[%s0 + $0x30] sm:$0xff]
    %v40 = vld [vmem:[%s0 + $0x38] sm:$0xff]
    %v41 = vld [vmem:[%s0 + $0x40] sm:$0xff]
    %v42 = vld [vmem:[%s0 + $0x48] sm:$0xff]
    %v43 = vld [vmem:[%s0 + $0x50] sm:$0xff]
    %v44 = vld [vmem:[%s0 + $0x58] sm:$0xff]
    %v45 = vld [vmem:[%s0 + $0x60] sm:$0xff]
    %v46 = vld [vmem:[%s0 + $0x68] sm:$0xff]
    %v47 = vld [vmem:[%s0 + $0x70] sm:$0xff]
    %v48 = vld [vmem:[%s0 + $0x78] sm:$0xff]
    %v49 = vld [vmem:[%s0 + $0x80] sm:$0xff]
    %v50 = vld [vmem:[%s0 + $0x88] sm:$0xff]
    %v51 = vld [vmem:[%s0 + $0x90] sm:$0xff]
    %v52 = vld [vmem:[%s0 + $0x98] sm:$0xff]
    %v53 = vld [vmem:[%s0 + $0xa0] sm:$0xff]
    %v54 = vld [vmem:[%s0 + $0xa8] sm:$0xff]
    %v55 = vld [vmem:[%s0 + $0xb0] sm:$0xff]
    %v56 = vld [vmem:[%s0 + $0xb8] sm:$0xff]
    %v57 = vld [vmem:[%s0 + $0xc0] sm:$0xff]
    %v58 = vld [vmem:[%s2] sm:$0xff]
    %v59 = vld [vmem:[%s2 + $0x8] sm:$0xff]
    %61 = vset.pattern.permute.xlu0 0
    %62 = vperm.xlu0 %61, %v58
    %v63 = vpop.permute.xlu0 %62
    %66 = vset.pattern.permute.xlu0 0
    %67 = vperm.xlu0 %66, %v59
    %v68 = vpop.permute.xlu0 %67
    %vm70 = vcmask 588800
    %v72 = vsel %vm70, %v30, 0
    %v75 = vsel %vm70, %v32, 0
    %77 = vmatprep.subr.mxu0 0.0
    %78 = vmatpush1.msra.mxu0 %v48
    %79 = vmatprep.subr.mxu0 0.0
    %80 = vmatpush1.msra.mxu0 %v47
    %81 = vmatprep.subr.mxu0 0.0
    %82 = vmatpush1.msra.mxu0 %v46
    %83 = vmatprep.subr.mxu0 0.0
    %84 = vmatpush1.msra.mxu0 %v45
    %85 = vmatprep.subr.mxu0 0.0
    %86 = vmatpush1.msra.mxu0 %v44
    %87 = vmatprep.subr.mxu0 0.0
    %88 = vmatpush1.msra.mxu0 %v43
    %89 = vmatprep.subr.mxu0 0.0
    %90 = vmatpush1.msra.mxu0 %v42
    %91 = vmatprep.subr.mxu0 0.0
    %92 = vmatpush1.msra.mxu0 %v41
    %93 = vmatprep.subr.mxu0 0.0
    %94 = vmatpush1.msra.mxu0 %v40
    %95 = vmatprep.subr.mxu0 0.0
    %96 = vmatpush1.msra.mxu0 %v39
    %97 = vmatprep.subr.mxu0 0.0
    %98 = vmatpush1.msra.mxu0 %v38
    %99 = vmatprep.subr.mxu0 0.0
    %100 = vmatpush1.msra.mxu0 %v37
    %101 = vmatprep.subr.mxu0 0.0
    %102 = vmatpush1.msra.mxu0 %v36
    %103 = vmatprep.subr.mxu0 0.0
    %104 = vmatpush1.msra.mxu0 %v35
    %105 = vmatprep.subr.mxu0 0.0
    %106 = vmatpush1.msra.mxu0 %v34
    %107 = vmatprep.subr.mxu0 0.0
    %108 = vmatpush1.msra.mxu0 %v33
    %109 = vmatprep.subr.mxu0 0.0
    %110 = vmatpush2.msra.mxu0 0.0
    %111 = vmatprep.subr.mxu0 0.0
    %112 = vmatpush2.msra.mxu0 0.0
    %113 = vmatprep.subr.mxu0 0.0
    %114 = vmatpush2.msra.mxu0 0.0
    %115 = vmatprep.subr.mxu0 0.0
    %116 = vmatpush2.msra.mxu0 0.0
    %117 = vmatprep.subr.mxu0 0.0
    %118 = vmatpush2.msra.mxu0 0.0
    %119 = vmatprep.subr.mxu0 0.0
    %120 = vmatpush2.msra.mxu0 0.0
    %121 = vmatprep.subr.mxu0 0.0
    %122 = vmatpush2.msra.mxu0 0.0
    %123 = vmatprep.subr.mxu0 0.0
    %124 = vmatpush2.msra.mxu0 %v57
    %125 = vmatprep.subr.mxu0 0.0
    %126 = vmatpush2.msra.mxu0 %v56
    %127 = vmatprep.subr.mxu0 0.0
    %128 = vmatpush2.msra.mxu0 %v55
    %129 = vmatprep.subr.mxu0 0.0
    %130 = vmatpush2.msra.mxu0 %v54
    %131 = vmatprep.subr.mxu0 0.0
    %132 = vmatpush2.msra.mxu0 %v53
    %133 = vmatprep.subr.mxu0 0.0
    %134 = vmatpush2.msra.mxu0 %v52
    %135 = vmatprep.subr.mxu0 0.0
    %136 = vmatpush2.msra.mxu0 %v51
    %137 = vmatprep.subr.mxu0 0.0
    %138 = vmatpush2.msra.mxu0 %v50
    %139 = vmatprep.subr.mxu0 0.0
    %140 = vmatpush2.msra.mxu0 %v49
    %141 = vmatprep.mubr.f32.mxu0 %v72
    %142 = vmatmul.mubr.f32.gmra.mxu0 %v29
    %v143 = vpop.f32.mrf.mxu0
    %v144 = vadd.f32 %v63, %v143
    %v145 = vpop.f32.mrf.mxu0
    %146 = vmatprep.mubr.f32.mxu0 %v75
    %147 = vmatmul.mubr.f32.gmra.mxu0 %v31
    %v148 = vpop.f32.mrf.mxu0
    %v149 = vadd.f32 %v68, %v148
    %v150 = vpop.f32.mrf.mxu0
    %151 = vdwg.mxu0
    %v152 = vmul.f32 %v144, 0.2
    %v153 = vmul.f32 %v149, 0.2
    %v154 = vmax.f32 %v144, %v152
    %v155 = vmax.f32 %v149, %v153
    %vm156 = vcmask 408576
    %157 = vst.msk [vmem:[#allocation2] sm:$0xff] %vm156, %v154
    %158 = vst.msk [vmem:[#allocation2 + $0x8] sm:$0xff] %vm156, %v155
    %v159 = vld [vmem:[%s3] sm:$0xff]
    %v160 = vld [vmem:[%s3 + $0x8] sm:$0xff]
    %v161 = vld [vmem:[%s3 + $0x10] sm:$0xff]
    %v162 = vld [vmem:[%s3 + $0x18] sm:$0xff]
    %v163 = vld [vmem:[#allocation2] sm:$0xff]
    %v164 = vld [vmem:[#allocation2 + $0x8] sm:$0xff]
    %s165 = scalar_lea.vmem %s3, 32
    %v166 = vld [vmem:[%s165] sm:$0xff]
    %v167 = vld [vmem:[%s165 + $0x8] sm:$0xff]
    %v168 = vld [vmem:[%s165 + $0x10] sm:$0xff]
    %v169 = vld [vmem:[%s165 + $0x18] sm:$0xff]
    %172 = vrot.lane.b32.xlu0 %v163, 126
    %v173 = vpop.permute.xlu0 %172
    %174 = vrot.lane.b32.xlu0 %v164, 126
    %v175 = vpop.permute.xlu0 %174
    %vm178 = vcmask 130048
    %v180 = vsel %vm178, %v166, 0
    %v183 = vsel %vm178, %v167, 0
    %v186 = vsel %vm178, %v168, 0
    %v189 = vsel %vm178, %v169, 0
    %191 = vmatprep.subr.mxu0 0.0
    %192 = vmatpush1.msra.mxu0 0.0
    %193 = vmatprep.subr.mxu0 0.0
    %194 = vmatpush1.msra.mxu0 0.0
    %195 = vmatprep.subr.mxu0 0.0
    %196 = vmatpush1.msra.mxu0 0.0
    %197 = vmatprep.subr.mxu0 0.0
    %198 = vmatpush1.msra.mxu0 0.0
    %199 = vmatprep.subr.mxu0 0.0
    %200 = vmatpush1.msra.mxu0 0.0
    %201 = vmatprep.subr.mxu0 0.0
    %202 = vmatpush1.msra.mxu0 0.0
    %203 = vmatprep.subr.mxu0 0.0
    %204 = vmatpush1.msra.mxu0 0.0
    %205 = vmatprep.subr.mxu0 0.0
    %206 = vmatpush1.msra.mxu0 0.0
    %207 = vmatprep.subr.mxu0 0.0
    %208 = vmatpush1.msra.mxu0 0.0
    %209 = vmatprep.subr.mxu0 0.0
    %210 = vmatpush1.msra.mxu0 0.0
    %211 = vmatprep.subr.mxu0 0.0
    %212 = vmatpush1.msra.mxu0 0.0
    %213 = vmatprep.subr.mxu0 0.0
    %214 = vmatpush1.msra.mxu0 0.0
    %215 = vmatprep.subr.mxu0 0.0
    %216 = vmatpush1.msra.mxu0 0.0
    %217 = vmatprep.subr.mxu0 0.0
    %218 = vmatpush1.msra.mxu0 0.0
    %219 = vmatprep.subr.mxu0 0.0
    %220 = vmatpush1.msra.mxu0 %v175
    %221 = vmatprep.subr.mxu0 0.0
    %222 = vmatpush1.msra.mxu0 %v173
    %223 = vmatprep.subr.mxu0 0.0
    %224 = vmatpush2.msra.mxu0 0.0
    %225 = vmatprep.subr.mxu0 0.0
    %226 = vmatpush2.msra.mxu0 0.0
    %227 = vmatprep.subr.mxu0 0.0
    %228 = vmatpush2.msra.mxu0 0.0
    %229 = vmatprep.subr.mxu0 0.0
    %230 = vmatpush2.msra.mxu0 0.0
    %231 = vmatprep.subr.mxu0 0.0
    %232 = vmatpush2.msra.mxu0 0.0
    %233 = vmatprep.subr.mxu0 0.0
    %234 = vmatpush2.msra.mxu0 0.0
    %235 = vmatprep.subr.mxu0 0.0
    %236 = vmatpush2.msra.mxu0 0.0
    %237 = vmatprep.subr.mxu0 0.0
    %238 = vmatpush2.msra.mxu0 0.0
    %239 = vmatprep.subr.mxu0 0.0
    %240 = vmatpush2.msra.mxu0 0.0
    %241 = vmatprep.subr.mxu0 0.0
    %242 = vmatpush2.msra.mxu0 0.0
    %243 = vmatprep.subr.mxu0 0.0
    %244 = vmatpush2.msra.mxu0 0.0
    %245 = vmatprep.subr.mxu0 0.0
    %246 = vmatpush2.msra.mxu0 0.0
    %247 = vmatprep.subr.mxu0 0.0
    %248 = vmatpush2.msra.mxu0 0.0
    %249 = vmatprep.subr.mxu0 0.0
    %250 = vmatpush2.msra.mxu0 0.0
    %251 = vmatprep.subr.mxu0 0.0
    %252 = vmatpush2.msra.mxu0 0.0
    %253 = vmatprep.subr.mxu0 0.0
    %254 = vmatpush2.msra.mxu0 0.0
    %255 = vmatprep.mubr.f32.mxu0 0.0
    %256 = vmatmul.mubr.f32.gmra.mxu0 %v180
    %v257 = vpop.f32.mrf.mxu0
    %v258 = vadd.f32 0.0, %v257
    %v259 = vpop.f32.mrf.mxu0
    %260 = vmatprep.mubr.f32.mxu0 0.0
    %261 = vmatmul.mubr.f32.gmra.mxu0 %v183
    %v262 = vpop.f32.mrf.mxu0
    %v263 = vadd.f32 0.0, %v262
    %v264 = vpop.f32.mrf.mxu0
    %265 = vmatprep.mubr.f32.mxu0 0.0
    %266 = vmatmul.mubr.f32.gmra.mxu0 %v186
    %v267 = vpop.f32.mrf.mxu0
    %v268 = vadd.f32 0.0, %v267
    %v269 = vpop.f32.mrf.mxu0
    %270 = vmatprep.mubr.f32.mxu0 0.0
    %271 = vmatmul.mubr.f32.gmra.mxu0 %v189
    %v272 = vpop.f32.mrf.mxu0
    %v273 = vadd.f32 0.0, %v272
    %v274 = vpop.f32.mrf.mxu0
    %275 = vdwg.mxu0
    %v277 = vsel %vm178, %v159, 0
    %v280 = vsel %vm178, %v160, 0
    %v283 = vsel %vm178, %v161, 0
    %v286 = vsel %vm178, %v162, 0
    %288 = vmatprep.subr.mxu0 0.0
    %289 = vmatpush1.msra.mxu0 0.0
    %290 = vmatprep.subr.mxu0 0.0
    %291 = vmatpush1.msra.mxu0 0.0
    %292 = vmatprep.subr.mxu0 0.0
    %293 = vmatpush1.msra.mxu0 0.0
    %294 = vmatprep.subr.mxu0 0.0
    %295 = vmatpush1.msra.mxu0 0.0
    %296 = vmatprep.subr.mxu0 0.0
    %297 = vmatpush1.msra.mxu0 0.0
    %298 = vmatprep.subr.mxu0 0.0
    %299 = vmatpush1.msra.mxu0 0.0
    %300 = vmatprep.subr.mxu0 0.0
    %301 = vmatpush1.msra.mxu0 0.0
    %302 = vmatprep.subr.mxu0 0.0
    %303 = vmatpush1.msra.mxu0 0.0
    %304 = vmatprep.subr.mxu0 0.0
    %305 = vmatpush1.msra.mxu0 0.0
    %306 = vmatprep.subr.mxu0 0.0
    %307 = vmatpush1.msra.mxu0 0.0
    %308 = vmatprep.subr.mxu0 0.0
    %309 = vmatpush1.msra.mxu0 0.0
    %310 = vmatprep.subr.mxu0 0.0
    %311 = vmatpush1.msra.mxu0 0.0
    %312 = vmatprep.subr.mxu0 0.0
    %313 = vmatpush1.msra.mxu0 0.0
    %314 = vmatprep.subr.mxu0 0.0
    %315 = vmatpush1.msra.mxu0 0.0
    %316 = vmatprep.subr.mxu0 0.0
    %317 = vmatpush1.msra.mxu0 %v164
    %318 = vmatprep.subr.mxu0 0.0
    %319 = vmatpush1.msra.mxu0 %v163
    %320 = vmatprep.subr.mxu0 0.0
    %321 = vmatpush2.msra.mxu0 0.0
    %322 = vmatprep.subr.mxu0 0.0
    %323 = vmatpush2.msra.mxu0 0.0
    %324 = vmatprep.subr.mxu0 0.0
    %325 = vmatpush2.msra.mxu0 0.0
    %326 = vmatprep.subr.mxu0 0.0
    %327 = vmatpush2.msra.mxu0 0.0
    %328 = vmatprep.subr.mxu0 0.0
    %329 = vmatpush2.msra.mxu0 0.0
    %330 = vmatprep.subr.mxu0 0.0
    %331 = vmatpush2.msra.mxu0 0.0
    %332 = vmatprep.subr.mxu0 0.0
    %333 = vmatpush2.msra.mxu0 0.0
    %334 = vmatprep.subr.mxu0 0.0
    %335 = vmatpush2.msra.mxu0 0.0
    %336 = vmatprep.subr.mxu0 0.0
    %337 = vmatpush2.msra.mxu0 0.0
    %338 = vmatprep.subr.mxu0 0.0
    %339 = vmatpush2.msra.mxu0 0.0
    %340 = vmatprep.subr.mxu0 0.0
    %341 = vmatpush2.msra.mxu0 0.0
    %342 = vmatprep.subr.mxu0 0.0
    %343 = vmatpush2.msra.mxu0 0.0
    %344 = vmatprep.subr.mxu0 0.0
    %345 = vmatpush2.msra.mxu0 0.0
    %346 = vmatprep.subr.mxu0 0.0
    %347 = vmatpush2.msra.mxu0 0.0
    %348 = vmatprep.subr.mxu0 0.0
    %349 = vmatpush2.msra.mxu0 0.0
    %350 = vmatprep.subr.mxu0 0.0
    %351 = vmatpush2.msra.mxu0 0.0
    %352 = vmatprep.mubr.f32.mxu0 0.0
    %353 = vmatmul.mubr.f32.gmra.mxu0 %v277
    %v354 = vpop.f32.mrf.mxu0
    %v355 = vadd.f32 %v258, %v354
    %v356 = vpop.f32.mrf.mxu0
    %357 = vmatprep.mubr.f32.mxu0 0.0
    %358 = vmatmul.mubr.f32.gmra.mxu0 %v280
    %v359 = vpop.f32.mrf.mxu0
    %v360 = vadd.f32 %v263, %v359
    %v361 = vpop.f32.mrf.mxu0
    %362 = vmatprep.mubr.f32.mxu0 0.0
    %363 = vmatmul.mubr.f32.gmra.mxu0 %v283
    %v364 = vpop.f32.mrf.mxu0
    %v365 = vadd.f32 %v268, %v364
    %v366 = vpop.f32.mrf.mxu0
    %367 = vmatprep.mubr.f32.mxu0 0.0
    %368 = vmatmul.mubr.f32.gmra.mxu0 %v286
    %v369 = vpop.f32.mrf.mxu0
    %v370 = vadd.f32 %v273, %v369
    %v371 = vpop.f32.mrf.mxu0
    %372 = vdwg.mxu0
    %s373 = scalar_lea.vmem %s3, 64
    %v374 = vld [vmem:[%s373] sm:$0xff]
    %v375 = vld [vmem:[%s373 + $0x8] sm:$0xff]
    %v376 = vld [vmem:[%s373 + $0x10] sm:$0xff]
    %v377 = vld [vmem:[%s373 + $0x18] sm:$0xff]
    %378 = vrot.lane.b32.xlu0 %v163, 124
    %v379 = vpop.permute.xlu0 %378
    %380 = vrot.lane.b32.xlu0 %v164, 124
    %v381 = vpop.permute.xlu0 %380
    %v385 = vsel %vm178, %v374, 0
    %v388 = vsel %vm178, %v375, 0
    %v391 = vsel %vm178, %v376, 0
    %v394 = vsel %vm178, %v377, 0
    %396 = vmatprep.subr.mxu0 0.0
    %397 = vmatpush1.msra.mxu0 0.0
    %398 = vmatprep.subr.mxu0 0.0
    %399 = vmatpush1.msra.mxu0 0.0
    %400 = vmatprep.subr.mxu0 0.0
    %401 = vmatpush1.msra.mxu0 0.0
    %402 = vmatprep.subr.mxu0 0.0
    %403 = vmatpush1.msra.mxu0 0.0
    %404 = vmatprep.subr.mxu0 0.0
    %405 = vmatpush1.msra.mxu0 0.0
    %406 = vmatprep.subr.mxu0 0.0
    %407 = vmatpush1.msra.mxu0 0.0
    %408 = vmatprep.subr.mxu0 0.0
    %409 = vmatpush1.msra.mxu0 0.0
    %410 = vmatprep.subr.mxu0 0.0
    %411 = vmatpush1.msra.mxu0 0.0
    %412 = vmatprep.subr.mxu0 0.0
    %413 = vmatpush1.msra.mxu0 0.0
    %414 = vmatprep.subr.mxu0 0.0
    %415 = vmatpush1.msra.mxu0 0.0
    %416 = vmatprep.subr.mxu0 0.0
    %417 = vmatpush1.msra.mxu0 0.0
    %418 = vmatprep.subr.mxu0 0.0
    %419 = vmatpush1.msra.mxu0 0.0
    %420 = vmatprep.subr.mxu0 0.0
    %421 = vmatpush1.msra.mxu0 0.0
    %422 = vmatprep.subr.mxu0 0.0
    %423 = vmatpush1.msra.mxu0 0.0
    %424 = vmatprep.subr.mxu0 0.0
    %425 = vmatpush1.msra.mxu0 %v381
    %426 = vmatprep.subr.mxu0 0.0
    %427 = vmatpush1.msra.mxu0 %v379
    %428 = vmatprep.subr.mxu0 0.0
    %429 = vmatpush2.msra.mxu0 0.0
    %430 = vmatprep.subr.mxu0 0.0
    %431 = vmatpush2.msra.mxu0 0.0
    %432 = vmatprep.subr.mxu0 0.0
    %433 = vmatpush2.msra.mxu0 0.0
    %434 = vmatprep.subr.mxu0 0.0
    %435 = vmatpush2.msra.mxu0 0.0
    %436 = vmatprep.subr.mxu0 0.0
    %437 = vmatpush2.msra.mxu0 0.0
    %438 = vmatprep.subr.mxu0 0.0
    %439 = vmatpush2.msra.mxu0 0.0
    %440 = vmatprep.subr.mxu0 0.0
    %441 = vmatpush2.msra.mxu0 0.0
    %442 = vmatprep.subr.mxu0 0.0
    %443 = vmatpush2.msra.mxu0 0.0
    %444 = vmatprep.subr.mxu0 0.0
    %445 = vmatpush2.msra.mxu0 0.0
    %446 = vmatprep.subr.mxu0 0.0
    %447 = vmatpush2.msra.mxu0 0.0
    %448 = vmatprep.subr.mxu0 0.0
    %449 = vmatpush2.msra.mxu0 0.0
    %450 = vmatprep.subr.mxu0 0.0
    %451 = vmatpush2.msra.mxu0 0.0
    %452 = vmatprep.subr.mxu0 0.0
    %453 = vmatpush2.msra.mxu0 0.0
    %454 = vmatprep.subr.mxu0 0.0
    %455 = vmatpush2.msra.mxu0 0.0
    %456 = vmatprep.subr.mxu0 0.0
    %457 = vmatpush2.msra.mxu0 0.0
    %458 = vmatprep.subr.mxu0 0.0
    %459 = vmatpush2.msra.mxu0 0.0
    %460 = vmatprep.mubr.f32.mxu0 0.0
    %461 = vmatmul.mubr.f32.gmra.mxu0 %v385
    %v462 = vpop.f32.mrf.mxu0
    %v463 = vadd.f32 0.0, %v462
    %v464 = vpop.f32.mrf.mxu0
    %465 = vmatprep.mubr.f32.mxu0 0.0
    %466 = vmatmul.mubr.f32.gmra.mxu0 %v388
    %v467 = vpop.f32.mrf.mxu0
    %v468 = vadd.f32 0.0, %v467
    %v469 = vpop.f32.mrf.mxu0
    %470 = vmatprep.mubr.f32.mxu0 0.0
    %471 = vmatmul.mubr.f32.gmra.mxu0 %v391
    %v472 = vpop.f32.mrf.mxu0
    %v473 = vadd.f32 0.0, %v472
    %v474 = vpop.f32.mrf.mxu0
    %475 = vmatprep.mubr.f32.mxu0 0.0
    %476 = vmatmul.mubr.f32.gmra.mxu0 %v394
    %v477 = vpop.f32.mrf.mxu0
    %v478 = vadd.f32 0.0, %v477
    %v479 = vpop.f32.mrf.mxu0
    %480 = vdwg.mxu0
    %v481 = vadd.f32 %v355, %v463
    %v482 = vadd.f32 %v360, %v468
    %v483 = vadd.f32 %v365, %v473
    %v484 = vadd.f32 %v370, %v478
    %s485 = scalar_lea.vmem %s3, 96
    %v486 = vld [vmem:[%s485] sm:$0xff]
    %v487 = vld [vmem:[%s485 + $0x8] sm:$0xff]
    %v488 = vld [vmem:[%s485 + $0x10] sm:$0xff]
    %v489 = vld [vmem:[%s485 + $0x18] sm:$0xff]
    %490 = vrot.lane.b32.xlu0 %v163, 122
    %v491 = vpop.permute.xlu0 %490
    %492 = vrot.lane.b32.xlu0 %v164, 122
    %v493 = vpop.permute.xlu0 %492
    %v497 = vsel %vm178, %v486, 0
    %v500 = vsel %vm178, %v487, 0
    %v503 = vsel %vm178, %v488, 0
    %v506 = vsel %vm178, %v489, 0
    %508 = vmatprep.subr.mxu0 0.0
    %509 = vmatpush1.msra.mxu0 0.0
    %510 = vmatprep.subr.mxu0 0.0
    %511 = vmatpush1.msra.mxu0 0.0
    %512 = vmatprep.subr.mxu0 0.0
    %513 = vmatpush1.msra.mxu0 0.0
    %514 = vmatprep.subr.mxu0 0.0
    %515 = vmatpush1.msra.mxu0 0.0
    %516 = vmatprep.subr.mxu0 0.0
    %517 = vmatpush1.msra.mxu0 0.0
    %518 = vmatprep.subr.mxu0 0.0
    %519 = vmatpush1.msra.mxu0 0.0
    %520 = vmatprep.subr.mxu0 0.0
    %521 = vmatpush1.msra.mxu0 0.0
    %522 = vmatprep.subr.mxu0 0.0
    %523 = vmatpush1.msra.mxu0 0.0
    %524 = vmatprep.subr.mxu0 0.0
    %525 = vmatpush1.msra.mxu0 0.0
    %526 = vmatprep.subr.mxu0 0.0
    %527 = vmatpush1.msra.mxu0 0.0
    %528 = vmatprep.subr.mxu0 0.0
    %529 = vmatpush1.msra.mxu0 0.0
    %530 = vmatprep.subr.mxu0 0.0
    %531 = vmatpush1.msra.mxu0 0.0
    %532 = vmatprep.subr.mxu0 0.0
    %533 = vmatpush1.msra.mxu0 0.0
    %534 = vmatprep.subr.mxu0 0.0
    %535 = vmatpush1.msra.mxu0 0.0
    %536 = vmatprep.subr.mxu0 0.0
    %537 = vmatpush1.msra.mxu0 %v493
    %538 = vmatprep.subr.mxu0 0.0
    %539 = vmatpush1.msra.mxu0 %v491
    %540 = vmatprep.subr.mxu0 0.0
    %541 = vmatpush2.msra.mxu0 0.0
    %542 = vmatprep.subr.mxu0 0.0
    %543 = vmatpush2.msra.mxu0 0.0
    %544 = vmatprep.subr.mxu0 0.0
    %545 = vmatpush2.msra.mxu0 0.0
    %546 = vmatprep.subr.mxu0 0.0
    %547 = vmatpush2.msra.mxu0 0.0
    %548 = vmatprep.subr.mxu0 0.0
    %549 = vmatpush2.msra.mxu0 0.0
    %550 = vmatprep.subr.mxu0 0.0
    %551 = vmatpush2.msra.mxu0 0.0
    %552 = vmatprep.subr.mxu0 0.0
    %553 = vmatpush2.msra.mxu0 0.0
    %554 = vmatprep.subr.mxu0 0.0
    %555 = vmatpush2.msra.mxu0 0.0
    %556 = vmatprep.subr.mxu0 0.0
    %557 = vmatpush2.msra.mxu0 0.0
    %558 = vmatprep.subr.mxu0 0.0
    %559 = vmatpush2.msra.mxu0 0.0
    %560 = vmatprep.subr.mxu0 0.0
    %561 = vmatpush2.msra.mxu0 0.0
    %562 = vmatprep.subr.mxu0 0.0
    %563 = vmatpush2.msra.mxu0 0.0
    %564 = vmatprep.subr.mxu0 0.0
    %565 = vmatpush2.msra.mxu0 0.0
    %566 = vmatprep.subr.mxu0 0.0
    %567 = vmatpush2.msra.mxu0 0.0
    %568 = vmatprep.subr.mxu0 0.0
    %569 = vmatpush2.msra.mxu0 0.0
    %570 = vmatprep.subr.mxu0 0.0
    %571 = vmatpush2.msra.mxu0 0.0
    %572 = vmatprep.mubr.f32.mxu0 0.0
    %573 = vmatmul.mubr.f32.gmra.mxu0 %v497
    %v574 = vpop.f32.mrf.mxu0
    %v575 = vadd.f32 0.0, %v574
    %v576 = vpop.f32.mrf.mxu0
    %577 = vmatprep.mubr.f32.mxu0 0.0
    %578 = vmatmul.mubr.f32.gmra.mxu0 %v500
    %v579 = vpop.f32.mrf.mxu0
    %v580 = vadd.f32 0.0, %v579
    %v581 = vpop.f32.mrf.mxu0
    %582 = vmatprep.mubr.f32.mxu0 0.0
    %583 = vmatmul.mubr.f32.gmra.mxu0 %v503
    %v584 = vpop.f32.mrf.mxu0
    %v585 = vadd.f32 0.0, %v584
    %v586 = vpop.f32.mrf.mxu0
    %587 = vmatprep.mubr.f32.mxu0 0.0
    %588 = vmatmul.mubr.f32.gmra.mxu0 %v506
    %v589 = vpop.f32.mrf.mxu0
    %v590 = vadd.f32 0.0, %v589
    %v591 = vpop.f32.mrf.mxu0
    %592 = vdwg.mxu0
    %v593 = vadd.f32 %v481, %v575
    %v594 = vadd.f32 %v482, %v580
    %v595 = vadd.f32 %v483, %v585
    %v596 = vadd.f32 %v484, %v590
    %s597 = scalar_lea.vmem %s3, 128
    %v598 = vld [vmem:[%s597] sm:$0xff]
    %v599 = vld [vmem:[%s597 + $0x8] sm:$0xff]
    %v600 = vld [vmem:[%s597 + $0x10] sm:$0xff]
    %v601 = vld [vmem:[%s597 + $0x18] sm:$0xff]
    %602 = vrot.lane.b32.xlu0 %v163, 120
    %v603 = vpop.permute.xlu0 %602
    %604 = vrot.lane.b32.xlu0 %v164, 120
    %v605 = vpop.permute.xlu0 %604
    %v609 = vsel %vm178, %v598, 0
    %v612 = vsel %vm178, %v599, 0
    %v615 = vsel %vm178, %v600, 0
    %v618 = vsel %vm178, %v601, 0
    %620 = vmatprep.subr.mxu0 0.0
    %621 = vmatpush1.msra.mxu0 0.0
    %622 = vmatprep.subr.mxu0 0.0
    %623 = vmatpush1.msra.mxu0 0.0
    %624 = vmatprep.subr.mxu0 0.0
    %625 = vmatpush1.msra.mxu0 0.0
    %626 = vmatprep.subr.mxu0 0.0
    %627 = vmatpush1.msra.mxu0 0.0
    %628 = vmatprep.subr.mxu0 0.0
    %629 = vmatpush1.msra.mxu0 0.0
    %630 = vmatprep.subr.mxu0 0.0
    %631 = vmatpush1.msra.mxu0 0.0
    %632 = vmatprep.subr.mxu0 0.0
    %633 = vmatpush1.msra.mxu0 0.0
    %634 = vmatprep.subr.mxu0 0.0
    %635 = vmatpush1.msra.mxu0 0.0
    %636 = vmatprep.subr.mxu0 0.0
    %637 = vmatpush1.msra.mxu0 0.0
    %638 = vmatprep.subr.mxu0 0.0
    %639 = vmatpush1.msra.mxu0 0.0
    %640 = vmatprep.subr.mxu0 0.0
    %641 = vmatpush1.msra.mxu0 0.0
    %642 = vmatprep.subr.mxu0 0.0
    %643 = vmatpush1.msra.mxu0 0.0
    %644 = vmatprep.subr.mxu0 0.0
    %645 = vmatpush1.msra.mxu0 0.0
    %646 = vmatprep.subr.mxu0 0.0
    %647 = vmatpush1.msra.mxu0 0.0
    %648 = vmatprep.subr.mxu0 0.0
    %649 = vmatpush1.msra.mxu0 %v605
    %650 = vmatprep.subr.mxu0 0.0
    %651 = vmatpush1.msra.mxu0 %v603
    %652 = vmatprep.subr.mxu0 0.0
    %653 = vmatpush2.msra.mxu0 0.0
    %654 = vmatprep.subr.mxu0 0.0
    %655 = vmatpush2.msra.mxu0 0.0
    %656 = vmatprep.subr.mxu0 0.0
    %657 = vmatpush2.msra.mxu0 0.0
    %658 = vmatprep.subr.mxu0 0.0
    %659 = vmatpush2.msra.mxu0 0.0
    %660 = vmatprep.subr.mxu0 0.0
    %661 = vmatpush2.msra.mxu0 0.0
    %662 = vmatprep.subr.mxu0 0.0
    %663 = vmatpush2.msra.mxu0 0.0
    %664 = vmatprep.subr.mxu0 0.0
    %665 = vmatpush2.msra.mxu0 0.0
    %666 = vmatprep.subr.mxu0 0.0
    %667 = vmatpush2.msra.mxu0 0.0
    %668 = vmatprep.subr.mxu0 0.0
    %669 = vmatpush2.msra.mxu0 0.0
    %670 = vmatprep.subr.mxu0 0.0
    %671 = vmatpush2.msra.mxu0 0.0
    %672 = vmatprep.subr.mxu0 0.0
    %673 = vmatpush2.msra.mxu0 0.0
    %674 = vmatprep.subr.mxu0 0.0
    %675 = vmatpush2.msra.mxu0 0.0
    %676 = vmatprep.subr.mxu0 0.0
    %677 = vmatpush2.msra.mxu0 0.0
    %678 = vmatprep.subr.mxu0 0.0
    %679 = vmatpush2.msra.mxu0 0.0
    %680 = vmatprep.subr.mxu0 0.0
    %681 = vmatpush2.msra.mxu0 0.0
    %682 = vmatprep.subr.mxu0 0.0
    %683 = vmatpush2.msra.mxu0 0.0
    %684 = vmatprep.mubr.f32.mxu0 0.0
    %685 = vmatmul.mubr.f32.gmra.mxu0 %v609
    %v686 = vpop.f32.mrf.mxu0
    %v687 = vadd.f32 0.0, %v686
    %v688 = vpop.f32.mrf.mxu0
    %689 = vmatprep.mubr.f32.mxu0 0.0
    %690 = vmatmul.mubr.f32.gmra.mxu0 %v612
    %v691 = vpop.f32.mrf.mxu0
    %v692 = vadd.f32 0.0, %v691
    %v693 = vpop.f32.mrf.mxu0
    %694 = vmatprep.mubr.f32.mxu0 0.0
    %695 = vmatmul.mubr.f32.gmra.mxu0 %v615
    %v696 = vpop.f32.mrf.mxu0
    %v697 = vadd.f32 0.0, %v696
    %v698 = vpop.f32.mrf.mxu0
    %699 = vmatprep.mubr.f32.mxu0 0.0
    %700 = vmatmul.mubr.f32.gmra.mxu0 %v618
    %v701 = vpop.f32.mrf.mxu0
    %v702 = vadd.f32 0.0, %v701
    %v703 = vpop.f32.mrf.mxu0
    %704 = vdwg.mxu0
    %v705 = vadd.f32 %v593, %v687
    %v706 = vadd.f32 %v594, %v692
    %v707 = vadd.f32 %v595, %v697
    %v708 = vadd.f32 %v596, %v702
    %s709 = scalar_lea.vmem %s3, 160
    %v710 = vld [vmem:[%s709] sm:$0xff]
    %v711 = vld [vmem:[%s709 + $0x8] sm:$0xff]
    %v712 = vld [vmem:[%s709 + $0x10] sm:$0xff]
    %v713 = vld [vmem:[%s709 + $0x18] sm:$0xff]
    %714 = vrot.lane.b32.xlu0 %v163, 118
    %v715 = vpop.permute.xlu0 %714
    %716 = vrot.lane.b32.xlu0 %v164, 118
    %v717 = vpop.permute.xlu0 %716
    %v721 = vsel %vm178, %v710, 0
    %v724 = vsel %vm178, %v711, 0
    %v727 = vsel %vm178, %v712, 0
    %v730 = vsel %vm178, %v713, 0
    %732 = vmatprep.subr.mxu0 0.0
    %733 = vmatpush1.msra.mxu0 0.0
    %734 = vmatprep.subr.mxu0 0.0
    %735 = vmatpush1.msra.mxu0 0.0
    %736 = vmatprep.subr.mxu0 0.0
    %737 = vmatpush1.msra.mxu0 0.0
    %738 = vmatprep.subr.mxu0 0.0
    %739 = vmatpush1.msra.mxu0 0.0
    %740 = vmatprep.subr.mxu0 0.0
    %741 = vmatpush1.msra.mxu0 0.0
    %742 = vmatprep.subr.mxu0 0.0
    %743 = vmatpush1.msra.mxu0 0.0
    %744 = vmatprep.subr.mxu0 0.0
    %745 = vmatpush1.msra.mxu0 0.0
    %746 = vmatprep.subr.mxu0 0.0
    %747 = vmatpush1.msra.mxu0 0.0
    %748 = vmatprep.subr.mxu0 0.0
    %749 = vmatpush1.msra.mxu0 0.0
    %750 = vmatprep.subr.mxu0 0.0
    %751 = vmatpush1.msra.mxu0 0.0
    %752 = vmatprep.subr.mxu0 0.0
    %753 = vmatpush1.msra.mxu0 0.0
    %754 = vmatprep.subr.mxu0 0.0
    %755 = vmatpush1.msra.mxu0 0.0
    %756 = vmatprep.subr.mxu0 0.0
    %757 = vmatpush1.msra.mxu0 0.0
    %758 = vmatprep.subr.mxu0 0.0
    %759 = vmatpush1.msra.mxu0 0.0
    %760 = vmatprep.subr.mxu0 0.0
    %761 = vmatpush1.msra.mxu0 %v717
    %762 = vmatprep.subr.mxu0 0.0
    %763 = vmatpush1.msra.mxu0 %v715
    %764 = vmatprep.subr.mxu0 0.0
    %765 = vmatpush2.msra.mxu0 0.0
    %766 = vmatprep.subr.mxu0 0.0
    %767 = vmatpush2.msra.mxu0 0.0
    %768 = vmatprep.subr.mxu0 0.0
    %769 = vmatpush2.msra.mxu0 0.0
    %770 = vmatprep.subr.mxu0 0.0
    %771 = vmatpush2.msra.mxu0 0.0
    %772 = vmatprep.subr.mxu0 0.0
    %773 = vmatpush2.msra.mxu0 0.0
    %774 = vmatprep.subr.mxu0 0.0
    %775 = vmatpush2.msra.mxu0 0.0
    %776 = vmatprep.subr.mxu0 0.0
    %777 = vmatpush2.msra.mxu0 0.0
    %778 = vmatprep.subr.mxu0 0.0
    %779 = vmatpush2.msra.mxu0 0.0
    %780 = vmatprep.subr.mxu0 0.0
    %781 = vmatpush2.msra.mxu0 0.0
    %782 = vmatprep.subr.mxu0 0.0
    %783 = vmatpush2.msra.mxu0 0.0
    %784 = vmatprep.subr.mxu0 0.0
    %785 = vmatpush2.msra.mxu0 0.0
    %786 = vmatprep.subr.mxu0 0.0
    %787 = vmatpush2.msra.mxu0 0.0
    %788 = vmatprep.subr.mxu0 0.0
    %789 = vmatpush2.msra.mxu0 0.0
    %790 = vmatprep.subr.mxu0 0.0
    %791 = vmatpush2.msra.mxu0 0.0
    %792 = vmatprep.subr.mxu0 0.0
    %793 = vmatpush2.msra.mxu0 0.0
    %794 = vmatprep.subr.mxu0 0.0
    %795 = vmatpush2.msra.mxu0 0.0
    %796 = vmatprep.mubr.f32.mxu0 0.0
    %797 = vmatmul.mubr.f32.gmra.mxu0 %v721
    %v798 = vpop.f32.mrf.mxu0
    %v799 = vadd.f32 0.0, %v798
    %v800 = vpop.f32.mrf.mxu0
    %801 = vmatprep.mubr.f32.mxu0 0.0
    %802 = vmatmul.mubr.f32.gmra.mxu0 %v724
    %v803 = vpop.f32.mrf.mxu0
    %v804 = vadd.f32 0.0, %v803
    %v805 = vpop.f32.mrf.mxu0
    %806 = vmatprep.mubr.f32.mxu0 0.0
    %807 = vmatmul.mubr.f32.gmra.mxu0 %v727
    %v808 = vpop.f32.mrf.mxu0
    %v809 = vadd.f32 0.0, %v808
    %v810 = vpop.f32.mrf.mxu0
    %811 = vmatprep.mubr.f32.mxu0 0.0
    %812 = vmatmul.mubr.f32.gmra.mxu0 %v730
    %v813 = vpop.f32.mrf.mxu0
    %v814 = vadd.f32 0.0, %v813
    %v815 = vpop.f32.mrf.mxu0
    %816 = vdwg.mxu0
    %v817 = vadd.f32 %v705, %v799
    %v818 = vadd.f32 %v706, %v804
    %v819 = vadd.f32 %v707, %v809
    %v820 = vadd.f32 %v708, %v814
    %s821 = scalar_lea.vmem %s3, 192
    %v822 = vld [vmem:[%s821] sm:$0xff]
    %v823 = vld [vmem:[%s821 + $0x8] sm:$0xff]
    %v824 = vld [vmem:[%s821 + $0x10] sm:$0xff]
    %v825 = vld [vmem:[%s821 + $0x18] sm:$0xff]
    %826 = vrot.lane.b32.xlu0 %v163, 116
    %v827 = vpop.permute.xlu0 %826
    %828 = vrot.lane.b32.xlu0 %v164, 116
    %v829 = vpop.permute.xlu0 %828
    %v833 = vsel %vm178, %v822, 0
    %v836 = vsel %vm178, %v823, 0
    %v839 = vsel %vm178, %v824, 0
    %v842 = vsel %vm178, %v825, 0
    %844 = vmatprep.subr.mxu0 0.0
    %845 = vmatpush1.msra.mxu0 0.0
    %846 = vmatprep.subr.mxu0 0.0
    %847 = vmatpush1.msra.mxu0 0.0
    %848 = vmatprep.subr.mxu0 0.0
    %849 = vmatpush1.msra.mxu0 0.0
    %850 = vmatprep.subr.mxu0 0.0
    %851 = vmatpush1.msra.mxu0 0.0
    %852 = vmatprep.subr.mxu0 0.0
    %853 = vmatpush1.msra.mxu0 0.0
    %854 = vmatprep.subr.mxu0 0.0
    %855 = vmatpush1.msra.mxu0 0.0
    %856 = vmatprep.subr.mxu0 0.0
    %857 = vmatpush1.msra.mxu0 0.0
    %858 = vmatprep.subr.mxu0 0.0
    %859 = vmatpush1.msra.mxu0 0.0
    %860 = vmatprep.subr.mxu0 0.0
    %861 = vmatpush1.msra.mxu0 0.0
    %862 = vmatprep.subr.mxu0 0.0
    %863 = vmatpush1.msra.mxu0 0.0
    %864 = vmatprep.subr.mxu0 0.0
    %865 = vmatpush1.msra.mxu0 0.0
    %866 = vmatprep.subr.mxu0 0.0
    %867 = vmatpush1.msra.mxu0 0.0
    %868 = vmatprep.subr.mxu0 0.0
    %869 = vmatpush1.msra.mxu0 0.0
    %870 = vmatprep.subr.mxu0 0.0
    %871 = vmatpush1.msra.mxu0 0.0
    %872 = vmatprep.subr.mxu0 0.0
    %873 = vmatpush1.msra.mxu0 %v829
    %874 = vmatprep.subr.mxu0 0.0
    %875 = vmatpush1.msra.mxu0 %v827
    %876 = vmatprep.subr.mxu0 0.0
    %877 = vmatpush2.msra.mxu0 0.0
    %878 = vmatprep.subr.mxu0 0.0
    %879 = vmatpush2.msra.mxu0 0.0
    %880 = vmatprep.subr.mxu0 0.0
    %881 = vmatpush2.msra.mxu0 0.0
    %882 = vmatprep.subr.mxu0 0.0
    %883 = vmatpush2.msra.mxu0 0.0
    %884 = vmatprep.subr.mxu0 0.0
    %885 = vmatpush2.msra.mxu0 0.0
    %886 = vmatprep.subr.mxu0 0.0
    %887 = vmatpush2.msra.mxu0 0.0
    %888 = vmatprep.subr.mxu0 0.0
    %889 = vmatpush2.msra.mxu0 0.0
    %890 = vmatprep.subr.mxu0 0.0
    %891 = vmatpush2.msra.mxu0 0.0
    %892 = vmatprep.subr.mxu0 0.0
    %893 = vmatpush2.msra.mxu0 0.0
    %894 = vmatprep.subr.mxu0 0.0
    %895 = vmatpush2.msra.mxu0 0.0
    %896 = vmatprep.subr.mxu0 0.0
    %897 = vmatpush2.msra.mxu0 0.0
    %898 = vmatprep.subr.mxu0 0.0
    %899 = vmatpush2.msra.mxu0 0.0
    %900 = vmatprep.subr.mxu0 0.0
    %901 = vmatpush2.msra.mxu0 0.0
    %902 = vmatprep.subr.mxu0 0.0
    %903 = vmatpush2.msra.mxu0 0.0
    %904 = vmatprep.subr.mxu0 0.0
    %905 = vmatpush2.msra.mxu0 0.0
    %906 = vmatprep.subr.mxu0 0.0
    %907 = vmatpush2.msra.mxu0 0.0
    %908 = vmatprep.mubr.f32.mxu0 0.0
    %909 = vmatmul.mubr.f32.gmra.mxu0 %v833
    %v910 = vpop.f32.mrf.mxu0
    %v911 = vadd.f32 0.0, %v910
    %v912 = vpop.f32.mrf.mxu0
    %913 = vmatprep.mubr.f32.mxu0 0.0
    %914 = vmatmul.mubr.f32.gmra.mxu0 %v836
    %v915 = vpop.f32.mrf.mxu0
    %v916 = vadd.f32 0.0, %v915
    %v917 = vpop.f32.mrf.mxu0
    %918 = vmatprep.mubr.f32.mxu0 0.0
    %919 = vmatmul.mubr.f32.gmra.mxu0 %v839
    %v920 = vpop.f32.mrf.mxu0
    %v921 = vadd.f32 0.0, %v920
    %v922 = vpop.f32.mrf.mxu0
    %923 = vmatprep.mubr.f32.mxu0 0.0
    %924 = vmatmul.mubr.f32.gmra.mxu0 %v842
    %v925 = vpop.f32.mrf.mxu0
    %v926 = vadd.f32 0.0, %v925
    %v927 = vpop.f32.mrf.mxu0
    %928 = vdwg.mxu0
    %v929 = vadd.f32 %v817, %v911
    %v930 = vadd.f32 %v818, %v916
    %v931 = vadd.f32 %v819, %v921
    %v932 = vadd.f32 %v820, %v926
    %s933 = scalar_lea.vmem %s3, 224
    %v934 = vld [vmem:[%s933] sm:$0xff]
    %v935 = vld [vmem:[%s933 + $0x8] sm:$0xff]
    %v936 = vld [vmem:[%s933 + $0x10] sm:$0xff]
    %v937 = vld [vmem:[%s933 + $0x18] sm:$0xff]
    %938 = vrot.lane.b32.xlu0 %v163, 114
    %v939 = vpop.permute.xlu0 %938
    %940 = vrot.lane.b32.xlu0 %v164, 114
    %v941 = vpop.permute.xlu0 %940
    %v945 = vsel %vm178, %v934, 0
    %v948 = vsel %vm178, %v935, 0
    %v951 = vsel %vm178, %v936, 0
    %v954 = vsel %vm178, %v937, 0
    %956 = vmatprep.subr.mxu0 0.0
    %957 = vmatpush1.msra.mxu0 0.0
    %958 = vmatprep.subr.mxu0 0.0
    %959 = vmatpush1.msra.mxu0 0.0
    %960 = vmatprep.subr.mxu0 0.0
    %961 = vmatpush1.msra.mxu0 0.0
    %962 = vmatprep.subr.mxu0 0.0
    %963 = vmatpush1.msra.mxu0 0.0
    %964 = vmatprep.subr.mxu0 0.0
    %965 = vmatpush1.msra.mxu0 0.0
    %966 = vmatprep.subr.mxu0 0.0
    %967 = vmatpush1.msra.mxu0 0.0
    %968 = vmatprep.subr.mxu0 0.0
    %969 = vmatpush1.msra.mxu0 0.0
    %970 = vmatprep.subr.mxu0 0.0
    %971 = vmatpush1.msra.mxu0 0.0
    %972 = vmatprep.subr.mxu0 0.0
    %973 = vmatpush1.msra.mxu0 0.0
    %974 = vmatprep.subr.mxu0 0.0
    %975 = vmatpush1.msra.mxu0 0.0
    %976 = vmatprep.subr.mxu0 0.0
    %977 = vmatpush1.msra.mxu0 0.0
    %978 = vmatprep.subr.mxu0 0.0
    %979 = vmatpush1.msra.mxu0 0.0
    %980 = vmatprep.subr.mxu0 0.0
    %981 = vmatpush1.msra.mxu0 0.0
    %982 = vmatprep.subr.mxu0 0.0
    %983 = vmatpush1.msra.mxu0 0.0
    %984 = vmatprep.subr.mxu0 0.0
    %985 = vmatpush1.msra.mxu0 %v941
    %986 = vmatprep.subr.mxu0 0.0
    %987 = vmatpush1.msra.mxu0 %v939
    %988 = vmatprep.subr.mxu0 0.0
    %989 = vmatpush2.msra.mxu0 0.0
    %990 = vmatprep.subr.mxu0 0.0
    %991 = vmatpush2.msra.mxu0 0.0
    %992 = vmatprep.subr.mxu0 0.0
    %993 = vmatpush2.msra.mxu0 0.0
    %994 = vmatprep.subr.mxu0 0.0
    %995 = vmatpush2.msra.mxu0 0.0
    %996 = vmatprep.subr.mxu0 0.0
    %997 = vmatpush2.msra.mxu0 0.0
    %998 = vmatprep.subr.mxu0 0.0
    %999 = vmatpush2.msra.mxu0 0.0
    %1000 = vmatprep.subr.mxu0 0.0
    %1001 = vmatpush2.msra.mxu0 0.0
    %1002 = vmatprep.subr.mxu0 0.0
    %1003 = vmatpush2.msra.mxu0 0.0
    %1004 = vmatprep.subr.mxu0 0.0
    %1005 = vmatpush2.msra.mxu0 0.0
    %1006 = vmatprep.subr.mxu0 0.0
    %1007 = vmatpush2.msra.mxu0 0.0
    %1008 = vmatprep.subr.mxu0 0.0
    %1009 = vmatpush2.msra.mxu0 0.0
    %1010 = vmatprep.subr.mxu0 0.0
    %1011 = vmatpush2.msra.mxu0 0.0
    %1012 = vmatprep.subr.mxu0 0.0
    %1013 = vmatpush2.msra.mxu0 0.0
    %1014 = vmatprep.subr.mxu0 0.0
    %1015 = vmatpush2.msra.mxu0 0.0
    %1016 = vmatprep.subr.mxu0 0.0
    %1017 = vmatpush2.msra.mxu0 0.0
    %1018 = vmatprep.subr.mxu0 0.0
    %1019 = vmatpush2.msra.mxu0 0.0
    %1020 = vmatprep.mubr.f32.mxu0 0.0
    %1021 = vmatmul.mubr.f32.gmra.mxu0 %v945
    %v1022 = vpop.f32.mrf.mxu0
    %v1023 = vadd.f32 0.0, %v1022
    %v1024 = vpop.f32.mrf.mxu0
    %1025 = vmatprep.mubr.f32.mxu0 0.0
    %1026 = vmatmul.mubr.f32.gmra.mxu0 %v948
    %v1027 = vpop.f32.mrf.mxu0
    %v1028 = vadd.f32 0.0, %v1027
    %v1029 = vpop.f32.mrf.mxu0
    %1030 = vmatprep.mubr.f32.mxu0 0.0
    %1031 = vmatmul.mubr.f32.gmra.mxu0 %v951
    %v1032 = vpop.f32.mrf.mxu0
    %v1033 = vadd.f32 0.0, %v1032
    %v1034 = vpop.f32.mrf.mxu0
    %1035 = vmatprep.mubr.f32.mxu0 0.0
    %1036 = vmatmul.mubr.f32.gmra.mxu0 %v954
    %v1037 = vpop.f32.mrf.mxu0
    %v1038 = vadd.f32 0.0, %v1037
    %v1039 = vpop.f32.mrf.mxu0
    %1040 = vdwg.mxu0
    %v1041 = vadd.f32 %v929, %v1023
    %v1042 = vadd.f32 %v930, %v1028
    %v1043 = vadd.f32 %v931, %v1033
    %v1044 = vadd.f32 %v932, %v1038
    %s1045 = scalar_lea.vmem %s3, 256
    %v1046 = vld [vmem:[%s1045] sm:$0xff]
    %v1047 = vld [vmem:[%s1045 + $0x8] sm:$0xff]
    %v1048 = vld [vmem:[%s1045 + $0x10] sm:$0xff]
    %v1049 = vld [vmem:[%s1045 + $0x18] sm:$0xff]
    %1050 = vrot.lane.b32.xlu0 %v163, 112
    %v1051 = vpop.permute.xlu0 %1050
    %1052 = vrot.lane.b32.xlu0 %v164, 112
    %v1053 = vpop.permute.xlu0 %1052
    %v1057 = vsel %vm178, %v1046, 0
    %v1060 = vsel %vm178, %v1047, 0
    %v1063 = vsel %vm178, %v1048, 0
    %v1066 = vsel %vm178, %v1049, 0
    %1068 = vmatprep.subr.mxu0 0.0
    %1069 = vmatpush1.msra.mxu0 0.0
    %1070 = vmatprep.subr.mxu0 0.0
    %1071 = vmatpush1.msra.mxu0 0.0
    %1072 = vmatprep.subr.mxu0 0.0
    %1073 = vmatpush1.msra.mxu0 0.0
    %1074 = vmatprep.subr.mxu0 0.0
    %1075 = vmatpush1.msra.mxu0 0.0
    %1076 = vmatprep.subr.mxu0 0.0
    %1077 = vmatpush1.msra.mxu0 0.0
    %1078 = vmatprep.subr.mxu0 0.0
    %1079 = vmatpush1.msra.mxu0 0.0
    %1080 = vmatprep.subr.mxu0 0.0
    %1081 = vmatpush1.msra.mxu0 0.0
    %1082 = vmatprep.subr.mxu0 0.0
    %1083 = vmatpush1.msra.mxu0 0.0
    %1084 = vmatprep.subr.mxu0 0.0
    %1085 = vmatpush1.msra.mxu0 0.0
    %1086 = vmatprep.subr.mxu0 0.0
    %1087 = vmatpush1.msra.mxu0 0.0
    %1088 = vmatprep.subr.mxu0 0.0
    %1089 = vmatpush1.msra.mxu0 0.0
    %1090 = vmatprep.subr.mxu0 0.0
    %1091 = vmatpush1.msra.mxu0 0.0
    %1092 = vmatprep.subr.mxu0 0.0
    %1093 = vmatpush1.msra.mxu0 0.0
    %1094 = vmatprep.subr.mxu0 0.0
    %1095 = vmatpush1.msra.mxu0 0.0
    %1096 = vmatprep.subr.mxu0 0.0
    %1097 = vmatpush1.msra.mxu0 %v1053
    %1098 = vmatprep.subr.mxu0 0.0
    %1099 = vmatpush1.msra.mxu0 %v1051
    %1100 = vmatprep.subr.mxu0 0.0
    %1101 = vmatpush2.msra.mxu0 0.0
    %1102 = vmatprep.subr.mxu0 0.0
    %1103 = vmatpush2.msra.mxu0 0.0
    %1104 = vmatprep.subr.mxu0 0.0
    %1105 = vmatpush2.msra.mxu0 0.0
    %1106 = vmatprep.subr.mxu0 0.0
    %1107 = vmatpush2.msra.mxu0 0.0
    %1108 = vmatprep.subr.mxu0 0.0
    %1109 = vmatpush2.msra.mxu0 0.0
    %1110 = vmatprep.subr.mxu0 0.0
    %1111 = vmatpush2.msra.mxu0 0.0
    %1112 = vmatprep.subr.mxu0 0.0
    %1113 = vmatpush2.msra.mxu0 0.0
    %1114 = vmatprep.subr.mxu0 0.0
    %1115 = vmatpush2.msra.mxu0 0.0
    %1116 = vmatprep.subr.mxu0 0.0
    %1117 = vmatpush2.msra.mxu0 0.0
    %1118 = vmatprep.subr.mxu0 0.0
    %1119 = vmatpush2.msra.mxu0 0.0
    %1120 = vmatprep.subr.mxu0 0.0
    %1121 = vmatpush2.msra.mxu0 0.0
    %1122 = vmatprep.subr.mxu0 0.0
    %1123 = vmatpush2.msra.mxu0 0.0
    %1124 = vmatprep.subr.mxu0 0.0
    %1125 = vmatpush2.msra.mxu0 0.0
    %1126 = vmatprep.subr.mxu0 0.0
    %1127 = vmatpush2.msra.mxu0 0.0
    %1128 = vmatprep.subr.mxu0 0.0
    %1129 = vmatpush2.msra.mxu0 0.0
    %1130 = vmatprep.subr.mxu0 0.0
    %1131 = vmatpush2.msra.mxu0 0.0
    %1132 = vmatprep.mubr.f32.mxu0 0.0
    %1133 = vmatmul.mubr.f32.gmra.mxu0 %v1057
    %v1134 = vpop.f32.mrf.mxu0
    %v1135 = vadd.f32 0.0, %v1134
    %v1136 = vpop.f32.mrf.mxu0
    %1137 = vmatprep.mubr.f32.mxu0 0.0
    %1138 = vmatmul.mubr.f32.gmra.mxu0 %v1060
    %v1139 = vpop.f32.mrf.mxu0
    %v1140 = vadd.f32 0.0, %v1139
    %v1141 = vpop.f32.mrf.mxu0
    %1142 = vmatprep.mubr.f32.mxu0 0.0
    %1143 = vmatmul.mubr.f32.gmra.mxu0 %v1063
    %v1144 = vpop.f32.mrf.mxu0
    %v1145 = vadd.f32 0.0, %v1144
    %v1146 = vpop.f32.mrf.mxu0
    %1147 = vmatprep.mubr.f32.mxu0 0.0
    %1148 = vmatmul.mubr.f32.gmra.mxu0 %v1066
    %v1149 = vpop.f32.mrf.mxu0
    %v1150 = vadd.f32 0.0, %v1149
    %v1151 = vpop.f32.mrf.mxu0
    %1152 = vdwg.mxu0
    %v1153 = vadd.f32 %v1041, %v1135
    %v1154 = vadd.f32 %v1042, %v1140
    %v1155 = vadd.f32 %v1043, %v1145
    %v1156 = vadd.f32 %v1044, %v1150
    %s1157 = scalar_lea.vmem %s3, 288
    %v1158 = vld [vmem:[%s1157] sm:$0xff]
    %v1159 = vld [vmem:[%s1157 + $0x8] sm:$0xff]
    %v1160 = vld [vmem:[%s1157 + $0x10] sm:$0xff]
    %v1161 = vld [vmem:[%s1157 + $0x18] sm:$0xff]
    %1162 = vrot.lane.b32.xlu0 %v163, 110
    %v1163 = vpop.permute.xlu0 %1162
    %1164 = vrot.lane.b32.xlu0 %v164, 110
    %v1165 = vpop.permute.xlu0 %1164
    %v1169 = vsel %vm178, %v1158, 0
    %v1172 = vsel %vm178, %v1159, 0
    %v1175 = vsel %vm178, %v1160, 0
    %v1178 = vsel %vm178, %v1161, 0
    %1180 = vmatprep.subr.mxu0 0.0
    %1181 = vmatpush1.msra.mxu0 0.0
    %1182 = vmatprep.subr.mxu0 0.0
    %1183 = vmatpush1.msra.mxu0 0.0
    %1184 = vmatprep.subr.mxu0 0.0
    %1185 = vmatpush1.msra.mxu0 0.0
    %1186 = vmatprep.subr.mxu0 0.0
    %1187 = vmatpush1.msra.mxu0 0.0
    %1188 = vmatprep.subr.mxu0 0.0
    %1189 = vmatpush1.msra.mxu0 0.0
    %1190 = vmatprep.subr.mxu0 0.0
    %1191 = vmatpush1.msra.mxu0 0.0
    %1192 = vmatprep.subr.mxu0 0.0
    %1193 = vmatpush1.msra.mxu0 0.0
    %1194 = vmatprep.subr.mxu0 0.0
    %1195 = vmatpush1.msra.mxu0 0.0
    %1196 = vmatprep.subr.mxu0 0.0
    %1197 = vmatpush1.msra.mxu0 0.0
    %1198 = vmatprep.subr.mxu0 0.0
    %1199 = vmatpush1.msra.mxu0 0.0
    %1200 = vmatprep.subr.mxu0 0.0
    %1201 = vmatpush1.msra.mxu0 0.0
    %1202 = vmatprep.subr.mxu0 0.0
    %1203 = vmatpush1.msra.mxu0 0.0
    %1204 = vmatprep.subr.mxu0 0.0
    %1205 = vmatpush1.msra.mxu0 0.0
    %1206 = vmatprep.subr.mxu0 0.0
    %1207 = vmatpush1.msra.mxu0 0.0
    %1208 = vmatprep.subr.mxu0 0.0
    %1209 = vmatpush1.msra.mxu0 %v1165
    %1210 = vmatprep.subr.mxu0 0.0
    %1211 = vmatpush1.msra.mxu0 %v1163
    %1212 = vmatprep.subr.mxu0 0.0
    %1213 = vmatpush2.msra.mxu0 0.0
    %1214 = vmatprep.subr.mxu0 0.0
    %1215 = vmatpush2.msra.mxu0 0.0
    %1216 = vmatprep.subr.mxu0 0.0
    %1217 = vmatpush2.msra.mxu0 0.0
    %1218 = vmatprep.subr.mxu0 0.0
    %1219 = vmatpush2.msra.mxu0 0.0
    %1220 = vmatprep.subr.mxu0 0.0
    %1221 = vmatpush2.msra.mxu0 0.0
    %1222 = vmatprep.subr.mxu0 0.0
    %1223 = vmatpush2.msra.mxu0 0.0
    %1224 = vmatprep.subr.mxu0 0.0
    %1225 = vmatpush2.msra.mxu0 0.0
    %1226 = vmatprep.subr.mxu0 0.0
    %1227 = vmatpush2.msra.mxu0 0.0
    %1228 = vmatprep.subr.mxu0 0.0
    %1229 = vmatpush2.msra.mxu0 0.0
    %1230 = vmatprep.subr.mxu0 0.0
    %1231 = vmatpush2.msra.mxu0 0.0
    %1232 = vmatprep.subr.mxu0 0.0
    %1233 = vmatpush2.msra.mxu0 0.0
    %1234 = vmatprep.subr.mxu0 0.0
    %1235 = vmatpush2.msra.mxu0 0.0
    %1236 = vmatprep.subr.mxu0 0.0
    %1237 = vmatpush2.msra.mxu0 0.0
    %1238 = vmatprep.subr.mxu0 0.0
    %1239 = vmatpush2.msra.mxu0 0.0
    %1240 = vmatprep.subr.mxu0 0.0
    %1241 = vmatpush2.msra.mxu0 0.0
    %1242 = vmatprep.subr.mxu0 0.0
    %1243 = vmatpush2.msra.mxu0 0.0
    %1244 = vmatprep.mubr.f32.mxu0 0.0
    %1245 = vmatmul.mubr.f32.gmra.mxu0 %v1169
    %v1246 = vpop.f32.mrf.mxu0
    %v1247 = vadd.f32 0.0, %v1246
    %v1248 = vpop.f32.mrf.mxu0
    %1249 = vmatprep.mubr.f32.mxu0 0.0
    %1250 = vmatmul.mubr.f32.gmra.mxu0 %v1172
    %v1251 = vpop.f32.mrf.mxu0
    %v1252 = vadd.f32 0.0, %v1251
    %v1253 = vpop.f32.mrf.mxu0
    %1254 = vmatprep.mubr.f32.mxu0 0.0
    %1255 = vmatmul.mubr.f32.gmra.mxu0 %v1175
    %v1256 = vpop.f32.mrf.mxu0
    %v1257 = vadd.f32 0.0, %v1256
    %v1258 = vpop.f32.mrf.mxu0
    %1259 = vmatprep.mubr.f32.mxu0 0.0
    %1260 = vmatmul.mubr.f32.gmra.mxu0 %v1178
    %v1261 = vpop.f32.mrf.mxu0
    %v1262 = vadd.f32 0.0, %v1261
    %v1263 = vpop.f32.mrf.mxu0
    %1264 = vdwg.mxu0
    %v1265 = vadd.f32 %v1153, %v1247
    %v1266 = vadd.f32 %v1154, %v1252
    %v1267 = vadd.f32 %v1155, %v1257
    %v1268 = vadd.f32 %v1156, %v1262
    %s1269 = scalar_lea.vmem %s3, 320
    %v1270 = vld [vmem:[%s1269] sm:$0xff]
    %v1271 = vld [vmem:[%s1269 + $0x8] sm:$0xff]
    %v1272 = vld [vmem:[%s1269 + $0x10] sm:$0xff]
    %v1273 = vld [vmem:[%s1269 + $0x18] sm:$0xff]
    %1274 = vrot.lane.b32.xlu0 %v163, 108
    %v1275 = vpop.permute.xlu0 %1274
    %1276 = vrot.lane.b32.xlu0 %v164, 108
    %v1277 = vpop.permute.xlu0 %1276
    %v1281 = vsel %vm178, %v1270, 0
    %v1284 = vsel %vm178, %v1271, 0
    %v1287 = vsel %vm178, %v1272, 0
    %v1290 = vsel %vm178, %v1273, 0
    %1292 = vmatprep.subr.mxu0 0.0
    %1293 = vmatpush1.msra.mxu0 0.0
    %1294 = vmatprep.subr.mxu0 0.0
    %1295 = vmatpush1.msra.mxu0 0.0
    %1296 = vmatprep.subr.mxu0 0.0
    %1297 = vmatpush1.msra.mxu0 0.0
    %1298 = vmatprep.subr.mxu0 0.0
    %1299 = vmatpush1.msra.mxu0 0.0
    %1300 = vmatprep.subr.mxu0 0.0
    %1301 = vmatpush1.msra.mxu0 0.0
    %1302 = vmatprep.subr.mxu0 0.0
    %1303 = vmatpush1.msra.mxu0 0.0
    %1304 = vmatprep.subr.mxu0 0.0
    %1305 = vmatpush1.msra.mxu0 0.0
    %1306 = vmatprep.subr.mxu0 0.0
    %1307 = vmatpush1.msra.mxu0 0.0
    %1308 = vmatprep.subr.mxu0 0.0
    %1309 = vmatpush1.msra.mxu0 0.0
    %1310 = vmatprep.subr.mxu0 0.0
    %1311 = vmatpush1.msra.mxu0 0.0
    %1312 = vmatprep.subr.mxu0 0.0
    %1313 = vmatpush1.msra.mxu0 0.0
    %1314 = vmatprep.subr.mxu0 0.0
    %1315 = vmatpush1.msra.mxu0 0.0
    %1316 = vmatprep.subr.mxu0 0.0
    %1317 = vmatpush1.msra.mxu0 0.0
    %1318 = vmatprep.subr.mxu0 0.0
    %1319 = vmatpush1.msra.mxu0 0.0
    %1320 = vmatprep.subr.mxu0 0.0
    %1321 = vmatpush1.msra.mxu0 %v1277
    %1322 = vmatprep.subr.mxu0 0.0
    %1323 = vmatpush1.msra.mxu0 %v1275
    %1324 = vmatprep.subr.mxu0 0.0
    %1325 = vmatpush2.msra.mxu0 0.0
    %1326 = vmatprep.subr.mxu0 0.0
    %1327 = vmatpush2.msra.mxu0 0.0
    %1328 = vmatprep.subr.mxu0 0.0
    %1329 = vmatpush2.msra.mxu0 0.0
    %1330 = vmatprep.subr.mxu0 0.0
    %1331 = vmatpush2.msra.mxu0 0.0
    %1332 = vmatprep.subr.mxu0 0.0
    %1333 = vmatpush2.msra.mxu0 0.0
    %1334 = vmatprep.subr.mxu0 0.0
    %1335 = vmatpush2.msra.mxu0 0.0
    %1336 = vmatprep.subr.mxu0 0.0
    %1337 = vmatpush2.msra.mxu0 0.0
    %1338 = vmatprep.subr.mxu0 0.0
    %1339 = vmatpush2.msra.mxu0 0.0
    %1340 = vmatprep.subr.mxu0 0.0
    %1341 = vmatpush2.msra.mxu0 0.0
    %1342 = vmatprep.subr.mxu0 0.0
    %1343 = vmatpush2.msra.mxu0 0.0
    %1344 = vmatprep.subr.mxu0 0.0
    %1345 = vmatpush2.msra.mxu0 0.0
    %1346 = vmatprep.subr.mxu0 0.0
    %1347 = vmatpush2.msra.mxu0 0.0
    %1348 = vmatprep.subr.mxu0 0.0
    %1349 = vmatpush2.msra.mxu0 0.0
    %1350 = vmatprep.subr.mxu0 0.0
    %1351 = vmatpush2.msra.mxu0 0.0
    %1352 = vmatprep.subr.mxu0 0.0
    %1353 = vmatpush2.msra.mxu0 0.0
    %1354 = vmatprep.subr.mxu0 0.0
    %1355 = vmatpush2.msra.mxu0 0.0
    %1356 = vmatprep.mubr.f32.mxu0 0.0
    %1357 = vmatmul.mubr.f32.gmra.mxu0 %v1281
    %v1358 = vpop.f32.mrf.mxu0
    %v1359 = vadd.f32 0.0, %v1358
    %v1360 = vpop.f32.mrf.mxu0
    %1361 = vmatprep.mubr.f32.mxu0 0.0
    %1362 = vmatmul.mubr.f32.gmra.mxu0 %v1284
    %v1363 = vpop.f32.mrf.mxu0
    %v1364 = vadd.f32 0.0, %v1363
    %v1365 = vpop.f32.mrf.mxu0
    %1366 = vmatprep.mubr.f32.mxu0 0.0
    %1367 = vmatmul.mubr.f32.gmra.mxu0 %v1287
    %v1368 = vpop.f32.mrf.mxu0
    %v1369 = vadd.f32 0.0, %v1368
    %v1370 = vpop.f32.mrf.mxu0
    %1371 = vmatprep.mubr.f32.mxu0 0.0
    %1372 = vmatmul.mubr.f32.gmra.mxu0 %v1290
    %v1373 = vpop.f32.mrf.mxu0
    %v1374 = vadd.f32 0.0, %v1373
    %v1375 = vpop.f32.mrf.mxu0
    %1376 = vdwg.mxu0
    %v1377 = vadd.f32 %v1265, %v1359
    %v1378 = vadd.f32 %v1266, %v1364
    %v1379 = vadd.f32 %v1267, %v1369
    %v1380 = vadd.f32 %v1268, %v1374
    %s1381 = scalar_lea.vmem %s3, 352
    %v1382 = vld [vmem:[%s1381] sm:$0xff]
    %v1383 = vld [vmem:[%s1381 + $0x8] sm:$0xff]
    %v1384 = vld [vmem:[%s1381 + $0x10] sm:$0xff]
    %v1385 = vld [vmem:[%s1381 + $0x18] sm:$0xff]
    %1386 = vrot.lane.b32.xlu0 %v163, 106
    %v1387 = vpop.permute.xlu0 %1386
    %1388 = vrot.lane.b32.xlu0 %v164, 106
    %v1389 = vpop.permute.xlu0 %1388
    %v1393 = vsel %vm178, %v1382, 0
    %v1396 = vsel %vm178, %v1383, 0
    %v1399 = vsel %vm178, %v1384, 0
    %v1402 = vsel %vm178, %v1385, 0
    %1404 = vmatprep.subr.mxu0 0.0
    %1405 = vmatpush1.msra.mxu0 0.0
    %1406 = vmatprep.subr.mxu0 0.0
    %1407 = vmatpush1.msra.mxu0 0.0
    %1408 = vmatprep.subr.mxu0 0.0
    %1409 = vmatpush1.msra.mxu0 0.0
    %1410 = vmatprep.subr.mxu0 0.0
    %1411 = vmatpush1.msra.mxu0 0.0
    %1412 = vmatprep.subr.mxu0 0.0
    %1413 = vmatpush1.msra.mxu0 0.0
    %1414 = vmatprep.subr.mxu0 0.0
    %1415 = vmatpush1.msra.mxu0 0.0
    %1416 = vmatprep.subr.mxu0 0.0
    %1417 = vmatpush1.msra.mxu0 0.0
    %1418 = vmatprep.subr.mxu0 0.0
    %1419 = vmatpush1.msra.mxu0 0.0
    %1420 = vmatprep.subr.mxu0 0.0
    %1421 = vmatpush1.msra.mxu0 0.0
    %1422 = vmatprep.subr.mxu0 0.0
    %1423 = vmatpush1.msra.mxu0 0.0
    %1424 = vmatprep.subr.mxu0 0.0
    %1425 = vmatpush1.msra.mxu0 0.0
    %1426 = vmatprep.subr.mxu0 0.0
    %1427 = vmatpush1.msra.mxu0 0.0
    %1428 = vmatprep.subr.mxu0 0.0
    %1429 = vmatpush1.msra.mxu0 0.0
    %1430 = vmatprep.subr.mxu0 0.0
    %1431 = vmatpush1.msra.mxu0 0.0
    %1432 = vmatprep.subr.mxu0 0.0
    %1433 = vmatpush1.msra.mxu0 %v1389
    %1434 = vmatprep.subr.mxu0 0.0
    %1435 = vmatpush1.msra.mxu0 %v1387
    %1436 = vmatprep.subr.mxu0 0.0
    %1437 = vmatpush2.msra.mxu0 0.0
    %1438 = vmatprep.subr.mxu0 0.0
    %1439 = vmatpush2.msra.mxu0 0.0
    %1440 = vmatprep.subr.mxu0 0.0
    %1441 = vmatpush2.msra.mxu0 0.0
    %1442 = vmatprep.subr.mxu0 0.0
    %1443 = vmatpush2.msra.mxu0 0.0
    %1444 = vmatprep.subr.mxu0 0.0
    %1445 = vmatpush2.msra.mxu0 0.0
    %1446 = vmatprep.subr.mxu0 0.0
    %1447 = vmatpush2.msra.mxu0 0.0
    %1448 = vmatprep.subr.mxu0 0.0
    %1449 = vmatpush2.msra.mxu0 0.0
    %1450 = vmatprep.subr.mxu0 0.0
    %1451 = vmatpush2.msra.mxu0 0.0
    %1452 = vmatprep.subr.mxu0 0.0
    %1453 = vmatpush2.msra.mxu0 0.0
    %1454 = vmatprep.subr.mxu0 0.0
    %1455 = vmatpush2.msra.mxu0 0.0
    %1456 = vmatprep.subr.mxu0 0.0
    %1457 = vmatpush2.msra.mxu0 0.0
    %1458 = vmatprep.subr.mxu0 0.0
    %1459 = vmatpush2.msra.mxu0 0.0
    %1460 = vmatprep.subr.mxu0 0.0
    %1461 = vmatpush2.msra.mxu0 0.0
    %1462 = vmatprep.subr.mxu0 0.0
    %1463 = vmatpush2.msra.mxu0 0.0
    %1464 = vmatprep.subr.mxu0 0.0
    %1465 = vmatpush2.msra.mxu0 0.0
    %1466 = vmatprep.subr.mxu0 0.0
    %1467 = vmatpush2.msra.mxu0 0.0
    %1468 = vmatprep.mubr.f32.mxu0 0.0
    %1469 = vmatmul.mubr.f32.gmra.mxu0 %v1393
    %v1470 = vpop.f32.mrf.mxu0
    %v1471 = vadd.f32 0.0, %v1470
    %v1472 = vpop.f32.mrf.mxu0
    %1473 = vmatprep.mubr.f32.mxu0 0.0
    %1474 = vmatmul.mubr.f32.gmra.mxu0 %v1396
    %v1475 = vpop.f32.mrf.mxu0
    %v1476 = vadd.f32 0.0, %v1475
    %v1477 = vpop.f32.mrf.mxu0
    %1478 = vmatprep.mubr.f32.mxu0 0.0
    %1479 = vmatmul.mubr.f32.gmra.mxu0 %v1399
    %v1480 = vpop.f32.mrf.mxu0
    %v1481 = vadd.f32 0.0, %v1480
    %v1482 = vpop.f32.mrf.mxu0
    %1483 = vmatprep.mubr.f32.mxu0 0.0
    %1484 = vmatmul.mubr.f32.gmra.mxu0 %v1402
    %v1485 = vpop.f32.mrf.mxu0
    %v1486 = vadd.f32 0.0, %v1485
    %v1487 = vpop.f32.mrf.mxu0
    %1488 = vdwg.mxu0
    %v1489 = vadd.f32 %v1377, %v1471
    %v1490 = vadd.f32 %v1378, %v1476
    %v1491 = vadd.f32 %v1379, %v1481
    %v1492 = vadd.f32 %v1380, %v1486
    %s1493 = scalar_lea.vmem %s3, 384
    %v1494 = vld [vmem:[%s1493] sm:$0xff]
    %v1495 = vld [vmem:[%s1493 + $0x8] sm:$0xff]
    %v1496 = vld [vmem:[%s1493 + $0x10] sm:$0xff]
    %v1497 = vld [vmem:[%s1493 + $0x18] sm:$0xff]
    %1498 = vrot.lane.b32.xlu0 %v163, 104
    %v1499 = vpop.permute.xlu0 %1498
    %1500 = vrot.lane.b32.xlu0 %v164, 104
    %v1501 = vpop.permute.xlu0 %1500
    %v1505 = vsel %vm178, %v1494, 0
    %v1508 = vsel %vm178, %v1495, 0
    %v1511 = vsel %vm178, %v1496, 0
    %v1514 = vsel %vm178, %v1497, 0
    %1516 = vmatprep.subr.mxu0 0.0
    %1517 = vmatpush1.msra.mxu0 0.0
    %1518 = vmatprep.subr.mxu0 0.0
    %1519 = vmatpush1.msra.mxu0 0.0
    %1520 = vmatprep.subr.mxu0 0.0
    %1521 = vmatpush1.msra.mxu0 0.0
    %1522 = vmatprep.subr.mxu0 0.0
    %1523 = vmatpush1.msra.mxu0 0.0
    %1524 = vmatprep.subr.mxu0 0.0
    %1525 = vmatpush1.msra.mxu0 0.0
    %1526 = vmatprep.subr.mxu0 0.0
    %1527 = vmatpush1.msra.mxu0 0.0
    %1528 = vmatprep.subr.mxu0 0.0
    %1529 = vmatpush1.msra.mxu0 0.0
    %1530 = vmatprep.subr.mxu0 0.0
    %1531 = vmatpush1.msra.mxu0 0.0
    %1532 = vmatprep.subr.mxu0 0.0
    %1533 = vmatpush1.msra.mxu0 0.0
    %1534 = vmatprep.subr.mxu0 0.0
    %1535 = vmatpush1.msra.mxu0 0.0
    %1536 = vmatprep.subr.mxu0 0.0
    %1537 = vmatpush1.msra.mxu0 0.0
    %1538 = vmatprep.subr.mxu0 0.0
    %1539 = vmatpush1.msra.mxu0 0.0
    %1540 = vmatprep.subr.mxu0 0.0
    %1541 = vmatpush1.msra.mxu0 0.0
    %1542 = vmatprep.subr.mxu0 0.0
    %1543 = vmatpush1.msra.mxu0 0.0
    %1544 = vmatprep.subr.mxu0 0.0
    %1545 = vmatpush1.msra.mxu0 %v1501
    %1546 = vmatprep.subr.mxu0 0.0
    %1547 = vmatpush1.msra.mxu0 %v1499
    %1548 = vmatprep.subr.mxu0 0.0
    %1549 = vmatpush2.msra.mxu0 0.0
    %1550 = vmatprep.subr.mxu0 0.0
    %1551 = vmatpush2.msra.mxu0 0.0
    %1552 = vmatprep.subr.mxu0 0.0
    %1553 = vmatpush2.msra.mxu0 0.0
    %1554 = vmatprep.subr.mxu0 0.0
    %1555 = vmatpush2.msra.mxu0 0.0
    %1556 = vmatprep.subr.mxu0 0.0
    %1557 = vmatpush2.msra.mxu0 0.0
    %1558 = vmatprep.subr.mxu0 0.0
    %1559 = vmatpush2.msra.mxu0 0.0
    %1560 = vmatprep.subr.mxu0 0.0
    %1561 = vmatpush2.msra.mxu0 0.0
    %1562 = vmatprep.subr.mxu0 0.0
    %1563 = vmatpush2.msra.mxu0 0.0
    %1564 = vmatprep.subr.mxu0 0.0
    %1565 = vmatpush2.msra.mxu0 0.0
    %1566 = vmatprep.subr.mxu0 0.0
    %1567 = vmatpush2.msra.mxu0 0.0
    %1568 = vmatprep.subr.mxu0 0.0
    %1569 = vmatpush2.msra.mxu0 0.0
    %1570 = vmatprep.subr.mxu0 0.0
    %1571 = vmatpush2.msra.mxu0 0.0
    %1572 = vmatprep.subr.mxu0 0.0
    %1573 = vmatpush2.msra.mxu0 0.0
    %1574 = vmatprep.subr.mxu0 0.0
    %1575 = vmatpush2.msra.mxu0 0.0
    %1576 = vmatprep.subr.mxu0 0.0
    %1577 = vmatpush2.msra.mxu0 0.0
    %1578 = vmatprep.subr.mxu0 0.0
    %1579 = vmatpush2.msra.mxu0 0.0
    %1580 = vmatprep.mubr.f32.mxu0 0.0
    %1581 = vmatmul.mubr.f32.gmra.mxu0 %v1505
    %v1582 = vpop.f32.mrf.mxu0
    %v1583 = vadd.f32 0.0, %v1582
    %v1584 = vpop.f32.mrf.mxu0
    %1585 = vmatprep.mubr.f32.mxu0 0.0
    %1586 = vmatmul.mubr.f32.gmra.mxu0 %v1508
    %v1587 = vpop.f32.mrf.mxu0
    %v1588 = vadd.f32 0.0, %v1587
    %v1589 = vpop.f32.mrf.mxu0
    %1590 = vmatprep.mubr.f32.mxu0 0.0
    %1591 = vmatmul.mubr.f32.gmra.mxu0 %v1511
    %v1592 = vpop.f32.mrf.mxu0
    %v1593 = vadd.f32 0.0, %v1592
    %v1594 = vpop.f32.mrf.mxu0
    %1595 = vmatprep.mubr.f32.mxu0 0.0
    %1596 = vmatmul.mubr.f32.gmra.mxu0 %v1514
    %v1597 = vpop.f32.mrf.mxu0
    %v1598 = vadd.f32 0.0, %v1597
    %v1599 = vpop.f32.mrf.mxu0
    %1600 = vdwg.mxu0
    %v1601 = vadd.f32 %v1489, %v1583
    %v1602 = vadd.f32 %v1490, %v1588
    %v1603 = vadd.f32 %v1491, %v1593
    %v1604 = vadd.f32 %v1492, %v1598
    %s1605 = scalar_lea.vmem %s3, 416
    %v1606 = vld [vmem:[%s1605] sm:$0xff]
    %v1607 = vld [vmem:[%s1605 + $0x8] sm:$0xff]
    %v1608 = vld [vmem:[%s1605 + $0x10] sm:$0xff]
    %v1609 = vld [vmem:[%s1605 + $0x18] sm:$0xff]
    %1610 = vrot.lane.b32.xlu0 %v163, 102
    %v1611 = vpop.permute.xlu0 %1610
    %1612 = vrot.lane.b32.xlu0 %v164, 102
    %v1613 = vpop.permute.xlu0 %1612
    %v1617 = vsel %vm178, %v1606, 0
    %v1620 = vsel %vm178, %v1607, 0
    %v1623 = vsel %vm178, %v1608, 0
    %v1626 = vsel %vm178, %v1609, 0
    %1628 = vmatprep.subr.mxu0 0.0
    %1629 = vmatpush1.msra.mxu0 0.0
    %1630 = vmatprep.subr.mxu0 0.0
    %1631 = vmatpush1.msra.mxu0 0.0
    %1632 = vmatprep.subr.mxu0 0.0
    %1633 = vmatpush1.msra.mxu0 0.0
    %1634 = vmatprep.subr.mxu0 0.0
    %1635 = vmatpush1.msra.mxu0 0.0
    %1636 = vmatprep.subr.mxu0 0.0
    %1637 = vmatpush1.msra.mxu0 0.0
    %1638 = vmatprep.subr.mxu0 0.0
    %1639 = vmatpush1.msra.mxu0 0.0
    %1640 = vmatprep.subr.mxu0 0.0
    %1641 = vmatpush1.msra.mxu0 0.0
    %1642 = vmatprep.subr.mxu0 0.0
    %1643 = vmatpush1.msra.mxu0 0.0
    %1644 = vmatprep.subr.mxu0 0.0
    %1645 = vmatpush1.msra.mxu0 0.0
    %1646 = vmatprep.subr.mxu0 0.0
    %1647 = vmatpush1.msra.mxu0 0.0
    %1648 = vmatprep.subr.mxu0 0.0
    %1649 = vmatpush1.msra.mxu0 0.0
    %1650 = vmatprep.subr.mxu0 0.0
    %1651 = vmatpush1.msra.mxu0 0.0
    %1652 = vmatprep.subr.mxu0 0.0
    %1653 = vmatpush1.msra.mxu0 0.0
    %1654 = vmatprep.subr.mxu0 0.0
    %1655 = vmatpush1.msra.mxu0 0.0
    %1656 = vmatprep.subr.mxu0 0.0
    %1657 = vmatpush1.msra.mxu0 %v1613
    %1658 = vmatprep.subr.mxu0 0.0
    %1659 = vmatpush1.msra.mxu0 %v1611
    %1660 = vmatprep.subr.mxu0 0.0
    %1661 = vmatpush2.msra.mxu0 0.0
    %1662 = vmatprep.subr.mxu0 0.0
    %1663 = vmatpush2.msra.mxu0 0.0
    %1664 = vmatprep.subr.mxu0 0.0
    %1665 = vmatpush2.msra.mxu0 0.0
    %1666 = vmatprep.subr.mxu0 0.0
    %1667 = vmatpush2.msra.mxu0 0.0
    %1668 = vmatprep.subr.mxu0 0.0
    %1669 = vmatpush2.msra.mxu0 0.0
    %1670 = vmatprep.subr.mxu0 0.0
    %1671 = vmatpush2.msra.mxu0 0.0
    %1672 = vmatprep.subr.mxu0 0.0
    %1673 = vmatpush2.msra.mxu0 0.0
    %1674 = vmatprep.subr.mxu0 0.0
    %1675 = vmatpush2.msra.mxu0 0.0
    %1676 = vmatprep.subr.mxu0 0.0
    %1677 = vmatpush2.msra.mxu0 0.0
    %1678 = vmatprep.subr.mxu0 0.0
    %1679 = vmatpush2.msra.mxu0 0.0
    %1680 = vmatprep.subr.mxu0 0.0
    %1681 = vmatpush2.msra.mxu0 0.0
    %1682 = vmatprep.subr.mxu0 0.0
    %1683 = vmatpush2.msra.mxu0 0.0
    %1684 = vmatprep.subr.mxu0 0.0
    %1685 = vmatpush2.msra.mxu0 0.0
    %1686 = vmatprep.subr.mxu0 0.0
    %1687 = vmatpush2.msra.mxu0 0.0
    %1688 = vmatprep.subr.mxu0 0.0
    %1689 = vmatpush2.msra.mxu0 0.0
    %1690 = vmatprep.subr.mxu0 0.0
    %1691 = vmatpush2.msra.mxu0 0.0
    %1692 = vmatprep.mubr.f32.mxu0 0.0
    %1693 = vmatmul.mubr.f32.gmra.mxu0 %v1617
    %v1694 = vpop.f32.mrf.mxu0
    %v1695 = vadd.f32 0.0, %v1694
    %v1696 = vpop.f32.mrf.mxu0
    %1697 = vmatprep.mubr.f32.mxu0 0.0
    %1698 = vmatmul.mubr.f32.gmra.mxu0 %v1620
    %v1699 = vpop.f32.mrf.mxu0
    %v1700 = vadd.f32 0.0, %v1699
    %v1701 = vpop.f32.mrf.mxu0
    %1702 = vmatprep.mubr.f32.mxu0 0.0
    %1703 = vmatmul.mubr.f32.gmra.mxu0 %v1623
    %v1704 = vpop.f32.mrf.mxu0
    %v1705 = vadd.f32 0.0, %v1704
    %v1706 = vpop.f32.mrf.mxu0
    %1707 = vmatprep.mubr.f32.mxu0 0.0
    %1708 = vmatmul.mubr.f32.gmra.mxu0 %v1626
    %v1709 = vpop.f32.mrf.mxu0
    %v1710 = vadd.f32 0.0, %v1709
    %v1711 = vpop.f32.mrf.mxu0
    %1712 = vdwg.mxu0
    %v1713 = vadd.f32 %v1601, %v1695
    %v1714 = vadd.f32 %v1602, %v1700
    %v1715 = vadd.f32 %v1603, %v1705
    %v1716 = vadd.f32 %v1604, %v1710
    %s1717 = scalar_lea.vmem %s3, 448
    %v1718 = vld [vmem:[%s1717] sm:$0xff]
    %v1719 = vld [vmem:[%s1717 + $0x8] sm:$0xff]
    %v1720 = vld [vmem:[%s1717 + $0x10] sm:$0xff]
    %v1721 = vld [vmem:[%s1717 + $0x18] sm:$0xff]
    %1722 = vrot.lane.b32.xlu0 %v163, 100
    %v1723 = vpop.permute.xlu0 %1722
    %1724 = vrot.lane.b32.xlu0 %v164, 100
    %v1725 = vpop.permute.xlu0 %1724
    %v1729 = vsel %vm178, %v1718, 0
    %v1732 = vsel %vm178, %v1719, 0
    %v1735 = vsel %vm178, %v1720, 0
    %v1738 = vsel %vm178, %v1721, 0
    %1740 = vmatprep.subr.mxu0 0.0
    %1741 = vmatpush1.msra.mxu0 0.0
    %1742 = vmatprep.subr.mxu0 0.0
    %1743 = vmatpush1.msra.mxu0 0.0
    %1744 = vmatprep.subr.mxu0 0.0
    %1745 = vmatpush1.msra.mxu0 0.0
    %1746 = vmatprep.subr.mxu0 0.0
    %1747 = vmatpush1.msra.mxu0 0.0
    %1748 = vmatprep.subr.mxu0 0.0
    %1749 = vmatpush1.msra.mxu0 0.0
    %1750 = vmatprep.subr.mxu0 0.0
    %1751 = vmatpush1.msra.mxu0 0.0
    %1752 = vmatprep.subr.mxu0 0.0
    %1753 = vmatpush1.msra.mxu0 0.0
    %1754 = vmatprep.subr.mxu0 0.0
    %1755 = vmatpush1.msra.mxu0 0.0
    %1756 = vmatprep.subr.mxu0 0.0
    %1757 = vmatpush1.msra.mxu0 0.0
    %1758 = vmatprep.subr.mxu0 0.0
    %1759 = vmatpush1.msra.mxu0 0.0
    %1760 = vmatprep.subr.mxu0 0.0
    %1761 = vmatpush1.msra.mxu0 0.0
    %1762 = vmatprep.subr.mxu0 0.0
    %1763 = vmatpush1.msra.mxu0 0.0
    %1764 = vmatprep.subr.mxu0 0.0
    %1765 = vmatpush1.msra.mxu0 0.0
    %1766 = vmatprep.subr.mxu0 0.0
    %1767 = vmatpush1.msra.mxu0 0.0
    %1768 = vmatprep.subr.mxu0 0.0
    %1769 = vmatpush1.msra.mxu0 %v1725
    %1770 = vmatprep.subr.mxu0 0.0
    %1771 = vmatpush1.msra.mxu0 %v1723
    %1772 = vmatprep.subr.mxu0 0.0
    %1773 = vmatpush2.msra.mxu0 0.0
    %1774 = vmatprep.subr.mxu0 0.0
    %1775 = vmatpush2.msra.mxu0 0.0
    %1776 = vmatprep.subr.mxu0 0.0
    %1777 = vmatpush2.msra.mxu0 0.0
    %1778 = vmatprep.subr.mxu0 0.0
    %1779 = vmatpush2.msra.mxu0 0.0
    %1780 = vmatprep.subr.mxu0 0.0
    %1781 = vmatpush2.msra.mxu0 0.0
    %1782 = vmatprep.subr.mxu0 0.0
    %1783 = vmatpush2.msra.mxu0 0.0
    %1784 = vmatprep.subr.mxu0 0.0
    %1785 = vmatpush2.msra.mxu0 0.0
    %1786 = vmatprep.subr.mxu0 0.0
    %1787 = vmatpush2.msra.mxu0 0.0
    %1788 = vmatprep.subr.mxu0 0.0
    %1789 = vmatpush2.msra.mxu0 0.0
    %1790 = vmatprep.subr.mxu0 0.0
    %1791 = vmatpush2.msra.mxu0 0.0
    %1792 = vmatprep.subr.mxu0 0.0
    %1793 = vmatpush2.msra.mxu0 0.0
    %1794 = vmatprep.subr.mxu0 0.0
    %1795 = vmatpush2.msra.mxu0 0.0
    %1796 = vmatprep.subr.mxu0 0.0
    %1797 = vmatpush2.msra.mxu0 0.0
    %1798 = vmatprep.subr.mxu0 0.0
    %1799 = vmatpush2.msra.mxu0 0.0
    %1800 = vmatprep.subr.mxu0 0.0
    %1801 = vmatpush2.msra.mxu0 0.0
    %1802 = vmatprep.subr.mxu0 0.0
    %1803 = vmatpush2.msra.mxu0 0.0
    %1804 = vmatprep.mubr.f32.mxu0 0.0
    %1805 = vmatmul.mubr.f32.gmra.mxu0 %v1729
    %v1806 = vpop.f32.mrf.mxu0
    %v1807 = vadd.f32 0.0, %v1806
    %v1808 = vpop.f32.mrf.mxu0
    %1809 = vmatprep.mubr.f32.mxu0 0.0
    %1810 = vmatmul.mubr.f32.gmra.mxu0 %v1732
    %v1811 = vpop.f32.mrf.mxu0
    %v1812 = vadd.f32 0.0, %v1811
    %v1813 = vpop.f32.mrf.mxu0
    %1814 = vmatprep.mubr.f32.mxu0 0.0
    %1815 = vmatmul.mubr.f32.gmra.mxu0 %v1735
    %v1816 = vpop.f32.mrf.mxu0
    %v1817 = vadd.f32 0.0, %v1816
    %v1818 = vpop.f32.mrf.mxu0
    %1819 = vmatprep.mubr.f32.mxu0 0.0
    %1820 = vmatmul.mubr.f32.gmra.mxu0 %v1738
    %v1821 = vpop.f32.mrf.mxu0
    %v1822 = vadd.f32 0.0, %v1821
    %v1823 = vpop.f32.mrf.mxu0
    %1824 = vdwg.mxu0
    %v1825 = vadd.f32 %v1713, %v1807
    %v1826 = vadd.f32 %v1714, %v1812
    %v1827 = vadd.f32 %v1715, %v1817
    %v1828 = vadd.f32 %v1716, %v1822
    %s1829 = scalar_lea.vmem %s3, 480
    %v1830 = vld [vmem:[%s1829] sm:$0xff]
    %v1831 = vld [vmem:[%s1829 + $0x8] sm:$0xff]
    %v1832 = vld [vmem:[%s1829 + $0x10] sm:$0xff]
    %v1833 = vld [vmem:[%s1829 + $0x18] sm:$0xff]
    %1834 = vrot.lane.b32.xlu0 %v163, 98
    %v1835 = vpop.permute.xlu0 %1834
    %1836 = vrot.lane.b32.xlu0 %v164, 98
    %v1837 = vpop.permute.xlu0 %1836
    %v1841 = vsel %vm178, %v1830, 0
    %v1844 = vsel %vm178, %v1831, 0
    %v1847 = vsel %vm178, %v1832, 0
    %v1850 = vsel %vm178, %v1833, 0
    %1852 = vmatprep.subr.mxu0 0.0
    %1853 = vmatpush1.msra.mxu0 0.0
    %1854 = vmatprep.subr.mxu0 0.0
    %1855 = vmatpush1.msra.mxu0 0.0
    %1856 = vmatprep.subr.mxu0 0.0
    %1857 = vmatpush1.msra.mxu0 0.0
    %1858 = vmatprep.subr.mxu0 0.0
    %1859 = vmatpush1.msra.mxu0 0.0
    %1860 = vmatprep.subr.mxu0 0.0
    %1861 = vmatpush1.msra.mxu0 0.0
    %1862 = vmatprep.subr.mxu0 0.0
    %1863 = vmatpush1.msra.mxu0 0.0
    %1864 = vmatprep.subr.mxu0 0.0
    %1865 = vmatpush1.msra.mxu0 0.0
    %1866 = vmatprep.subr.mxu0 0.0
    %1867 = vmatpush1.msra.mxu0 0.0
    %1868 = vmatprep.subr.mxu0 0.0
    %1869 = vmatpush1.msra.mxu0 0.0
    %1870 = vmatprep.subr.mxu0 0.0
    %1871 = vmatpush1.msra.mxu0 0.0
    %1872 = vmatprep.subr.mxu0 0.0
    %1873 = vmatpush1.msra.mxu0 0.0
    %1874 = vmatprep.subr.mxu0 0.0
    %1875 = vmatpush1.msra.mxu0 0.0
    %1876 = vmatprep.subr.mxu0 0.0
    %1877 = vmatpush1.msra.mxu0 0.0
    %1878 = vmatprep.subr.mxu0 0.0
    %1879 = vmatpush1.msra.mxu0 0.0
    %1880 = vmatprep.subr.mxu0 0.0
    %1881 = vmatpush1.msra.mxu0 %v1837
    %1882 = vmatprep.subr.mxu0 0.0
    %1883 = vmatpush1.msra.mxu0 %v1835
    %1884 = vmatprep.subr.mxu0 0.0
    %1885 = vmatpush2.msra.mxu0 0.0
    %1886 = vmatprep.subr.mxu0 0.0
    %1887 = vmatpush2.msra.mxu0 0.0
    %1888 = vmatprep.subr.mxu0 0.0
    %1889 = vmatpush2.msra.mxu0 0.0
    %1890 = vmatprep.subr.mxu0 0.0
    %1891 = vmatpush2.msra.mxu0 0.0
    %1892 = vmatprep.subr.mxu0 0.0
    %1893 = vmatpush2.msra.mxu0 0.0
    %1894 = vmatprep.subr.mxu0 0.0
    %1895 = vmatpush2.msra.mxu0 0.0
    %1896 = vmatprep.subr.mxu0 0.0
    %1897 = vmatpush2.msra.mxu0 0.0
    %1898 = vmatprep.subr.mxu0 0.0
    %1899 = vmatpush2.msra.mxu0 0.0
    %1900 = vmatprep.subr.mxu0 0.0
    %1901 = vmatpush2.msra.mxu0 0.0
    %1902 = vmatprep.subr.mxu0 0.0
    %1903 = vmatpush2.msra.mxu0 0.0
    %1904 = vmatprep.subr.mxu0 0.0
    %1905 = vmatpush2.msra.mxu0 0.0
    %1906 = vmatprep.subr.mxu0 0.0
    %1907 = vmatpush2.msra.mxu0 0.0
    %1908 = vmatprep.subr.mxu0 0.0
    %1909 = vmatpush2.msra.mxu0 0.0
    %1910 = vmatprep.subr.mxu0 0.0
    %1911 = vmatpush2.msra.mxu0 0.0
    %1912 = vmatprep.subr.mxu0 0.0
    %1913 = vmatpush2.msra.mxu0 0.0
    %1914 = vmatprep.subr.mxu0 0.0
    %1915 = vmatpush2.msra.mxu0 0.0
    %1916 = vmatprep.mubr.f32.mxu0 0.0
    %1917 = vmatmul.mubr.f32.gmra.mxu0 %v1841
    %v1918 = vpop.f32.mrf.mxu0
    %v1919 = vadd.f32 0.0, %v1918
    %v1920 = vpop.f32.mrf.mxu0
    %1921 = vmatprep.mubr.f32.mxu0 0.0
    %1922 = vmatmul.mubr.f32.gmra.mxu0 %v1844
    %v1923 = vpop.f32.mrf.mxu0
    %v1924 = vadd.f32 0.0, %v1923
    %v1925 = vpop.f32.mrf.mxu0
    %1926 = vmatprep.mubr.f32.mxu0 0.0
    %1927 = vmatmul.mubr.f32.gmra.mxu0 %v1847
    %v1928 = vpop.f32.mrf.mxu0
    %v1929 = vadd.f32 0.0, %v1928
    %v1930 = vpop.f32.mrf.mxu0
    %1931 = vmatprep.mubr.f32.mxu0 0.0
    %1932 = vmatmul.mubr.f32.gmra.mxu0 %v1850
    %v1933 = vpop.f32.mrf.mxu0
    %v1934 = vadd.f32 0.0, %v1933
    %v1935 = vpop.f32.mrf.mxu0
    %1936 = vdwg.mxu0
    %v1937 = vadd.f32 %v1825, %v1919
    %v1938 = vadd.f32 %v1826, %v1924
    %v1939 = vadd.f32 %v1827, %v1929
    %v1940 = vadd.f32 %v1828, %v1934
    %s1941 = scalar_lea.vmem %s3, 512
    %v1942 = vld [vmem:[%s1941] sm:$0xff]
    %v1943 = vld [vmem:[%s1941 + $0x8] sm:$0xff]
    %v1944 = vld [vmem:[%s1941 + $0x10] sm:$0xff]
    %v1945 = vld [vmem:[%s1941 + $0x18] sm:$0xff]
    %1946 = vrot.lane.b32.xlu0 %v163, 96
    %v1947 = vpop.permute.xlu0 %1946
    %1948 = vrot.lane.b32.xlu0 %v164, 96
    %v1949 = vpop.permute.xlu0 %1948
    %v1953 = vsel %vm178, %v1942, 0
    %v1956 = vsel %vm178, %v1943, 0
    %v1959 = vsel %vm178, %v1944, 0
    %v1962 = vsel %vm178, %v1945, 0
    %1964 = vmatprep.subr.mxu0 0.0
    %1965 = vmatpush1.msra.mxu0 0.0
    %1966 = vmatprep.subr.mxu0 0.0
    %1967 = vmatpush1.msra.mxu0 0.0
    %1968 = vmatprep.subr.mxu0 0.0
    %1969 = vmatpush1.msra.mxu0 0.0
    %1970 = vmatprep.subr.mxu0 0.0
    %1971 = vmatpush1.msra.mxu0 0.0
    %1972 = vmatprep.subr.mxu0 0.0
    %1973 = vmatpush1.msra.mxu0 0.0
    %1974 = vmatprep.subr.mxu0 0.0
    %1975 = vmatpush1.msra.mxu0 0.0
    %1976 = vmatprep.subr.mxu0 0.0
    %1977 = vmatpush1.msra.mxu0 0.0
    %1978 = vmatprep.subr.mxu0 0.0
    %1979 = vmatpush1.msra.mxu0 0.0
    %1980 = vmatprep.subr.mxu0 0.0
    %1981 = vmatpush1.msra.mxu0 0.0
    %1982 = vmatprep.subr.mxu0 0.0
    %1983 = vmatpush1.msra.mxu0 0.0
    %1984 = vmatprep.subr.mxu0 0.0
    %1985 = vmatpush1.msra.mxu0 0.0
    %1986 = vmatprep.subr.mxu0 0.0
    %1987 = vmatpush1.msra.mxu0 0.0
    %1988 = vmatprep.subr.mxu0 0.0
    %1989 = vmatpush1.msra.mxu0 0.0
    %1990 = vmatprep.subr.mxu0 0.0
    %1991 = vmatpush1.msra.mxu0 0.0
    %1992 = vmatprep.subr.mxu0 0.0
    %1993 = vmatpush1.msra.mxu0 %v1949
    %1994 = vmatprep.subr.mxu0 0.0
    %1995 = vmatpush1.msra.mxu0 %v1947
    %1996 = vmatprep.subr.mxu0 0.0
    %1997 = vmatpush2.msra.mxu0 0.0
    %1998 = vmatprep.subr.mxu0 0.0
    %1999 = vmatpush2.msra.mxu0 0.0
    %2000 = vmatprep.subr.mxu0 0.0
    %2001 = vmatpush2.msra.mxu0 0.0
    %2002 = vmatprep.subr.mxu0 0.0
    %2003 = vmatpush2.msra.mxu0 0.0
    %2004 = vmatprep.subr.mxu0 0.0
    %2005 = vmatpush2.msra.mxu0 0.0
    %2006 = vmatprep.subr.mxu0 0.0
    %2007 = vmatpush2.msra.mxu0 0.0
    %2008 = vmatprep.subr.mxu0 0.0
    %2009 = vmatpush2.msra.mxu0 0.0
    %2010 = vmatprep.subr.mxu0 0.0
    %2011 = vmatpush2.msra.mxu0 0.0
    %2012 = vmatprep.subr.mxu0 0.0
    %2013 = vmatpush2.msra.mxu0 0.0
    %2014 = vmatprep.subr.mxu0 0.0
    %2015 = vmatpush2.msra.mxu0 0.0
    %2016 = vmatprep.subr.mxu0 0.0
    %2017 = vmatpush2.msra.mxu0 0.0
    %2018 = vmatprep.subr.mxu0 0.0
    %2019 = vmatpush2.msra.mxu0 0.0
    %2020 = vmatprep.subr.mxu0 0.0
    %2021 = vmatpush2.msra.mxu0 0.0
    %2022 = vmatprep.subr.mxu0 0.0
    %2023 = vmatpush2.msra.mxu0 0.0
    %2024 = vmatprep.subr.mxu0 0.0
    %2025 = vmatpush2.msra.mxu0 0.0
    %2026 = vmatprep.subr.mxu0 0.0
    %2027 = vmatpush2.msra.mxu0 0.0
    %2028 = vmatprep.mubr.f32.mxu0 0.0
    %2029 = vmatmul.mubr.f32.gmra.mxu0 %v1953
    %v2030 = vpop.f32.mrf.mxu0
    %v2031 = vadd.f32 0.0, %v2030
    %v2032 = vpop.f32.mrf.mxu0
    %2033 = vmatprep.mubr.f32.mxu0 0.0
    %2034 = vmatmul.mubr.f32.gmra.mxu0 %v1956
    %v2035 = vpop.f32.mrf.mxu0
    %v2036 = vadd.f32 0.0, %v2035
    %v2037 = vpop.f32.mrf.mxu0
    %2038 = vmatprep.mubr.f32.mxu0 0.0
    %2039 = vmatmul.mubr.f32.gmra.mxu0 %v1959
    %v2040 = vpop.f32.mrf.mxu0
    %v2041 = vadd.f32 0.0, %v2040
    %v2042 = vpop.f32.mrf.mxu0
    %2043 = vmatprep.mubr.f32.mxu0 0.0
    %2044 = vmatmul.mubr.f32.gmra.mxu0 %v1962
    %v2045 = vpop.f32.mrf.mxu0
    %v2046 = vadd.f32 0.0, %v2045
    %v2047 = vpop.f32.mrf.mxu0
    %2048 = vdwg.mxu0
    %v2049 = vadd.f32 %v1937, %v2031
    %v2050 = vadd.f32 %v1938, %v2036
    %v2051 = vadd.f32 %v1939, %v2041
    %v2052 = vadd.f32 %v1940, %v2046
    %s2053 = scalar_lea.vmem %s3, 544
    %v2054 = vld [vmem:[%s2053] sm:$0xff]
    %v2055 = vld [vmem:[%s2053 + $0x8] sm:$0xff]
    %v2056 = vld [vmem:[%s2053 + $0x10] sm:$0xff]
    %v2057 = vld [vmem:[%s2053 + $0x18] sm:$0xff]
    %2058 = vrot.lane.b32.xlu0 %v163, 94
    %v2059 = vpop.permute.xlu0 %2058
    %2060 = vrot.lane.b32.xlu0 %v164, 94
    %v2061 = vpop.permute.xlu0 %2060
    %v2065 = vsel %vm178, %v2054, 0
    %v2068 = vsel %vm178, %v2055, 0
    %v2071 = vsel %vm178, %v2056, 0
    %v2074 = vsel %vm178, %v2057, 0
    %2076 = vmatprep.subr.mxu0 0.0
    %2077 = vmatpush1.msra.mxu0 0.0
    %2078 = vmatprep.subr.mxu0 0.0
    %2079 = vmatpush1.msra.mxu0 0.0
    %2080 = vmatprep.subr.mxu0 0.0
    %2081 = vmatpush1.msra.mxu0 0.0
    %2082 = vmatprep.subr.mxu0 0.0
    %2083 = vmatpush1.msra.mxu0 0.0
    %2084 = vmatprep.subr.mxu0 0.0
    %2085 = vmatpush1.msra.mxu0 0.0
    %2086 = vmatprep.subr.mxu0 0.0
    %2087 = vmatpush1.msra.mxu0 0.0
    %2088 = vmatprep.subr.mxu0 0.0
    %2089 = vmatpush1.msra.mxu0 0.0
    %2090 = vmatprep.subr.mxu0 0.0
    %2091 = vmatpush1.msra.mxu0 0.0
    %2092 = vmatprep.subr.mxu0 0.0
    %2093 = vmatpush1.msra.mxu0 0.0
    %2094 = vmatprep.subr.mxu0 0.0
    %2095 = vmatpush1.msra.mxu0 0.0
    %2096 = vmatprep.subr.mxu0 0.0
    %2097 = vmatpush1.msra.mxu0 0.0
    %2098 = vmatprep.subr.mxu0 0.0
    %2099 = vmatpush1.msra.mxu0 0.0
    %2100 = vmatprep.subr.mxu0 0.0
    %2101 = vmatpush1.msra.mxu0 0.0
    %2102 = vmatprep.subr.mxu0 0.0
    %2103 = vmatpush1.msra.mxu0 0.0
    %2104 = vmatprep.subr.mxu0 0.0
    %2105 = vmatpush1.msra.mxu0 %v2061
    %2106 = vmatprep.subr.mxu0 0.0
    %2107 = vmatpush1.msra.mxu0 %v2059
    %2108 = vmatprep.subr.mxu0 0.0
    %2109 = vmatpush2.msra.mxu0 0.0
    %2110 = vmatprep.subr.mxu0 0.0
    %2111 = vmatpush2.msra.mxu0 0.0
    %2112 = vmatprep.subr.mxu0 0.0
    %2113 = vmatpush2.msra.mxu0 0.0
    %2114 = vmatprep.subr.mxu0 0.0
    %2115 = vmatpush2.msra.mxu0 0.0
    %2116 = vmatprep.subr.mxu0 0.0
    %2117 = vmatpush2.msra.mxu0 0.0
    %2118 = vmatprep.subr.mxu0 0.0
    %2119 = vmatpush2.msra.mxu0 0.0
    %2120 = vmatprep.subr.mxu0 0.0
    %2121 = vmatpush2.msra.mxu0 0.0
    %2122 = vmatprep.subr.mxu0 0.0
    %2123 = vmatpush2.msra.mxu0 0.0
    %2124 = vmatprep.subr.mxu0 0.0
    %2125 = vmatpush2.msra.mxu0 0.0
    %2126 = vmatprep.subr.mxu0 0.0
    %2127 = vmatpush2.msra.mxu0 0.0
    %2128 = vmatprep.subr.mxu0 0.0
    %2129 = vmatpush2.msra.mxu0 0.0
    %2130 = vmatprep.subr.mxu0 0.0
    %2131 = vmatpush2.msra.mxu0 0.0
    %2132 = vmatprep.subr.mxu0 0.0
    %2133 = vmatpush2.msra.mxu0 0.0
    %2134 = vmatprep.subr.mxu0 0.0
    %2135 = vmatpush2.msra.mxu0 0.0
    %2136 = vmatprep.subr.mxu0 0.0
    %2137 = vmatpush2.msra.mxu0 0.0
    %2138 = vmatprep.subr.mxu0 0.0
    %2139 = vmatpush2.msra.mxu0 0.0
    %2140 = vmatprep.mubr.f32.mxu0 0.0
    %2141 = vmatmul.mubr.f32.gmra.mxu0 %v2065
    %v2142 = vpop.f32.mrf.mxu0
    %v2143 = vadd.f32 0.0, %v2142
    %v2144 = vpop.f32.mrf.mxu0
    %2145 = vmatprep.mubr.f32.mxu0 0.0
    %2146 = vmatmul.mubr.f32.gmra.mxu0 %v2068
    %v2147 = vpop.f32.mrf.mxu0
    %v2148 = vadd.f32 0.0, %v2147
    %v2149 = vpop.f32.mrf.mxu0
    %2150 = vmatprep.mubr.f32.mxu0 0.0
    %2151 = vmatmul.mubr.f32.gmra.mxu0 %v2071
    %v2152 = vpop.f32.mrf.mxu0
    %v2153 = vadd.f32 0.0, %v2152
    %v2154 = vpop.f32.mrf.mxu0
    %2155 = vmatprep.mubr.f32.mxu0 0.0
    %2156 = vmatmul.mubr.f32.gmra.mxu0 %v2074
    %v2157 = vpop.f32.mrf.mxu0
    %v2158 = vadd.f32 0.0, %v2157
    %v2159 = vpop.f32.mrf.mxu0
    %2160 = vdwg.mxu0
    %v2161 = vadd.f32 %v2049, %v2143
    %v2162 = vadd.f32 %v2050, %v2148
    %v2163 = vadd.f32 %v2051, %v2153
    %v2164 = vadd.f32 %v2052, %v2158
    %s2165 = scalar_lea.vmem %s3, 576
    %v2166 = vld [vmem:[%s2165] sm:$0xff]
    %v2167 = vld [vmem:[%s2165 + $0x8] sm:$0xff]
    %v2168 = vld [vmem:[%s2165 + $0x10] sm:$0xff]
    %v2169 = vld [vmem:[%s2165 + $0x18] sm:$0xff]
    %2170 = vrot.lane.b32.xlu0 %v163, 92
    %v2171 = vpop.permute.xlu0 %2170
    %2172 = vrot.lane.b32.xlu0 %v164, 92
    %v2173 = vpop.permute.xlu0 %2172
    %v2177 = vsel %vm178, %v2166, 0
    %v2180 = vsel %vm178, %v2167, 0
    %v2183 = vsel %vm178, %v2168, 0
    %v2186 = vsel %vm178, %v2169, 0
    %2188 = vmatprep.subr.mxu0 0.0
    %2189 = vmatpush1.msra.mxu0 0.0
    %2190 = vmatprep.subr.mxu0 0.0
    %2191 = vmatpush1.msra.mxu0 0.0
    %2192 = vmatprep.subr.mxu0 0.0
    %2193 = vmatpush1.msra.mxu0 0.0
    %2194 = vmatprep.subr.mxu0 0.0
    %2195 = vmatpush1.msra.mxu0 0.0
    %2196 = vmatprep.subr.mxu0 0.0
    %2197 = vmatpush1.msra.mxu0 0.0
    %2198 = vmatprep.subr.mxu0 0.0
    %2199 = vmatpush1.msra.mxu0 0.0
    %2200 = vmatprep.subr.mxu0 0.0
    %2201 = vmatpush1.msra.mxu0 0.0
    %2202 = vmatprep.subr.mxu0 0.0
    %2203 = vmatpush1.msra.mxu0 0.0
    %2204 = vmatprep.subr.mxu0 0.0
    %2205 = vmatpush1.msra.mxu0 0.0
    %2206 = vmatprep.subr.mxu0 0.0
    %2207 = vmatpush1.msra.mxu0 0.0
    %2208 = vmatprep.subr.mxu0 0.0
    %2209 = vmatpush1.msra.mxu0 0.0
    %2210 = vmatprep.subr.mxu0 0.0
    %2211 = vmatpush1.msra.mxu0 0.0
    %2212 = vmatprep.subr.mxu0 0.0
    %2213 = vmatpush1.msra.mxu0 0.0
    %2214 = vmatprep.subr.mxu0 0.0
    %2215 = vmatpush1.msra.mxu0 0.0
    %2216 = vmatprep.subr.mxu0 0.0
    %2217 = vmatpush1.msra.mxu0 %v2173
    %2218 = vmatprep.subr.mxu0 0.0
    %2219 = vmatpush1.msra.mxu0 %v2171
    %2220 = vmatprep.subr.mxu0 0.0
    %2221 = vmatpush2.msra.mxu0 0.0
    %2222 = vmatprep.subr.mxu0 0.0
    %2223 = vmatpush2.msra.mxu0 0.0
    %2224 = vmatprep.subr.mxu0 0.0
    %2225 = vmatpush2.msra.mxu0 0.0
    %2226 = vmatprep.subr.mxu0 0.0
    %2227 = vmatpush2.msra.mxu0 0.0
    %2228 = vmatprep.subr.mxu0 0.0
    %2229 = vmatpush2.msra.mxu0 0.0
    %2230 = vmatprep.subr.mxu0 0.0
    %2231 = vmatpush2.msra.mxu0 0.0
    %2232 = vmatprep.subr.mxu0 0.0
    %2233 = vmatpush2.msra.mxu0 0.0
    %2234 = vmatprep.subr.mxu0 0.0
    %2235 = vmatpush2.msra.mxu0 0.0
    %2236 = vmatprep.subr.mxu0 0.0
    %2237 = vmatpush2.msra.mxu0 0.0
    %2238 = vmatprep.subr.mxu0 0.0
    %2239 = vmatpush2.msra.mxu0 0.0
    %2240 = vmatprep.subr.mxu0 0.0
    %2241 = vmatpush2.msra.mxu0 0.0
    %2242 = vmatprep.subr.mxu0 0.0
    %2243 = vmatpush2.msra.mxu0 0.0
    %2244 = vmatprep.subr.mxu0 0.0
    %2245 = vmatpush2.msra.mxu0 0.0
    %2246 = vmatprep.subr.mxu0 0.0
    %2247 = vmatpush2.msra.mxu0 0.0
    %2248 = vmatprep.subr.mxu0 0.0
    %2249 = vmatpush2.msra.mxu0 0.0
    %2250 = vmatprep.subr.mxu0 0.0
    %2251 = vmatpush2.msra.mxu0 0.0
    %2252 = vmatprep.mubr.f32.mxu0 0.0
    %2253 = vmatmul.mubr.f32.gmra.mxu0 %v2177
    %v2254 = vpop.f32.mrf.mxu0
    %v2255 = vadd.f32 0.0, %v2254
    %v2256 = vpop.f32.mrf.mxu0
    %2257 = vmatprep.mubr.f32.mxu0 0.0
    %2258 = vmatmul.mubr.f32.gmra.mxu0 %v2180
    %v2259 = vpop.f32.mrf.mxu0
    %v2260 = vadd.f32 0.0, %v2259
    %v2261 = vpop.f32.mrf.mxu0
    %2262 = vmatprep.mubr.f32.mxu0 0.0
    %2263 = vmatmul.mubr.f32.gmra.mxu0 %v2183
    %v2264 = vpop.f32.mrf.mxu0
    %v2265 = vadd.f32 0.0, %v2264
    %v2266 = vpop.f32.mrf.mxu0
    %2267 = vmatprep.mubr.f32.mxu0 0.0
    %2268 = vmatmul.mubr.f32.gmra.mxu0 %v2186
    %v2269 = vpop.f32.mrf.mxu0
    %v2270 = vadd.f32 0.0, %v2269
    %v2271 = vpop.f32.mrf.mxu0
    %2272 = vdwg.mxu0
    %v2273 = vadd.f32 %v2161, %v2255
    %v2274 = vadd.f32 %v2162, %v2260
    %v2275 = vadd.f32 %v2163, %v2265
    %v2276 = vadd.f32 %v2164, %v2270
    %s2277 = scalar_lea.vmem %s3, 608
    %v2278 = vld [vmem:[%s2277] sm:$0xff]
    %v2279 = vld [vmem:[%s2277 + $0x8] sm:$0xff]
    %v2280 = vld [vmem:[%s2277 + $0x10] sm:$0xff]
    %v2281 = vld [vmem:[%s2277 + $0x18] sm:$0xff]
    %2282 = vrot.lane.b32.xlu0 %v163, 90
    %v2283 = vpop.permute.xlu0 %2282
    %2284 = vrot.lane.b32.xlu0 %v164, 90
    %v2285 = vpop.permute.xlu0 %2284
    %v2289 = vsel %vm178, %v2278, 0
    %v2292 = vsel %vm178, %v2279, 0
    %v2295 = vsel %vm178, %v2280, 0
    %v2298 = vsel %vm178, %v2281, 0
    %2300 = vmatprep.subr.mxu0 0.0
    %2301 = vmatpush1.msra.mxu0 0.0
    %2302 = vmatprep.subr.mxu0 0.0
    %2303 = vmatpush1.msra.mxu0 0.0
    %2304 = vmatprep.subr.mxu0 0.0
    %2305 = vmatpush1.msra.mxu0 0.0
    %2306 = vmatprep.subr.mxu0 0.0
    %2307 = vmatpush1.msra.mxu0 0.0
    %2308 = vmatprep.subr.mxu0 0.0
    %2309 = vmatpush1.msra.mxu0 0.0
    %2310 = vmatprep.subr.mxu0 0.0
    %2311 = vmatpush1.msra.mxu0 0.0
    %2312 = vmatprep.subr.mxu0 0.0
    %2313 = vmatpush1.msra.mxu0 0.0
    %2314 = vmatprep.subr.mxu0 0.0
    %2315 = vmatpush1.msra.mxu0 0.0
    %2316 = vmatprep.subr.mxu0 0.0
    %2317 = vmatpush1.msra.mxu0 0.0
    %2318 = vmatprep.subr.mxu0 0.0
    %2319 = vmatpush1.msra.mxu0 0.0
    %2320 = vmatprep.subr.mxu0 0.0
    %2321 = vmatpush1.msra.mxu0 0.0
    %2322 = vmatprep.subr.mxu0 0.0
    %2323 = vmatpush1.msra.mxu0 0.0
    %2324 = vmatprep.subr.mxu0 0.0
    %2325 = vmatpush1.msra.mxu0 0.0
    %2326 = vmatprep.subr.mxu0 0.0
    %2327 = vmatpush1.msra.mxu0 0.0
    %2328 = vmatprep.subr.mxu0 0.0
    %2329 = vmatpush1.msra.mxu0 %v2285
    %2330 = vmatprep.subr.mxu0 0.0
    %2331 = vmatpush1.msra.mxu0 %v2283
    %2332 = vmatprep.subr.mxu0 0.0
    %2333 = vmatpush2.msra.mxu0 0.0
    %2334 = vmatprep.subr.mxu0 0.0
    %2335 = vmatpush2.msra.mxu0 0.0
    %2336 = vmatprep.subr.mxu0 0.0
    %2337 = vmatpush2.msra.mxu0 0.0
    %2338 = vmatprep.subr.mxu0 0.0
    %2339 = vmatpush2.msra.mxu0 0.0
    %2340 = vmatprep.subr.mxu0 0.0
    %2341 = vmatpush2.msra.mxu0 0.0
    %2342 = vmatprep.subr.mxu0 0.0
    %2343 = vmatpush2.msra.mxu0 0.0
    %2344 = vmatprep.subr.mxu0 0.0
    %2345 = vmatpush2.msra.mxu0 0.0
    %2346 = vmatprep.subr.mxu0 0.0
    %2347 = vmatpush2.msra.mxu0 0.0
    %2348 = vmatprep.subr.mxu0 0.0
    %2349 = vmatpush2.msra.mxu0 0.0
    %2350 = vmatprep.subr.mxu0 0.0
    %2351 = vmatpush2.msra.mxu0 0.0
    %2352 = vmatprep.subr.mxu0 0.0
    %2353 = vmatpush2.msra.mxu0 0.0
    %2354 = vmatprep.subr.mxu0 0.0
    %2355 = vmatpush2.msra.mxu0 0.0
    %2356 = vmatprep.subr.mxu0 0.0
    %2357 = vmatpush2.msra.mxu0 0.0
    %2358 = vmatprep.subr.mxu0 0.0
    %2359 = vmatpush2.msra.mxu0 0.0
    %2360 = vmatprep.subr.mxu0 0.0
    %2361 = vmatpush2.msra.mxu0 0.0
    %2362 = vmatprep.subr.mxu0 0.0
    %2363 = vmatpush2.msra.mxu0 0.0
    %2364 = vmatprep.mubr.f32.mxu0 0.0
    %2365 = vmatmul.mubr.f32.gmra.mxu0 %v2289
    %v2366 = vpop.f32.mrf.mxu0
    %v2367 = vadd.f32 0.0, %v2366
    %v2368 = vpop.f32.mrf.mxu0
    %2369 = vmatprep.mubr.f32.mxu0 0.0
    %2370 = vmatmul.mubr.f32.gmra.mxu0 %v2292
    %v2371 = vpop.f32.mrf.mxu0
    %v2372 = vadd.f32 0.0, %v2371
    %v2373 = vpop.f32.mrf.mxu0
    %2374 = vmatprep.mubr.f32.mxu0 0.0
    %2375 = vmatmul.mubr.f32.gmra.mxu0 %v2295
    %v2376 = vpop.f32.mrf.mxu0
    %v2377 = vadd.f32 0.0, %v2376
    %v2378 = vpop.f32.mrf.mxu0
    %2379 = vmatprep.mubr.f32.mxu0 0.0
    %2380 = vmatmul.mubr.f32.gmra.mxu0 %v2298
    %v2381 = vpop.f32.mrf.mxu0
    %v2382 = vadd.f32 0.0, %v2381
    %v2383 = vpop.f32.mrf.mxu0
    %2384 = vdwg.mxu0
    %v2385 = vadd.f32 %v2273, %v2367
    %v2386 = vadd.f32 %v2274, %v2372
    %v2387 = vadd.f32 %v2275, %v2377
    %v2388 = vadd.f32 %v2276, %v2382
    %s2389 = scalar_lea.vmem %s3, 640
    %v2390 = vld [vmem:[%s2389] sm:$0xff]
    %v2391 = vld [vmem:[%s2389 + $0x8] sm:$0xff]
    %v2392 = vld [vmem:[%s2389 + $0x10] sm:$0xff]
    %v2393 = vld [vmem:[%s2389 + $0x18] sm:$0xff]
    %2394 = vrot.lane.b32.xlu0 %v163, 88
    %v2395 = vpop.permute.xlu0 %2394
    %2396 = vrot.lane.b32.xlu0 %v164, 88
    %v2397 = vpop.permute.xlu0 %2396
    %v2401 = vsel %vm178, %v2390, 0
    %v2404 = vsel %vm178, %v2391, 0
    %v2407 = vsel %vm178, %v2392, 0
    %v2410 = vsel %vm178, %v2393, 0
    %2412 = vmatprep.subr.mxu0 0.0
    %2413 = vmatpush1.msra.mxu0 0.0
    %2414 = vmatprep.subr.mxu0 0.0
    %2415 = vmatpush1.msra.mxu0 0.0
    %2416 = vmatprep.subr.mxu0 0.0
    %2417 = vmatpush1.msra.mxu0 0.0
    %2418 = vmatprep.subr.mxu0 0.0
    %2419 = vmatpush1.msra.mxu0 0.0
    %2420 = vmatprep.subr.mxu0 0.0
    %2421 = vmatpush1.msra.mxu0 0.0
    %2422 = vmatprep.subr.mxu0 0.0
    %2423 = vmatpush1.msra.mxu0 0.0
    %2424 = vmatprep.subr.mxu0 0.0
    %2425 = vmatpush1.msra.mxu0 0.0
    %2426 = vmatprep.subr.mxu0 0.0
    %2427 = vmatpush1.msra.mxu0 0.0
    %2428 = vmatprep.subr.mxu0 0.0
    %2429 = vmatpush1.msra.mxu0 0.0
    %2430 = vmatprep.subr.mxu0 0.0
    %2431 = vmatpush1.msra.mxu0 0.0
    %2432 = vmatprep.subr.mxu0 0.0
    %2433 = vmatpush1.msra.mxu0 0.0
    %2434 = vmatprep.subr.mxu0 0.0
    %2435 = vmatpush1.msra.mxu0 0.0
    %2436 = vmatprep.subr.mxu0 0.0
    %2437 = vmatpush1.msra.mxu0 0.0
    %2438 = vmatprep.subr.mxu0 0.0
    %2439 = vmatpush1.msra.mxu0 0.0
    %2440 = vmatprep.subr.mxu0 0.0
    %2441 = vmatpush1.msra.mxu0 %v2397
    %2442 = vmatprep.subr.mxu0 0.0
    %2443 = vmatpush1.msra.mxu0 %v2395
    %2444 = vmatprep.subr.mxu0 0.0
    %2445 = vmatpush2.msra.mxu0 0.0
    %2446 = vmatprep.subr.mxu0 0.0
    %2447 = vmatpush2.msra.mxu0 0.0
    %2448 = vmatprep.subr.mxu0 0.0
    %2449 = vmatpush2.msra.mxu0 0.0
    %2450 = vmatprep.subr.mxu0 0.0
    %2451 = vmatpush2.msra.mxu0 0.0
    %2452 = vmatprep.subr.mxu0 0.0
    %2453 = vmatpush2.msra.mxu0 0.0
    %2454 = vmatprep.subr.mxu0 0.0
    %2455 = vmatpush2.msra.mxu0 0.0
    %2456 = vmatprep.subr.mxu0 0.0
    %2457 = vmatpush2.msra.mxu0 0.0
    %2458 = vmatprep.subr.mxu0 0.0
    %2459 = vmatpush2.msra.mxu0 0.0
    %2460 = vmatprep.subr.mxu0 0.0
    %2461 = vmatpush2.msra.mxu0 0.0
    %2462 = vmatprep.subr.mxu0 0.0
    %2463 = vmatpush2.msra.mxu0 0.0
    %2464 = vmatprep.subr.mxu0 0.0
    %2465 = vmatpush2.msra.mxu0 0.0
    %2466 = vmatprep.subr.mxu0 0.0
    %2467 = vmatpush2.msra.mxu0 0.0
    %2468 = vmatprep.subr.mxu0 0.0
    %2469 = vmatpush2.msra.mxu0 0.0
    %2470 = vmatprep.subr.mxu0 0.0
    %2471 = vmatpush2.msra.mxu0 0.0
    %2472 = vmatprep.subr.mxu0 0.0
    %2473 = vmatpush2.msra.mxu0 0.0
    %2474 = vmatprep.subr.mxu0 0.0
    %2475 = vmatpush2.msra.mxu0 0.0
    %2476 = vmatprep.mubr.f32.mxu0 0.0
    %2477 = vmatmul.mubr.f32.gmra.mxu0 %v2401
    %v2478 = vpop.f32.mrf.mxu0
    %v2479 = vadd.f32 0.0, %v2478
    %v2480 = vpop.f32.mrf.mxu0
    %2481 = vmatprep.mubr.f32.mxu0 0.0
    %2482 = vmatmul.mubr.f32.gmra.mxu0 %v2404
    %v2483 = vpop.f32.mrf.mxu0
    %v2484 = vadd.f32 0.0, %v2483
    %v2485 = vpop.f32.mrf.mxu0
    %2486 = vmatprep.mubr.f32.mxu0 0.0
    %2487 = vmatmul.mubr.f32.gmra.mxu0 %v2407
    %v2488 = vpop.f32.mrf.mxu0
    %v2489 = vadd.f32 0.0, %v2488
    %v2490 = vpop.f32.mrf.mxu0
    %2491 = vmatprep.mubr.f32.mxu0 0.0
    %2492 = vmatmul.mubr.f32.gmra.mxu0 %v2410
    %v2493 = vpop.f32.mrf.mxu0
    %v2494 = vadd.f32 0.0, %v2493
    %v2495 = vpop.f32.mrf.mxu0
    %2496 = vdwg.mxu0
    %v2497 = vadd.f32 %v2385, %v2479
    %v2498 = vadd.f32 %v2386, %v2484
    %v2499 = vadd.f32 %v2387, %v2489
    %v2500 = vadd.f32 %v2388, %v2494
    %s2501 = scalar_lea.vmem %s3, 672
    %v2502 = vld [vmem:[%s2501] sm:$0xff]
    %v2503 = vld [vmem:[%s2501 + $0x8] sm:$0xff]
    %v2504 = vld [vmem:[%s2501 + $0x10] sm:$0xff]
    %v2505 = vld [vmem:[%s2501 + $0x18] sm:$0xff]
    %2506 = vrot.lane.b32.xlu0 %v163, 86
    %v2507 = vpop.permute.xlu0 %2506
    %2508 = vrot.lane.b32.xlu0 %v164, 86
    %v2509 = vpop.permute.xlu0 %2508
    %v2513 = vsel %vm178, %v2502, 0
    %v2516 = vsel %vm178, %v2503, 0
    %v2519 = vsel %vm178, %v2504, 0
    %v2522 = vsel %vm178, %v2505, 0
    %2524 = vmatprep.subr.mxu0 0.0
    %2525 = vmatpush1.msra.mxu0 0.0
    %2526 = vmatprep.subr.mxu0 0.0
    %2527 = vmatpush1.msra.mxu0 0.0
    %2528 = vmatprep.subr.mxu0 0.0
    %2529 = vmatpush1.msra.mxu0 0.0
    %2530 = vmatprep.subr.mxu0 0.0
    %2531 = vmatpush1.msra.mxu0 0.0
    %2532 = vmatprep.subr.mxu0 0.0
    %2533 = vmatpush1.msra.mxu0 0.0
    %2534 = vmatprep.subr.mxu0 0.0
    %2535 = vmatpush1.msra.mxu0 0.0
    %2536 = vmatprep.subr.mxu0 0.0
    %2537 = vmatpush1.msra.mxu0 0.0
    %2538 = vmatprep.subr.mxu0 0.0
    %2539 = vmatpush1.msra.mxu0 0.0
    %2540 = vmatprep.subr.mxu0 0.0
    %2541 = vmatpush1.msra.mxu0 0.0
    %2542 = vmatprep.subr.mxu0 0.0
    %2543 = vmatpush1.msra.mxu0 0.0
    %2544 = vmatprep.subr.mxu0 0.0
    %2545 = vmatpush1.msra.mxu0 0.0
    %2546 = vmatprep.subr.mxu0 0.0
    %2547 = vmatpush1.msra.mxu0 0.0
    %2548 = vmatprep.subr.mxu0 0.0
    %2549 = vmatpush1.msra.mxu0 0.0
    %2550 = vmatprep.subr.mxu0 0.0
    %2551 = vmatpush1.msra.mxu0 0.0
    %2552 = vmatprep.subr.mxu0 0.0
    %2553 = vmatpush1.msra.mxu0 %v2509
    %2554 = vmatprep.subr.mxu0 0.0
    %2555 = vmatpush1.msra.mxu0 %v2507
    %2556 = vmatprep.subr.mxu0 0.0
    %2557 = vmatpush2.msra.mxu0 0.0
    %2558 = vmatprep.subr.mxu0 0.0
    %2559 = vmatpush2.msra.mxu0 0.0
    %2560 = vmatprep.subr.mxu0 0.0
    %2561 = vmatpush2.msra.mxu0 0.0
    %2562 = vmatprep.subr.mxu0 0.0
    %2563 = vmatpush2.msra.mxu0 0.0
    %2564 = vmatprep.subr.mxu0 0.0
    %2565 = vmatpush2.msra.mxu0 0.0
    %2566 = vmatprep.subr.mxu0 0.0
    %2567 = vmatpush2.msra.mxu0 0.0
    %2568 = vmatprep.subr.mxu0 0.0
    %2569 = vmatpush2.msra.mxu0 0.0
    %2570 = vmatprep.subr.mxu0 0.0
    %2571 = vmatpush2.msra.mxu0 0.0
    %2572 = vmatprep.subr.mxu0 0.0
    %2573 = vmatpush2.msra.mxu0 0.0
    %2574 = vmatprep.subr.mxu0 0.0
    %2575 = vmatpush2.msra.mxu0 0.0
    %2576 = vmatprep.subr.mxu0 0.0
    %2577 = vmatpush2.msra.mxu0 0.0
    %2578 = vmatprep.subr.mxu0 0.0
    %2579 = vmatpush2.msra.mxu0 0.0
    %2580 = vmatprep.subr.mxu0 0.0
    %2581 = vmatpush2.msra.mxu0 0.0
    %2582 = vmatprep.subr.mxu0 0.0
    %2583 = vmatpush2.msra.mxu0 0.0
    %2584 = vmatprep.subr.mxu0 0.0
    %2585 = vmatpush2.msra.mxu0 0.0
    %2586 = vmatprep.subr.mxu0 0.0
    %2587 = vmatpush2.msra.mxu0 0.0
    %2588 = vmatprep.mubr.f32.mxu0 0.0
    %2589 = vmatmul.mubr.f32.gmra.mxu0 %v2513
    %v2590 = vpop.f32.mrf.mxu0
    %v2591 = vadd.f32 0.0, %v2590
    %v2592 = vpop.f32.mrf.mxu0
    %2593 = vmatprep.mubr.f32.mxu0 0.0
    %2594 = vmatmul.mubr.f32.gmra.mxu0 %v2516
    %v2595 = vpop.f32.mrf.mxu0
    %v2596 = vadd.f32 0.0, %v2595
    %v2597 = vpop.f32.mrf.mxu0
    %2598 = vmatprep.mubr.f32.mxu0 0.0
    %2599 = vmatmul.mubr.f32.gmra.mxu0 %v2519
    %v2600 = vpop.f32.mrf.mxu0
    %v2601 = vadd.f32 0.0, %v2600
    %v2602 = vpop.f32.mrf.mxu0
    %2603 = vmatprep.mubr.f32.mxu0 0.0
    %2604 = vmatmul.mubr.f32.gmra.mxu0 %v2522
    %v2605 = vpop.f32.mrf.mxu0
    %v2606 = vadd.f32 0.0, %v2605
    %v2607 = vpop.f32.mrf.mxu0
    %2608 = vdwg.mxu0
    %v2609 = vadd.f32 %v2497, %v2591
    %v2610 = vadd.f32 %v2498, %v2596
    %v2611 = vadd.f32 %v2499, %v2601
    %v2612 = vadd.f32 %v2500, %v2606
    %s2613 = scalar_lea.vmem %s3, 704
    %v2614 = vld [vmem:[%s2613] sm:$0xff]
    %v2615 = vld [vmem:[%s2613 + $0x8] sm:$0xff]
    %v2616 = vld [vmem:[%s2613 + $0x10] sm:$0xff]
    %v2617 = vld [vmem:[%s2613 + $0x18] sm:$0xff]
    %2618 = vrot.lane.b32.xlu0 %v163, 84
    %v2619 = vpop.permute.xlu0 %2618
    %2620 = vrot.lane.b32.xlu0 %v164, 84
    %v2621 = vpop.permute.xlu0 %2620
    %v2625 = vsel %vm178, %v2614, 0
    %v2628 = vsel %vm178, %v2615, 0
    %v2631 = vsel %vm178, %v2616, 0
    %v2634 = vsel %vm178, %v2617, 0
    %2636 = vmatprep.subr.mxu0 0.0
    %2637 = vmatpush1.msra.mxu0 0.0
    %2638 = vmatprep.subr.mxu0 0.0
    %2639 = vmatpush1.msra.mxu0 0.0
    %2640 = vmatprep.subr.mxu0 0.0
    %2641 = vmatpush1.msra.mxu0 0.0
    %2642 = vmatprep.subr.mxu0 0.0
    %2643 = vmatpush1.msra.mxu0 0.0
    %2644 = vmatprep.subr.mxu0 0.0
    %2645 = vmatpush1.msra.mxu0 0.0
    %2646 = vmatprep.subr.mxu0 0.0
    %2647 = vmatpush1.msra.mxu0 0.0
    %2648 = vmatprep.subr.mxu0 0.0
    %2649 = vmatpush1.msra.mxu0 0.0
    %2650 = vmatprep.subr.mxu0 0.0
    %2651 = vmatpush1.msra.mxu0 0.0
    %2652 = vmatprep.subr.mxu0 0.0
    %2653 = vmatpush1.msra.mxu0 0.0
    %2654 = vmatprep.subr.mxu0 0.0
    %2655 = vmatpush1.msra.mxu0 0.0
    %2656 = vmatprep.subr.mxu0 0.0
    %2657 = vmatpush1.msra.mxu0 0.0
    %2658 = vmatprep.subr.mxu0 0.0
    %2659 = vmatpush1.msra.mxu0 0.0
    %2660 = vmatprep.subr.mxu0 0.0
    %2661 = vmatpush1.msra.mxu0 0.0
    %2662 = vmatprep.subr.mxu0 0.0
    %2663 = vmatpush1.msra.mxu0 0.0
    %2664 = vmatprep.subr.mxu0 0.0
    %2665 = vmatpush1.msra.mxu0 %v2621
    %2666 = vmatprep.subr.mxu0 0.0
    %2667 = vmatpush1.msra.mxu0 %v2619
    %2668 = vmatprep.subr.mxu0 0.0
    %2669 = vmatpush2.msra.mxu0 0.0
    %2670 = vmatprep.subr.mxu0 0.0
    %2671 = vmatpush2.msra.mxu0 0.0
    %2672 = vmatprep.subr.mxu0 0.0
    %2673 = vmatpush2.msra.mxu0 0.0
    %2674 = vmatprep.subr.mxu0 0.0
    %2675 = vmatpush2.msra.mxu0 0.0
    %2676 = vmatprep.subr.mxu0 0.0
    %2677 = vmatpush2.msra.mxu0 0.0
    %2678 = vmatprep.subr.mxu0 0.0
    %2679 = vmatpush2.msra.mxu0 0.0
    %2680 = vmatprep.subr.mxu0 0.0
    %2681 = vmatpush2.msra.mxu0 0.0
    %2682 = vmatprep.subr.mxu0 0.0
    %2683 = vmatpush2.msra.mxu0 0.0
    %2684 = vmatprep.subr.mxu0 0.0
    %2685 = vmatpush2.msra.mxu0 0.0
    %2686 = vmatprep.subr.mxu0 0.0
    %2687 = vmatpush2.msra.mxu0 0.0
    %2688 = vmatprep.subr.mxu0 0.0
    %2689 = vmatpush2.msra.mxu0 0.0
    %2690 = vmatprep.subr.mxu0 0.0
    %2691 = vmatpush2.msra.mxu0 0.0
    %2692 = vmatprep.subr.mxu0 0.0
    %2693 = vmatpush2.msra.mxu0 0.0
    %2694 = vmatprep.subr.mxu0 0.0
    %2695 = vmatpush2.msra.mxu0 0.0
    %2696 = vmatprep.subr.mxu0 0.0
    %2697 = vmatpush2.msra.mxu0 0.0
    %2698 = vmatprep.subr.mxu0 0.0
    %2699 = vmatpush2.msra.mxu0 0.0
    %2700 = vmatprep.mubr.f32.mxu0 0.0
    %2701 = vmatmul.mubr.f32.gmra.mxu0 %v2625
    %v2702 = vpop.f32.mrf.mxu0
    %v2703 = vadd.f32 0.0, %v2702
    %v2704 = vpop.f32.mrf.mxu0
    %2705 = vmatprep.mubr.f32.mxu0 0.0
    %2706 = vmatmul.mubr.f32.gmra.mxu0 %v2628
    %v2707 = vpop.f32.mrf.mxu0
    %v2708 = vadd.f32 0.0, %v2707
    %v2709 = vpop.f32.mrf.mxu0
    %2710 = vmatprep.mubr.f32.mxu0 0.0
    %2711 = vmatmul.mubr.f32.gmra.mxu0 %v2631
    %v2712 = vpop.f32.mrf.mxu0
    %v2713 = vadd.f32 0.0, %v2712
    %v2714 = vpop.f32.mrf.mxu0
    %2715 = vmatprep.mubr.f32.mxu0 0.0
    %2716 = vmatmul.mubr.f32.gmra.mxu0 %v2634
    %v2717 = vpop.f32.mrf.mxu0
    %v2718 = vadd.f32 0.0, %v2717
    %v2719 = vpop.f32.mrf.mxu0
    %2720 = vdwg.mxu0
    %v2721 = vadd.f32 %v2609, %v2703
    %v2722 = vadd.f32 %v2610, %v2708
    %v2723 = vadd.f32 %v2611, %v2713
    %v2724 = vadd.f32 %v2612, %v2718
    %s2725 = scalar_lea.vmem %s3, 736
    %v2726 = vld [vmem:[%s2725] sm:$0xff]
    %v2727 = vld [vmem:[%s2725 + $0x8] sm:$0xff]
    %v2728 = vld [vmem:[%s2725 + $0x10] sm:$0xff]
    %v2729 = vld [vmem:[%s2725 + $0x18] sm:$0xff]
    %2730 = vrot.lane.b32.xlu0 %v163, 82
    %v2731 = vpop.permute.xlu0 %2730
    %2732 = vrot.lane.b32.xlu0 %v164, 82
    %v2733 = vpop.permute.xlu0 %2732
    %v2737 = vsel %vm178, %v2726, 0
    %v2740 = vsel %vm178, %v2727, 0
    %v2743 = vsel %vm178, %v2728, 0
    %v2746 = vsel %vm178, %v2729, 0
    %2748 = vmatprep.subr.mxu0 0.0
    %2749 = vmatpush1.msra.mxu0 0.0
    %2750 = vmatprep.subr.mxu0 0.0
    %2751 = vmatpush1.msra.mxu0 0.0
    %2752 = vmatprep.subr.mxu0 0.0
    %2753 = vmatpush1.msra.mxu0 0.0
    %2754 = vmatprep.subr.mxu0 0.0
    %2755 = vmatpush1.msra.mxu0 0.0
    %2756 = vmatprep.subr.mxu0 0.0
    %2757 = vmatpush1.msra.mxu0 0.0
    %2758 = vmatprep.subr.mxu0 0.0
    %2759 = vmatpush1.msra.mxu0 0.0
    %2760 = vmatprep.subr.mxu0 0.0
    %2761 = vmatpush1.msra.mxu0 0.0
    %2762 = vmatprep.subr.mxu0 0.0
    %2763 = vmatpush1.msra.mxu0 0.0
    %2764 = vmatprep.subr.mxu0 0.0
    %2765 = vmatpush1.msra.mxu0 0.0
    %2766 = vmatprep.subr.mxu0 0.0
    %2767 = vmatpush1.msra.mxu0 0.0
    %2768 = vmatprep.subr.mxu0 0.0
    %2769 = vmatpush1.msra.mxu0 0.0
    %2770 = vmatprep.subr.mxu0 0.0
    %2771 = vmatpush1.msra.mxu0 0.0
    %2772 = vmatprep.subr.mxu0 0.0
    %2773 = vmatpush1.msra.mxu0 0.0
    %2774 = vmatprep.subr.mxu0 0.0
    %2775 = vmatpush1.msra.mxu0 0.0
    %2776 = vmatprep.subr.mxu0 0.0
    %2777 = vmatpush1.msra.mxu0 %v2733
    %2778 = vmatprep.subr.mxu0 0.0
    %2779 = vmatpush1.msra.mxu0 %v2731
    %2780 = vmatprep.subr.mxu0 0.0
    %2781 = vmatpush2.msra.mxu0 0.0
    %2782 = vmatprep.subr.mxu0 0.0
    %2783 = vmatpush2.msra.mxu0 0.0
    %2784 = vmatprep.subr.mxu0 0.0
    %2785 = vmatpush2.msra.mxu0 0.0
    %2786 = vmatprep.subr.mxu0 0.0
    %2787 = vmatpush2.msra.mxu0 0.0
    %2788 = vmatprep.subr.mxu0 0.0
    %2789 = vmatpush2.msra.mxu0 0.0
    %2790 = vmatprep.subr.mxu0 0.0
    %2791 = vmatpush2.msra.mxu0 0.0
    %2792 = vmatprep.subr.mxu0 0.0
    %2793 = vmatpush2.msra.mxu0 0.0
    %2794 = vmatprep.subr.mxu0 0.0
    %2795 = vmatpush2.msra.mxu0 0.0
    %2796 = vmatprep.subr.mxu0 0.0
    %2797 = vmatpush2.msra.mxu0 0.0
    %2798 = vmatprep.subr.mxu0 0.0
    %2799 = vmatpush2.msra.mxu0 0.0
    %2800 = vmatprep.subr.mxu0 0.0
    %2801 = vmatpush2.msra.mxu0 0.0
    %2802 = vmatprep.subr.mxu0 0.0
    %2803 = vmatpush2.msra.mxu0 0.0
    %2804 = vmatprep.subr.mxu0 0.0
    %2805 = vmatpush2.msra.mxu0 0.0
    %2806 = vmatprep.subr.mxu0 0.0
    %2807 = vmatpush2.msra.mxu0 0.0
    %2808 = vmatprep.subr.mxu0 0.0
    %2809 = vmatpush2.msra.mxu0 0.0
    %2810 = vmatprep.subr.mxu0 0.0
    %2811 = vmatpush2.msra.mxu0 0.0
    %2812 = vmatprep.mubr.f32.mxu0 0.0
    %2813 = vmatmul.mubr.f32.gmra.mxu0 %v2737
    %v2814 = vpop.f32.mrf.mxu0
    %v2815 = vadd.f32 0.0, %v2814
    %v2816 = vpop.f32.mrf.mxu0
    %2817 = vmatprep.mubr.f32.mxu0 0.0
    %2818 = vmatmul.mubr.f32.gmra.mxu0 %v2740
    %v2819 = vpop.f32.mrf.mxu0
    %v2820 = vadd.f32 0.0, %v2819
    %v2821 = vpop.f32.mrf.mxu0
    %2822 = vmatprep.mubr.f32.mxu0 0.0
    %2823 = vmatmul.mubr.f32.gmra.mxu0 %v2743
    %v2824 = vpop.f32.mrf.mxu0
    %v2825 = vadd.f32 0.0, %v2824
    %v2826 = vpop.f32.mrf.mxu0
    %2827 = vmatprep.mubr.f32.mxu0 0.0
    %2828 = vmatmul.mubr.f32.gmra.mxu0 %v2746
    %v2829 = vpop.f32.mrf.mxu0
    %v2830 = vadd.f32 0.0, %v2829
    %v2831 = vpop.f32.mrf.mxu0
    %2832 = vdwg.mxu0
    %v2833 = vadd.f32 %v2721, %v2815
    %v2834 = vadd.f32 %v2722, %v2820
    %v2835 = vadd.f32 %v2723, %v2825
    %v2836 = vadd.f32 %v2724, %v2830
    %s2837 = scalar_lea.vmem %s3, 768
    %v2838 = vld [vmem:[%s2837] sm:$0xff]
    %v2839 = vld [vmem:[%s2837 + $0x8] sm:$0xff]
    %v2840 = vld [vmem:[%s2837 + $0x10] sm:$0xff]
    %v2841 = vld [vmem:[%s2837 + $0x18] sm:$0xff]
    %2842 = vrot.lane.b32.xlu0 %v163, 80
    %v2843 = vpop.permute.xlu0 %2842
    %2844 = vrot.lane.b32.xlu0 %v164, 80
    %v2845 = vpop.permute.xlu0 %2844
    %v2849 = vsel %vm178, %v2838, 0
    %v2852 = vsel %vm178, %v2839, 0
    %v2855 = vsel %vm178, %v2840, 0
    %v2858 = vsel %vm178, %v2841, 0
    %2860 = vmatprep.subr.mxu0 0.0
    %2861 = vmatpush1.msra.mxu0 0.0
    %2862 = vmatprep.subr.mxu0 0.0
    %2863 = vmatpush1.msra.mxu0 0.0
    %2864 = vmatprep.subr.mxu0 0.0
    %2865 = vmatpush1.msra.mxu0 0.0
    %2866 = vmatprep.subr.mxu0 0.0
    %2867 = vmatpush1.msra.mxu0 0.0
    %2868 = vmatprep.subr.mxu0 0.0
    %2869 = vmatpush1.msra.mxu0 0.0
    %2870 = vmatprep.subr.mxu0 0.0
    %2871 = vmatpush1.msra.mxu0 0.0
    %2872 = vmatprep.subr.mxu0 0.0
    %2873 = vmatpush1.msra.mxu0 0.0
    %2874 = vmatprep.subr.mxu0 0.0
    %2875 = vmatpush1.msra.mxu0 0.0
    %2876 = vmatprep.subr.mxu0 0.0
    %2877 = vmatpush1.msra.mxu0 0.0
    %2878 = vmatprep.subr.mxu0 0.0
    %2879 = vmatpush1.msra.mxu0 0.0
    %2880 = vmatprep.subr.mxu0 0.0
    %2881 = vmatpush1.msra.mxu0 0.0
    %2882 = vmatprep.subr.mxu0 0.0
    %2883 = vmatpush1.msra.mxu0 0.0
    %2884 = vmatprep.subr.mxu0 0.0
    %2885 = vmatpush1.msra.mxu0 0.0
    %2886 = vmatprep.subr.mxu0 0.0
    %2887 = vmatpush1.msra.mxu0 0.0
    %2888 = vmatprep.subr.mxu0 0.0
    %2889 = vmatpush1.msra.mxu0 %v2845
    %2890 = vmatprep.subr.mxu0 0.0
    %2891 = vmatpush1.msra.mxu0 %v2843
    %2892 = vmatprep.subr.mxu0 0.0
    %2893 = vmatpush2.msra.mxu0 0.0
    %2894 = vmatprep.subr.mxu0 0.0
    %2895 = vmatpush2.msra.mxu0 0.0
    %2896 = vmatprep.subr.mxu0 0.0
    %2897 = vmatpush2.msra.mxu0 0.0
    %2898 = vmatprep.subr.mxu0 0.0
    %2899 = vmatpush2.msra.mxu0 0.0
    %2900 = vmatprep.subr.mxu0 0.0
    %2901 = vmatpush2.msra.mxu0 0.0
    %2902 = vmatprep.subr.mxu0 0.0
    %2903 = vmatpush2.msra.mxu0 0.0
    %2904 = vmatprep.subr.mxu0 0.0
    %2905 = vmatpush2.msra.mxu0 0.0
    %2906 = vmatprep.subr.mxu0 0.0
    %2907 = vmatpush2.msra.mxu0 0.0
    %2908 = vmatprep.subr.mxu0 0.0
    %2909 = vmatpush2.msra.mxu0 0.0
    %2910 = vmatprep.subr.mxu0 0.0
    %2911 = vmatpush2.msra.mxu0 0.0
    %2912 = vmatprep.subr.mxu0 0.0
    %2913 = vmatpush2.msra.mxu0 0.0
    %2914 = vmatprep.subr.mxu0 0.0
    %2915 = vmatpush2.msra.mxu0 0.0
    %2916 = vmatprep.subr.mxu0 0.0
    %2917 = vmatpush2.msra.mxu0 0.0
    %2918 = vmatprep.subr.mxu0 0.0
    %2919 = vmatpush2.msra.mxu0 0.0
    %2920 = vmatprep.subr.mxu0 0.0
    %2921 = vmatpush2.msra.mxu0 0.0
    %2922 = vmatprep.subr.mxu0 0.0
    %2923 = vmatpush2.msra.mxu0 0.0
    %2924 = vmatprep.mubr.f32.mxu0 0.0
    %2925 = vmatmul.mubr.f32.gmra.mxu0 %v2849
    %v2926 = vpop.f32.mrf.mxu0
    %v2927 = vadd.f32 0.0, %v2926
    %v2928 = vpop.f32.mrf.mxu0
    %2929 = vmatprep.mubr.f32.mxu0 0.0
    %2930 = vmatmul.mubr.f32.gmra.mxu0 %v2852
    %v2931 = vpop.f32.mrf.mxu0
    %v2932 = vadd.f32 0.0, %v2931
    %v2933 = vpop.f32.mrf.mxu0
    %2934 = vmatprep.mubr.f32.mxu0 0.0
    %2935 = vmatmul.mubr.f32.gmra.mxu0 %v2855
    %v2936 = vpop.f32.mrf.mxu0
    %v2937 = vadd.f32 0.0, %v2936
    %v2938 = vpop.f32.mrf.mxu0
    %2939 = vmatprep.mubr.f32.mxu0 0.0
    %2940 = vmatmul.mubr.f32.gmra.mxu0 %v2858
    %v2941 = vpop.f32.mrf.mxu0
    %v2942 = vadd.f32 0.0, %v2941
    %v2943 = vpop.f32.mrf.mxu0
    %2944 = vdwg.mxu0
    %v2945 = vadd.f32 %v2833, %v2927
    %v2946 = vadd.f32 %v2834, %v2932
    %v2947 = vadd.f32 %v2835, %v2937
    %v2948 = vadd.f32 %v2836, %v2942
    %v2949 = vld [vmem:[%s4] sm:$0xff]
    %v2950 = vld [vmem:[%s4 + $0x8] sm:$0xff]
    %v2951 = vld [vmem:[%s4 + $0x10] sm:$0xff]
    %v2952 = vld [vmem:[%s4 + $0x18] sm:$0xff]
    %2954 = vset.pattern.permute.xlu0 0
    %2955 = vperm.xlu0 %2954, %v2949
    %v2956 = vpop.permute.xlu0 %2955
    %2959 = vset.pattern.permute.xlu0 0
    %2960 = vperm.xlu0 %2959, %v2950
    %v2961 = vpop.permute.xlu0 %2960
    %2964 = vset.pattern.permute.xlu0 0
    %2965 = vperm.xlu0 %2964, %v2951
    %v2966 = vpop.permute.xlu0 %2965
    %2969 = vset.pattern.permute.xlu0 0
    %2970 = vperm.xlu0 %2969, %v2952
    %v2971 = vpop.permute.xlu0 %2970
    %v2973 = vadd.f32 %v2945, %v2956
    %v2974 = vadd.f32 %v2946, %v2961
    %v2975 = vadd.f32 %v2947, %v2966
    %v2976 = vadd.f32 %v2948, %v2971
    %v2977 = vmul.f32 %v2973, 0.2
    %v2978 = vmul.f32 %v2974, 0.2
    %v2979 = vmul.f32 %v2975, 0.2
    %v2980 = vmul.f32 %v2976, 0.2
    %v2981 = vmax.f32 %v2973, %v2977
    %v2982 = vmax.f32 %v2974, %v2978
    %v2983 = vmax.f32 %v2975, %v2979
    %v2984 = vmax.f32 %v2976, %v2980
    %v2985 = vld [vmem:[%s5] sm:$0x1]
    %v2986 = vld [vmem:[#allocation3] sm:$0x1]
    %2988 = vset.pattern.permute.xlu0 0
    %2989 = vperm.xlu0 %2988, %v2986
    %v2990 = vpop.permute.xlu0 %2989
    %v2992 = vlaneseq
    %v2993 = vshrl.u32 %v2992, 7
    %v2994 = vsub.s32 0, %v2993
    %v2995 = vrot.slane %v2990, %v2994
    %vm2996 = vcmask 261120
    %v2998 = vsel %vm2996, %v2985, 0
    %3000 = vmatprep.subr.mxu0 0.0
    %3001 = vmatpush1.msra.mxu0 0.0
    %3002 = vmatprep.subr.mxu0 0.0
    %3003 = vmatpush1.msra.mxu0 0.0
    %3004 = vmatprep.subr.mxu0 0.0
    %3005 = vmatpush1.msra.mxu0 0.0
    %3006 = vmatprep.subr.mxu0 0.0
    %3007 = vmatpush1.msra.mxu0 0.0
    %3008 = vmatprep.subr.mxu0 0.0
    %3009 = vmatpush1.msra.mxu0 0.0
    %3010 = vmatprep.subr.mxu0 0.0
    %3011 = vmatpush1.msra.mxu0 0.0
    %3012 = vmatprep.subr.mxu0 0.0
    %3013 = vmatpush1.msra.mxu0 0.0
    %3014 = vmatprep.subr.mxu0 0.0
    %3015 = vmatpush1.msra.mxu0 0.0
    %3016 = vmatprep.subr.mxu0 0.0
    %3017 = vmatpush1.msra.mxu0 0.0
    %3018 = vmatprep.subr.mxu0 0.0
    %3019 = vmatpush1.msra.mxu0 0.0
    %3020 = vmatprep.subr.mxu0 0.0
    %3021 = vmatpush1.msra.mxu0 0.0
    %3022 = vmatprep.subr.mxu0 0.0
    %3023 = vmatpush1.msra.mxu0 0.0
    %3024 = vmatprep.subr.mxu0 0.0
    %3025 = vmatpush1.msra.mxu0 %v2984
    %3026 = vmatprep.subr.mxu0 0.0
    %3027 = vmatpush1.msra.mxu0 %v2983
    %3028 = vmatprep.subr.mxu0 0.0
    %3029 = vmatpush1.msra.mxu0 %v2982
    %3030 = vmatprep.subr.mxu0 0.0
    %3031 = vmatpush1.msra.mxu0 %v2981
    %3032 = vmatprep.subr.mxu0 0.0
    %3033 = vmatpush2.msra.mxu0 0.0
    %3034 = vmatprep.subr.mxu0 0.0
    %3035 = vmatpush2.msra.mxu0 0.0
    %3036 = vmatprep.subr.mxu0 0.0
    %3037 = vmatpush2.msra.mxu0 0.0
    %3038 = vmatprep.subr.mxu0 0.0
    %3039 = vmatpush2.msra.mxu0 0.0
    %3040 = vmatprep.subr.mxu0 0.0
    %3041 = vmatpush2.msra.mxu0 0.0
    %3042 = vmatprep.subr.mxu0 0.0
    %3043 = vmatpush2.msra.mxu0 0.0
    %3044 = vmatprep.subr.mxu0 0.0
    %3045 = vmatpush2.msra.mxu0 0.0
    %3046 = vmatprep.subr.mxu0 0.0
    %3047 = vmatpush2.msra.mxu0 0.0
    %3048 = vmatprep.subr.mxu0 0.0
    %3049 = vmatpush2.msra.mxu0 0.0
    %3050 = vmatprep.subr.mxu0 0.0
    %3051 = vmatpush2.msra.mxu0 0.0
    %3052 = vmatprep.subr.mxu0 0.0
    %3053 = vmatpush2.msra.mxu0 0.0
    %3054 = vmatprep.subr.mxu0 0.0
    %3055 = vmatpush2.msra.mxu0 0.0
    %3056 = vmatprep.subr.mxu0 0.0
    %3057 = vmatpush2.msra.mxu0 0.0
    %3058 = vmatprep.subr.mxu0 0.0
    %3059 = vmatpush2.msra.mxu0 0.0
    %3060 = vmatprep.subr.mxu0 0.0
    %3061 = vmatpush2.msra.mxu0 0.0
    %3062 = vmatprep.subr.mxu0 0.0
    %3063 = vmatpush2.msra.mxu0 0.0
    %3064 = vmatprep.mubr.f32.mxu0 0.0
    %3065 = vmatmul.mubr.f32.gmra.mxu0 %v2998
    %v3066 = vpop.f32.mrf.mxu0
    %v3067 = vadd.f32 %v2995, %v3066
    %v3068 = vpop.f32.mrf.mxu0
    %3069 = vdwg.mxu0
    %vm3070 = vcmask 8192
    %3071 = vst.msk [vmem:[#allocation4] sm:$0x1] %vm3070, %v3067
    // Predicated region
    $region30: #{eve_forward.5} parent=1 // pred_check
      _
    $region31: #{eve_forward.5} parent=1 // pred_check_branch
      %3073 = sbr.rel (0) target = $region33
    $region32: #{eve_forward.5} parent=1 // pred_region
      %s3075 = ssub.s32 16, 16
      %3076 = vsyncadd [#allocation5], %s3075
      %s3078 = sshll.u32 [#allocation4], 4
      %s3079 = int_to_ptr.vmem [resolvable:$true] %s3078
      %3081 = dma.vmem_to_hbm [thread:$0]  %s3079, 16, %s7, [#allocation5]
    $region33: #{eve_forward.5} parent=1 // pred_fallthru
      _
    // Predicated region
    $region34: #{eve_forward.5} parent=1 // pred_check
      _
    $region35: #{eve_forward.5} parent=1 // pred_check_branch
      %3083 = sbr.rel (0) target = $region37
    $region36: #{eve_forward.5} parent=1 // pred_region
      %3084 = dma.done [#allocation5], 16
    $region37: #{eve_forward.5} parent=1 // pred_fallthru
      _
    %3085 = vsyncpa [#allocation5], 1

</llo_original>
